<compile_context>
chip_gen: v6e
topology: v6e:2x2x1
jax: 0.10.0
libtpu: 0.0.40
codegen_flags: <defaults>
</compile_context>

<pallas_src>
import functools

import jax
import jax.numpy as jnp
from jax import lax
from jax.experimental import pallas as pl
from jax.experimental.pallas import tpu as pltpu


# ---------------------------------------------------------------------------
# Kernel 1: fused 4-stream encoder
#   stream order: 0 = q (joint), 1 = q_motion, 2 = k (joint), 3 = k_motion
# ---------------------------------------------------------------------------
def _encoder4_kernel(xq_ref, xk_ref, w1_ref, b1_ref, wm1_ref, bm1_ref,
                     wm2_ref, bm2_ref, feat_ref, *, compute_dtype):
    xq = xq_ref[...]                           # (N, C*T*V*M), lane-dense
    xk = xk_ref[...]
    xs = (xq, xq, xk, xk)                      # stream -> input slab
    for s in range(4):                         # unrolled; weights differ per stream
        x = xs[s].astype(compute_dtype)
        # first layer: motion-diff + mean-pool already folded into w1_ref[s]
        h = jnp.dot(x, w1_ref[s].astype(compute_dtype),
                    preferred_element_type=jnp.float32) + b1_ref[s]
        h = jnp.maximum(h, 0.0)
        h = jnp.dot(h.astype(compute_dtype), wm1_ref[s].astype(compute_dtype),
                    preferred_element_type=jnp.float32) + bm1_ref[s]
        h = jnp.maximum(h, 0.0)
        f = jnp.dot(h.astype(compute_dtype), wm2_ref[s].astype(compute_dtype),
                    preferred_element_type=jnp.float32) + bm2_ref[s]
        # F.normalize(dim=1): x / max(||x||_2, 1e-12)  (kept in f32, v5e-safe)
        norm = jnp.sqrt(jnp.sum(f * f, axis=1, keepdims=True))
        feat_ref[s] = f / jnp.maximum(norm, 1e-12)


# ---------------------------------------------------------------------------
# Kernel 2: MoCo contrastive logits (both streams) + in-place queue enqueue
#   l_pos = einsum('nc,nc->n', q, k)[:, None] / T
#   l_neg = einsum('nc,ck->nk', q, queue)    / T   (queue stored as (K, D))
# ---------------------------------------------------------------------------
def _contrast_kernel(ptrs_ref, q_ref, k_ref, qm_ref, km_ref,
                     queue_ref, queue_m_ref,
                     lpos_ref, lneg_ref, lpos_m_ref, lneg_m_ref,
                     qnew_ref, qmnew_ref, *, inv_t, batch, compute_dtype):
    q = q_ref[...]
    k = k_ref[...]
    qm = qm_ref[...]
    km = km_ref[...]

    # positive logits (tiny (N,1) outputs, kept separate from the lane-dense l_neg)
    lpos_ref[...] = jnp.sum(q * k, axis=1, keepdims=True) * inv_t
    lpos_m_ref[...] = jnp.sum(qm * km, axis=1, keepdims=True) * inv_t

    # negative logits: queue is stored transposed (K, D) -> contract feature dim
    # of both operands; output (N, K) is lane-dense (K multiple of 128).
    dn = (((1,), (1,)), ((), ()))
    lneg_ref[...] = lax.dot_general(
        q.astype(compute_dtype), queue_ref[...].astype(compute_dtype), dn,
        preferred_element_type=jnp.float32) * inv_t
    lneg_m_ref[...] = lax.dot_general(
        qm.astype(compute_dtype), queue_m_ref[...].astype(compute_dtype), dn,
        preferred_element_type=jnp.float32) * inv_t

    # dequeue_and_enqueue: rows [ptr, ptr+batch) <- new keys.  The queue outputs
    # alias the queue inputs (input_output_aliases), so this is an in-place HBM
    # update with no separate XLA read-modify-write dispatch.
    qnew_ref[...] = queue_ref[...]
    qmnew_ref[...] = queue_m_ref[...]
    ptr = pl.multiple_of(ptrs_ref[0], batch)
    ptr_m = pl.multiple_of(ptrs_ref[1], batch)
    qnew_ref[pl.ds(ptr, batch), :] = k
    qmnew_ref[pl.ds(ptr_m, batch), :] = km


# ---------------------------------------------------------------------------
# host-side (jit-fused) weight preparation
# ---------------------------------------------------------------------------
def _fold_pool_into_w1(w1, T, VM, motion):
    """(C, H) -> (C*T*VM, H): fold mean-pool over (T, V, M) — and, for motion
    streams, the temporal diff x[:, :, t+1] - x[:, :, t] with the last frame
    zeroed — into the first-layer weight.

    Both ops are linear in x, so  mean_pool(motion(x)) @ w1 == x_flat @ w1_eff
    exactly: under the mean over t the temporal diff telescopes to
    (x[T-1] - x[0]) / (T*V*M) summed over (v, m).
    """
    C, H = w1.shape
    F = T * VM
    if motion:
        g = jnp.zeros((T,), w1.dtype)
        if T > 1:
            g = g.at[0].set(-1.0).at[T - 1].set(1.0)
    else:
        g = jnp.ones((T,), w1.dtype)
    coeff = jnp.repeat(g, VM) / float(F)             # (T*VM,)
    w_eff = coeff[None, :, None] * w1[:, None, :]    # (C, T*VM, H)
    return w_eff.reshape(C * F, H)


# ---------------------------------------------------------------------------
# the whole forward as one pure, jittable function (state threaded explicitly)
# ---------------------------------------------------------------------------
def _forward_impl(enc_q, enc_q_motion, enc_k, enc_k_motion,
                  queue, queue_motion, ptrs, im_q, im_k,
                  *, momentum, inv_t, compute_dtype):
    N, C, T, V, M = im_q.shape
    VM = V * M
    Kq, d_feat = queue.shape

    # momentum update of the key encoders (the torch.no_grad() section)
    upd = lambda pk, pq: pk * momentum + pq * (1.0 - momentum)
    enc_k = jax.tree_util.tree_map(upd, enc_k, enc_q)
    enc_k_motion = jax.tree_util.tree_map(upd, enc_k_motion, enc_q_motion)

    # lane-dense slabs for the encoder kernel
    xq = im_q.reshape(N, C * T * VM)
    xk = im_k.reshape(N, C * T * VM)

    streams = ((enc_q, False), (enc_q_motion, True),
               (enc_k, False), (enc_k_motion, True))
    w1s = jnp.stack([_fold_pool_into_w1(p["w1"], T, VM, mo) for p, mo in streams])
    b1s = jnp.stack([p["b1"] for p, _ in streams])
    wm1s = jnp.stack([p["wm1"] for p, _ in streams])
    bm1s = jnp.stack([p["bm1"] for p, _ in streams])
    wm2s = jnp.stack([p["wm2"] for p, _ in streams])
    bm2s = jnp.stack([p["bm2"] for p, _ in streams])

    # ---- kernel 1: all four encoder streams in one gridless pallas_call ----
    feats = pl.pallas_call(
        functools.partial(_encoder4_kernel, compute_dtype=compute_dtype),
        out_shape=jax.ShapeDtypeStruct((4, N, d_feat), jnp.float32),
    )(xq, xk, w1s, b1s, wm1s, bm1s, wm2s, bm2s)
    q, q_motion, k, k_motion = feats[0], feats[1], feats[2], feats[3]

    # ---- kernel 2: contrastive logits + in-place queue enqueue -------------
    # NOTE: for realistic queue sizes (K=32768) on v7x, tile the queue's K axis
    # with a grid and/or store the queue in bf16 (compute_dtype knob) so the
    # (K, D) block fits the 32 MiB scoped / 64 MiB physical VMEM.
    vmem = pl.BlockSpec(memory_space=pltpu.MemorySpace.VMEM)
    smem = pl.BlockSpec(memory_space=pltpu.MemorySpace.SMEM)
    outs = pl.pallas_call(
        functools.partial(_contrast_kernel, inv_t=inv_t, batch=N,
                          compute_dtype=compute_dtype),
        out_shape=(
            jax.ShapeDtypeStruct((N, 1), jnp.float32),       # l_pos
            jax.ShapeDtypeStruct((N, Kq), jnp.float32),      # l_neg (lane-dense)
            jax.ShapeDtypeStruct((N, 1), jnp.float32),       # l_pos_motion
            jax.ShapeDtypeStruct((N, Kq), jnp.float32),      # l_neg_motion
            jax.ShapeDtypeStruct((Kq, d_feat), jnp.float32),  # updated queue
            jax.ShapeDtypeStruct((Kq, d_feat), jnp.float32),  # updated queue_motion
        ),
        in_specs=[smem, vmem, vmem, vmem, vmem, vmem, vmem],
        input_output_aliases={5: 4, 6: 5},
    )(ptrs, q, k, q_motion, k_motion, queue, queue_motion)
    l_pos, l_neg, l_pos_m, l_neg_m, queue, queue_motion = outs

    # logits = cat([l_pos, l_neg], 1) / T  (scaling done in-kernel; the concat
    # is left to XLA so the kernel stores stay lane-dense)
    logits = jnp.concatenate([l_pos, l_neg], axis=1)
    logits_motion = jnp.concatenate([l_pos_m, l_neg_m], axis=1)
    labels = jnp.zeros((N,), jnp.int32)   # torch uses int64; int32 is fine in JAX

    ptrs = (ptrs + N) % Kq                # update_ptr for both queues
    return (logits, logits_motion, labels,
            enc_k, enc_k_motion, queue, queue_motion, ptrs)


# ---------------------------------------------------------------------------
# parameters / module
# ---------------------------------------------------------------------------
def init_encoder_params(key, in_channels, hidden_dim, feature_dim):
    k1, k2, k3, k4, k5, k6 = jax.random.split(key, 6)
    s = 0.05
    return {
        "w1":  s * jax.random.normal(k1, (in_channels, hidden_dim), jnp.float32),
        "b1":  s * jax.random.normal(k2, (1, hidden_dim), jnp.float32),
        "wm1": s * jax.random.normal(k3, (hidden_dim, hidden_dim), jnp.float32),
        "bm1": s * jax.random.normal(k4, (1, hidden_dim), jnp.float32),
        "wm2": s * jax.random.normal(k5, (hidden_dim, feature_dim), jnp.float32),
        "bm2": s * jax.random.normal(k6, (1, feature_dim), jnp.float32),
    }


class CrosSCLRPallas:
    """CrosSCLR pretrain forward (cross=False) with a synthetic pool+MLP encoder.

    State (key encoders, queues, pointers) is threaded through a single jitted
    pure function; the class only stores and swaps the returned arrays.

    Queues are stored transposed, shape (K, feature_dim), so the enqueue is a
    sublane-contiguous row write inside the contrastive kernel (PyTorch stores
    (feature_dim, K)); the logits are identical.

    compute_dtype: dtype used for MXU matmul operands inside the kernels
    (accumulation stays f32).  Use jnp.bfloat16 on v6e / v7x for lower VMEM
    footprint and higher MXU throughput; default f32 keeps exact numerics.
    """

    def __init__(self, key, *, in_channels=3, hidden_dim=32, feature_dim=128,
                 queue_size=256, momentum=0.999, temperature=0.07,
                 compute_dtype=jnp.float32):
        self.m = momentum
        self.T = temperature
        self.K = queue_size
        self.compute_dtype = compute_dtype

        kq, kqm, kqueue, kqueue_m = jax.random.split(key, 4)
        # query encoders
        self.enc_q = init_encoder_params(kq, in_channels, hidden_dim, feature_dim)
        self.enc_q_motion = init_encoder_params(kqm, in_channels, hidden_dim,
                                                feature_dim)
        # key encoders start as copies of the query encoders
        self.enc_k = jax.tree_util.tree_map(lambda p: p, self.enc_q)
        self.enc_k_motion = jax.tree_util.tree_map(lambda p: p, self.enc_q_motion)

        # queues: randn(D, K), normalized along dim 0, stored transposed (K, D)
        q0 = jax.random.normal(kqueue, (feature_dim, queue_size), jnp.float32)
        q0 = q0 / jnp.maximum(jnp.linalg.norm(q0, axis=0, keepdims=True), 1e-12)
        self.queue = q0.T
        q1 = jax.random.normal(kqueue_m, (feature_dim, queue_size), jnp.float32)
        q1 = q1 / jnp.maximum(jnp.linalg.norm(q1, axis=0, keepdims=True), 1e-12)
        self.queue_motion = q1.T
        # [queue_ptr, queue_ptr_motion]
        self.ptrs = jnp.zeros((2,), jnp.int32)

        m, inv_t, cdt = self.m, 1.0 / self.T, self.compute_dtype

        def fwd(enc_q, enc_q_motion, enc_k, enc_k_motion,
                queue, queue_motion, ptrs, im_q, im_k):
            return _forward_impl(enc_q, enc_q_motion, enc_k, enc_k_motion,
                                 queue, queue_motion, ptrs, im_q, im_k,
                                 momentum=m, inv_t=inv_t, compute_dtype=cdt)

        # In a real training loop add donate_argnums=(4, 5) so the queue buffers
        # are updated fully in place (no parameter copy before the aliased call).
        self._fwd = jax.jit(fwd)

    def forward(self, im_q, im_k):
        n = im_q.shape[0]
        assert self.K % n == 0
        (logits, logits_motion, labels,
         enc_k, enc_k_motion, queue, queue_motion, ptrs) = self._fwd(
            self.enc_q, self.enc_q_motion, self.enc_k, self.enc_k_motion,
            self.queue, self.queue_motion, self.ptrs, im_q, im_k)
        # commit the new state
        self.enc_k, self.enc_k_motion = enc_k, enc_k_motion
        self.queue, self.queue_motion = queue, queue_motion
        self.ptrs = ptrs
        return logits, logits_motion, labels


# ---------------------------------------------------------------------------
if __name__ == "__main__":
    key = jax.random.PRNGKey(0)
    k_model, k_q, k_k = jax.random.split(key, 3)

    # small skeleton-like input: (N, C, T, V, M)
    N, C, T, V, M = 8, 3, 8, 16, 2
    im_q = jax.random.normal(k_q, (N, C, T, V, M), jnp.float32)
    im_k = jax.random.normal(k_k, (N, C, T, V, M), jnp.float32)

    model = CrosSCLRPallas(k_model, in_channels=C, hidden_dim=32,
                           feature_dim=128, queue_size=256,
                           momentum=0.999, temperature=0.07)

    logits, logits_motion, labels = model.forward(im_q, im_k)
    jax.block_until_ready((logits, logits_motion, labels))
    assert logits.shape == (N, 1 + model.K)
    assert logits_motion.shape == (N, 1 + model.K)
    assert labels.shape == (N,)

    # second step exercises the threaded state (momentum update, queue enqueue,
    # pointer advance) without retracing
    logits2, logits_motion2, labels2 = model.forward(im_q, im_k)
    jax.block_until_ready((logits2, logits_motion2, labels2))
    assert int(model.ptrs[0]) == (2 * N) % model.K
    assert int(model.ptrs[1]) == (2 * N) % model.K

    print("KERNEL_OK")
</pallas_src>

<mosaic_0001>
module attributes {stable_mosaic.version = 11 : i64} {
  func.func @_contrast_kernel(%arg0: memref<2xi32, #tpu.memory_space<smem>>, %arg1: memref<8x128xf32, #tpu.memory_space<vmem>>, %arg2: memref<8x128xf32, #tpu.memory_space<vmem>>, %arg3: memref<8x128xf32, #tpu.memory_space<vmem>>, %arg4: memref<8x128xf32, #tpu.memory_space<vmem>>, %arg5: memref<256x128xf32, #tpu.memory_space<vmem>>, %arg6: memref<256x128xf32, #tpu.memory_space<vmem>>, %arg7: memref<8x1xf32, #tpu.memory_space<vmem>>, %arg8: memref<8x256xf32, #tpu.memory_space<vmem>>, %arg9: memref<8x1xf32, #tpu.memory_space<vmem>>, %arg10: memref<8x256xf32, #tpu.memory_space<vmem>>, %arg11: memref<256x128xf32, #tpu.memory_space<vmem>>, %arg12: memref<256x128xf32, #tpu.memory_space<vmem>>) attributes {dimension_semantics = [], scalar_prefetch = 0 : i64, scratch_operands = 0 : i64, tpu.core_type = #tpu.core_type<tc>} {
    %c0 = arith.constant 0 : index
    %c0_0 = arith.constant 0 : index
    %0 = vector.load %arg1[%c0, %c0_0] : memref<8x128xf32, #tpu.memory_space<vmem>>, vector<8x128xf32>
    %c0_1 = arith.constant 0 : index
    %c0_2 = arith.constant 0 : index
    %1 = vector.load %arg2[%c0_1, %c0_2] : memref<8x128xf32, #tpu.memory_space<vmem>>, vector<8x128xf32>
    %c0_3 = arith.constant 0 : index
    %c0_4 = arith.constant 0 : index
    %2 = vector.load %arg3[%c0_3, %c0_4] : memref<8x128xf32, #tpu.memory_space<vmem>>, vector<8x128xf32>
    %c0_5 = arith.constant 0 : index
    %c0_6 = arith.constant 0 : index
    %3 = vector.load %arg4[%c0_5, %c0_6] : memref<8x128xf32, #tpu.memory_space<vmem>>, vector<8x128xf32>
    %4 = arith.mulf %0, %1 : vector<8x128xf32>
    %cst = arith.constant dense<0.000000e+00> : vector<8xf32>
    %5 = vector.multi_reduction <add>, %4, %cst [1] : vector<8x128xf32> to vector<8xf32>
    %6 = vector.shape_cast %5 : vector<8xf32> to vector<8x1xf32>
    %cst_7 = arith.constant 14.2857141 : f32
    %7 = vector.broadcast %cst_7 : f32 to vector<8x1xf32>
    %8 = arith.mulf %6, %7 : vector<8x1xf32>
    %c0_8 = arith.constant 0 : index
    %c0_9 = arith.constant 0 : index
    %9 = vector.load %arg7[%c0_8, %c0_9] : memref<8x1xf32, #tpu.memory_space<vmem>>, vector<8x1xf32>
    tpu.vector_store %arg7[%c0_8, %c0_9], %8 {strides = array<i32>} : memref<8x1xf32, #tpu.memory_space<vmem>>, vector<8x1xf32>,
    %10 = arith.mulf %2, %3 : vector<8x128xf32>
    %cst_10 = arith.constant dense<0.000000e+00> : vector<8xf32>
    %11 = vector.multi_reduction <add>, %10, %cst_10 [1] : vector<8x128xf32> to vector<8xf32>
    %12 = vector.shape_cast %11 : vector<8xf32> to vector<8x1xf32>
    %cst_11 = arith.constant 14.2857141 : f32
    %13 = vector.broadcast %cst_11 : f32 to vector<8x1xf32>
    %14 = arith.mulf %12, %13 : vector<8x1xf32>
    %c0_12 = arith.constant 0 : index
    %c0_13 = arith.constant 0 : index
    %15 = vector.load %arg9[%c0_12, %c0_13] : memref<8x1xf32, #tpu.memory_space<vmem>>, vector<8x1xf32>
    tpu.vector_store %arg9[%c0_12, %c0_13], %14 {strides = array<i32>} : memref<8x1xf32, #tpu.memory_space<vmem>>, vector<8x1xf32>,
    %c0_14 = arith.constant 0 : index
    %c0_15 = arith.constant 0 : index
    %16 = vector.load %arg5[%c0_14, %c0_15] : memref<256x128xf32, #tpu.memory_space<vmem>>, vector<256x128xf32>
    %cst_16 = arith.constant dense<0.000000e+00> : vector<8x256xf32>
    %17 = tpu.matmul %0, %16, %cst_16 {dimension_numbers = #tpu.dot_dimension_numbers<[1], [1], [0], [0], [0, 0, 1, 0], [], []>} : vector<8x128xf32>, vector<256x128xf32>, vector<8x256xf32> -> vector<8x256xf32>
    %cst_17 = arith.constant 14.2857141 : f32
    %18 = vector.broadcast %cst_17 : f32 to vector<8x256xf32>
    %19 = arith.mulf %17, %18 : vector<8x256xf32>
    %c0_18 = arith.constant 0 : index
    %c0_19 = arith.constant 0 : index
    %20 = vector.load %arg8[%c0_18, %c0_19] : memref<8x256xf32, #tpu.memory_space<vmem>>, vector<8x256xf32>
    tpu.vector_store %arg8[%c0_18, %c0_19], %19 {strides = array<i32>} : memref<8x256xf32, #tpu.memory_space<vmem>>, vector<8x256xf32>,
    %c0_20 = arith.constant 0 : index
    %c0_21 = arith.constant 0 : index
    %21 = vector.load %arg6[%c0_20, %c0_21] : memref<256x128xf32, #tpu.memory_space<vmem>>, vector<256x128xf32>
    %cst_22 = arith.constant dense<0.000000e+00> : vector<8x256xf32>
    %22 = tpu.matmul %2, %21, %cst_22 {dimension_numbers = #tpu.dot_dimension_numbers<[1], [1], [0], [0], [0, 0, 1, 0], [], []>} : vector<8x128xf32>, vector<256x128xf32>, vector<8x256xf32> -> vector<8x256xf32>
    %cst_23 = arith.constant 14.2857141 : f32
    %23 = vector.broadcast %cst_23 : f32 to vector<8x256xf32>
    %24 = arith.mulf %22, %23 : vector<8x256xf32>
    %c0_24 = arith.constant 0 : index
    %c0_25 = arith.constant 0 : index
    %25 = vector.load %arg10[%c0_24, %c0_25] : memref<8x256xf32, #tpu.memory_space<vmem>>, vector<8x256xf32>
    tpu.vector_store %arg10[%c0_24, %c0_25], %24 {strides = array<i32>} : memref<8x256xf32, #tpu.memory_space<vmem>>, vector<8x256xf32>,
    %c0_26 = arith.constant 0 : index
    %c0_27 = arith.constant 0 : index
    %26 = vector.load %arg5[%c0_26, %c0_27] : memref<256x128xf32, #tpu.memory_space<vmem>>, vector<256x128xf32>
    %c0_28 = arith.constant 0 : index
    %c0_29 = arith.constant 0 : index
    %27 = vector.load %arg11[%c0_28, %c0_29] : memref<256x128xf32, #tpu.memory_space<vmem>>, vector<256x128xf32>
    tpu.vector_store %arg11[%c0_28, %c0_29], %26 {strides = array<i32>} : memref<256x128xf32, #tpu.memory_space<vmem>>, vector<256x128xf32>,
    %c0_30 = arith.constant 0 : index
    %c0_31 = arith.constant 0 : index
    %28 = vector.load %arg6[%c0_30, %c0_31] : memref<256x128xf32, #tpu.memory_space<vmem>>, vector<256x128xf32>
    %c0_32 = arith.constant 0 : index
    %c0_33 = arith.constant 0 : index
    %29 = vector.load %arg12[%c0_32, %c0_33] : memref<256x128xf32, #tpu.memory_space<vmem>>, vector<256x128xf32>
    tpu.vector_store %arg12[%c0_32, %c0_33], %28 {strides = array<i32>} : memref<256x128xf32, #tpu.memory_space<vmem>>, vector<256x128xf32>,
    %c0_34 = arith.constant 0 : index
    %30 = memref.load %arg0[%c0_34] : memref<2xi32, #tpu.memory_space<smem>>
    %31 = tpu.assume_multiple %30, 8 : i32
    %c1 = arith.constant 1 : index
    %32 = memref.load %arg0[%c1] : memref<2xi32, #tpu.memory_space<smem>>
    %33 = tpu.assume_multiple %32, 8 : i32
    %34 = arith.index_cast %31 : i32 to index
    %c0_35 = arith.constant 0 : index
    %35 = vector.load %arg11[%34, %c0_35] : memref<256x128xf32, #tpu.memory_space<vmem>>, vector<8x128xf32>
    tpu.vector_store %arg11[%34, %c0_35], %1 {strides = array<i32>} : memref<256x128xf32, #tpu.memory_space<vmem>>, vector<8x128xf32>,
    %36 = arith.index_cast %33 : i32 to index
    %c0_36 = arith.constant 0 : index
    %37 = vector.load %arg12[%36, %c0_36] : memref<256x128xf32, #tpu.memory_space<vmem>>, vector<8x128xf32>
    tpu.vector_store %arg12[%36, %c0_36], %3 {strides = array<i32>} : memref<256x128xf32, #tpu.memory_space<vmem>>, vector<8x128xf32>,
    return
  }
}

module attributes {stable_mosaic.version = 11 : i64} {
  func.func @_encoder4_kernel(%arg0: memref<8x768xf32, #tpu.memory_space<vmem>>, %arg1: memref<8x768xf32, #tpu.memory_space<vmem>>, %arg2: memref<4x768x32xf32, #tpu.memory_space<vmem>>, %arg3: memref<4x1x32xf32, #tpu.memory_space<vmem>>, %arg4: memref<4x32x32xf32, #tpu.memory_space<vmem>>, %arg5: memref<4x1x32xf32, #tpu.memory_space<vmem>>, %arg6: memref<4x32x128xf32, #tpu.memory_space<vmem>>, %arg7: memref<4x1x128xf32, #tpu.memory_space<vmem>>, %arg8: memref<4x8x128xf32, #tpu.memory_space<vmem>>) attributes {dimension_semantics = [], scalar_prefetch = 0 : i64, scratch_operands = 0 : i64, tpu.core_type = #tpu.core_type<tc>} {
    %c0 = arith.constant 0 : index
    %c0_0 = arith.constant 0 : index
    %0 = vector.load %arg0[%c0, %c0_0] : memref<8x768xf32, #tpu.memory_space<vmem>>, vector<8x768xf32>
    %c0_1 = arith.constant 0 : index
    %c0_2 = arith.constant 0 : index
    %1 = vector.load %arg1[%c0_1, %c0_2] : memref<8x768xf32, #tpu.memory_space<vmem>>, vector<8x768xf32>
    %c0_3 = arith.constant 0 : index
    %c0_4 = arith.constant 0 : index
    %c0_5 = arith.constant 0 : index
    %2 = vector.load %arg2[%c0_3, %c0_4, %c0_5] : memref<4x768x32xf32, #tpu.memory_space<vmem>>, vector<1x768x32xf32>
    %3 = vector.shape_cast %2 : vector<1x768x32xf32> to vector<768x32xf32>
    %cst = arith.constant dense<0.000000e+00> : vector<8x32xf32>
    %4 = tpu.matmul %0, %3, %cst {dimension_numbers = #tpu.dot_dimension_numbers<[1], [0], [0], [1], [0, 0, 1, 1], [], []>} : vector<8x768xf32>, vector<768x32xf32>, vector<8x32xf32> -> vector<8x32xf32>
    %c0_6 = arith.constant 0 : index
    %c0_7 = arith.constant 0 : index
    %c0_8 = arith.constant 0 : index
    %5 = vector.load %arg3[%c0_6, %c0_7, %c0_8] : memref<4x1x32xf32, #tpu.memory_space<vmem>>, vector<1x1x32xf32>
    %6 = vector.shape_cast %5 : vector<1x1x32xf32> to vector<1x32xf32>
    %7 = vector.broadcast %6 : vector<1x32xf32> to vector<8x32xf32>
    %8 = arith.addf %4, %7 : vector<8x32xf32>
    %cst_9 = arith.constant 0.000000e+00 : f32
    %9 = vector.broadcast %cst_9 : f32 to vector<8x32xf32>
    %10 = arith.maximumf %8, %9 : vector<8x32xf32>
    %c0_10 = arith.constant 0 : index
    %c0_11 = arith.constant 0 : index
    %c0_12 = arith.constant 0 : index
    %11 = vector.load %arg4[%c0_10, %c0_11, %c0_12] : memref<4x32x32xf32, #tpu.memory_space<vmem>>, vector<1x32x32xf32>
    %12 = vector.shape_cast %11 : vector<1x32x32xf32> to vector<32x32xf32>
    %cst_13 = arith.constant dense<0.000000e+00> : vector<8x32xf32>
    %13 = tpu.matmul %10, %12, %cst_13 {dimension_numbers = #tpu.dot_dimension_numbers<[1], [0], [0], [1], [0, 0, 1, 1], [], []>} : vector<8x32xf32>, vector<32x32xf32>, vector<8x32xf32> -> vector<8x32xf32>
    %c0_14 = arith.constant 0 : index
    %c0_15 = arith.constant 0 : index
    %c0_16 = arith.constant 0 : index
    %14 = vector.load %arg5[%c0_14, %c0_15, %c0_16] : memref<4x1x32xf32, #tpu.memory_space<vmem>>, vector<1x1x32xf32>
    %15 = vector.shape_cast %14 : vector<1x1x32xf32> to vector<1x32xf32>
    %16 = vector.broadcast %15 : vector<1x32xf32> to vector<8x32xf32>
    %17 = arith.addf %13, %16 : vector<8x32xf32>
    %cst_17 = arith.constant 0.000000e+00 : f32
    %18 = vector.broadcast %cst_17 : f32 to vector<8x32xf32>
    %19 = arith.maximumf %17, %18 : vector<8x32xf32>
    %c0_18 = arith.constant 0 : index
    %c0_19 = arith.constant 0 : index
    %c0_20 = arith.constant 0 : index
    %20 = vector.load %arg6[%c0_18, %c0_19, %c0_20] : memref<4x32x128xf32, #tpu.memory_space<vmem>>, vector<1x32x128xf32>
    %21 = vector.shape_cast %20 : vector<1x32x128xf32> to vector<32x128xf32>
    %cst_21 = arith.constant dense<0.000000e+00> : vector<8x128xf32>
    %22 = tpu.matmul %19, %21, %cst_21 {dimension_numbers = #tpu.dot_dimension_numbers<[1], [0], [0], [1], [0, 0, 1, 1], [], []>} : vector<8x32xf32>, vector<32x128xf32>, vector<8x128xf32> -> vector<8x128xf32>
    %c0_22 = arith.constant 0 : index
    %c0_23 = arith.constant 0 : index
    %c0_24 = arith.constant 0 : index
    %23 = vector.load %arg7[%c0_22, %c0_23, %c0_24] : memref<4x1x128xf32, #tpu.memory_space<vmem>>, vector<1x1x128xf32>
    %24 = vector.shape_cast %23 : vector<1x1x128xf32> to vector<1x128xf32>
    %25 = vector.broadcast %24 : vector<1x128xf32> to vector<8x128xf32>
    %26 = arith.addf %22, %25 : vector<8x128xf32>
    %27 = arith.mulf %26, %26 : vector<8x128xf32>
    %cst_25 = arith.constant dense<0.000000e+00> : vector<8xf32>
    %28 = vector.multi_reduction <add>, %27, %cst_25 [1] : vector<8x128xf32> to vector<8xf32>
    %29 = vector.shape_cast %28 : vector<8xf32> to vector<8x1xf32>
    %30 = math.sqrt %29 : vector<8x1xf32>
    %cst_26 = arith.constant 9.99999996E-13 : f32
    %31 = vector.broadcast %cst_26 : f32 to vector<8x1xf32>
    %32 = arith.maximumf %30, %31 : vector<8x1xf32>
    %33 = vector.broadcast %32 : vector<8x1xf32> to vector<8x128xf32>
    %34 = arith.divf %26, %33 : vector<8x128xf32>
    %c0_27 = arith.constant 0 : index
    %c0_28 = arith.constant 0 : index
    %c0_29 = arith.constant 0 : index
    %35 = vector.load %arg8[%c0_27, %c0_28, %c0_29] : memref<4x8x128xf32, #tpu.memory_space<vmem>>, vector<1x8x128xf32>
    %36 = vector.shape_cast %35 : vector<1x8x128xf32> to vector<8x128xf32>
    %37 = vector.shape_cast %34 : vector<8x128xf32> to vector<1x8x128xf32>
    tpu.vector_store %arg8[%c0_27, %c0_28, %c0_29], %37 {strides = array<i32>} : memref<4x8x128xf32, #tpu.memory_space<vmem>>, vector<1x8x128xf32>,
    %c1 = arith.constant 1 : index
    %c0_30 = arith.constant 0 : index
    %c0_31 = arith.constant 0 : index
    %38 = vector.load %arg2[%c1, %c0_30, %c0_31] : memref<4x768x32xf32, #tpu.memory_space<vmem>>, vector<1x768x32xf32>
    %39 = vector.shape_cast %38 : vector<1x768x32xf32> to vector<768x32xf32>
    %cst_32 = arith.constant dense<0.000000e+00> : vector<8x32xf32>
    %40 = tpu.matmul %0, %39, %cst_32 {dimension_numbers = #tpu.dot_dimension_numbers<[1], [0], [0], [1], [0, 0, 1, 1], [], []>} : vector<8x768xf32>, vector<768x32xf32>, vector<8x32xf32> -> vector<8x32xf32>
    %c1_33 = arith.constant 1 : index
    %c0_34 = arith.constant 0 : index
    %c0_35 = arith.constant 0 : index
    %41 = vector.load %arg3[%c1_33, %c0_34, %c0_35] : memref<4x1x32xf32, #tpu.memory_space<vmem>>, vector<1x1x32xf32>
    %42 = vector.shape_cast %41 : vector<1x1x32xf32> to vector<1x32xf32>
    %43 = vector.broadcast %42 : vector<1x32xf32> to vector<8x32xf32>
    %44 = arith.addf %40, %43 : vector<8x32xf32>
    %cst_36 = arith.constant 0.000000e+00 : f32
    %45 = vector.broadcast %cst_36 : f32 to vector<8x32xf32>
    %46 = arith.maximumf %44, %45 : vector<8x32xf32>
    %c1_37 = arith.constant 1 : index
    %c0_38 = arith.constant 0 : index
    %c0_39 = arith.constant 0 : index
    %47 = vector.load %arg4[%c1_37, %c0_38, %c0_39] : memref<4x32x32xf32, #tpu.memory_space<vmem>>, vector<1x32x32xf32>
    %48 = vector.shape_cast %47 : vector<1x32x32xf32> to vector<32x32xf32>
    %cst_40 = arith.constant dense<0.000000e+00> : vector<8x32xf32>
    %49 = tpu.matmul %46, %48, %cst_40 {dimension_numbers = #tpu.dot_dimension_numbers<[1], [0], [0], [1], [0, 0, 1, 1], [], []>} : vector<8x32xf32>, vector<32x32xf32>, vector<8x32xf32> -> vector<8x32xf32>
    %c1_41 = arith.constant 1 : index
    %c0_42 = arith.constant 0 : index
    %c0_43 = arith.constant 0 : index
    %50 = vector.load %arg5[%c1_41, %c0_42, %c0_43] : memref<4x1x32xf32, #tpu.memory_space<vmem>>, vector<1x1x32xf32>
    %51 = vector.shape_cast %50 : vector<1x1x32xf32> to vector<1x32xf32>
    %52 = vector.broadcast %51 : vector<1x32xf32> to vector<8x32xf32>
    %53 = arith.addf %49, %52 : vector<8x32xf32>
    %cst_44 = arith.constant 0.000000e+00 : f32
    %54 = vector.broadcast %cst_44 : f32 to vector<8x32xf32>
    %55 = arith.maximumf %53, %54 : vector<8x32xf32>
    %c1_45 = arith.constant 1 : index
    %c0_46 = arith.constant 0 : index
    %c0_47 = arith.constant 0 : index
    %56 = vector.load %arg6[%c1_45, %c0_46, %c0_47] : memref<4x32x128xf32, #tpu.memory_space<vmem>>, vector<1x32x128xf32>
    %57 = vector.shape_cast %56 : vector<1x32x128xf32> to vector<32x128xf32>
    %cst_48 = arith.constant dense<0.000000e+00> : vector<8x128xf32>
    %58 = tpu.matmul %55, %57, %cst_48 {dimension_numbers = #tpu.dot_dimension_numbers<[1], [0], [0], [1], [0, 0, 1, 1], [], []>} : vector<8x32xf32>, vector<32x128xf32>, vector<8x128xf32> -> vector<8x128xf32>
    %c1_49 = arith.constant 1 : index
    %c0_50 = arith.constant 0 : index
    %c0_51 = arith.constant 0 : index
    %59 = vector.load %arg7[%c1_49, %c0_50, %c0_51] : memref<4x1x128xf32, #tpu.memory_space<vmem>>, vector<1x1x128xf32>
    %60 = vector.shape_cast %59 : vector<1x1x128xf32> to vector<1x128xf32>
    %61 = vector.broadcast %60 : vector<1x128xf32> to vector<8x128xf32>
    %62 = arith.addf %58, %61 : vector<8x128xf32>
    %63 = arith.mulf %62, %62 : vector<8x128xf32>
    %cst_52 = arith.constant dense<0.000000e+00> : vector<8xf32>
    %64 = vector.multi_reduction <add>, %63, %cst_52 [1] : vector<8x128xf32> to vector<8xf32>
    %65 = vector.shape_cast %64 : vector<8xf32> to vector<8x1xf32>
    %66 = math.sqrt %65 : vector<8x1xf32>
    %cst_53 = arith.constant 9.99999996E-13 : f32
    %67 = vector.broadcast %cst_53 : f32 to vector<8x1xf32>
    %68 = arith.maximumf %66, %67 : vector<8x1xf32>
    %69 = vector.broadcast %68 : vector<8x1xf32> to vector<8x128xf32>
    %70 = arith.divf %62, %69 : vector<8x128xf32>
    %c1_54 = arith.constant 1 : index
    %c0_55 = arith.constant 0 : index
    %c0_56 = arith.constant 0 : index
    %71 = vector.load %arg8[%c1_54, %c0_55, %c0_56] : memref<4x8x128xf32, #tpu.memory_space<vmem>>, vector<1x8x128xf32>
    %72 = vector.shape_cast %71 : vector<1x8x128xf32> to vector<8x128xf32>
    %73 = vector.shape_cast %70 : vector<8x128xf32> to vector<1x8x128xf32>
    tpu.vector_store %arg8[%c1_54, %c0_55, %c0_56], %73 {strides = array<i32>} : memref<4x8x128xf32, #tpu.memory_space<vmem>>, vector<1x8x128xf32>,
    %c2 = arith.constant 2 : index
    %c0_57 = arith.constant 0 : index
    %c0_58 = arith.constant 0 : index
    %74 = vector.load %arg2[%c2, %c0_57, %c0_58] : memref<4x768x32xf32, #tpu.memory_space<vmem>>, vector<1x768x32xf32>
    %75 = vector.shape_cast %74 : vector<1x768x32xf32> to vector<768x32xf32>
    %cst_59 = arith.constant dense<0.000000e+00> : vector<8x32xf32>
    %76 = tpu.matmul %1, %75, %cst_59 {dimension_numbers = #tpu.dot_dimension_numbers<[1], [0], [0], [1], [0, 0, 1, 1], [], []>} : vector<8x768xf32>, vector<768x32xf32>, vector<8x32xf32> -> vector<8x32xf32>
    %c2_60 = arith.constant 2 : index
    %c0_61 = arith.constant 0 : index
    %c0_62 = arith.constant 0 : index
    %77 = vector.load %arg3[%c2_60, %c0_61, %c0_62] : memref<4x1x32xf32, #tpu.memory_space<vmem>>, vector<1x1x32xf32>
    %78 = vector.shape_cast %77 : vector<1x1x32xf32> to vector<1x32xf32>
    %79 = vector.broadcast %78 : vector<1x32xf32> to vector<8x32xf32>
    %80 = arith.addf %76, %79 : vector<8x32xf32>
    %cst_63 = arith.constant 0.000000e+00 : f32
    %81 = vector.broadcast %cst_63 : f32 to vector<8x32xf32>
    %82 = arith.maximumf %80, %81 : vector<8x32xf32>
    %c2_64 = arith.constant 2 : index
    %c0_65 = arith.constant 0 : index
    %c0_66 = arith.constant 0 : index
    %83 = vector.load %arg4[%c2_64, %c0_65, %c0_66] : memref<4x32x32xf32, #tpu.memory_space<vmem>>, vector<1x32x32xf32>
    %84 = vector.shape_cast %83 : vector<1x32x32xf32> to vector<32x32xf32>
    %cst_67 = arith.constant dense<0.000000e+00> : vector<8x32xf32>
    %85 = tpu.matmul %82, %84, %cst_67 {dimension_numbers = #tpu.dot_dimension_numbers<[1], [0], [0], [1], [0, 0, 1, 1], [], []>} : vector<8x32xf32>, vector<32x32xf32>, vector<8x32xf32> -> vector<8x32xf32>
    %c2_68 = arith.constant 2 : index
    %c0_69 = arith.constant 0 : index
    %c0_70 = arith.constant 0 : index
    %86 = vector.load %arg5[%c2_68, %c0_69, %c0_70] : memref<4x1x32xf32, #tpu.memory_space<vmem>>, vector<1x1x32xf32>
    %87 = vector.shape_cast %86 : vector<1x1x32xf32> to vector<1x32xf32>
    %88 = vector.broadcast %87 : vector<1x32xf32> to vector<8x32xf32>
    %89 = arith.addf %85, %88 : vector<8x32xf32>
    %cst_71 = arith.constant 0.000000e+00 : f32
    %90 = vector.broadcast %cst_71 : f32 to vector<8x32xf32>
    %91 = arith.maximumf %89, %90 : vector<8x32xf32>
    %c2_72 = arith.constant 2 : index
    %c0_73 = arith.constant 0 : index
    %c0_74 = arith.constant 0 : index
    %92 = vector.load %arg6[%c2_72, %c0_73, %c0_74] : memref<4x32x128xf32, #tpu.memory_space<vmem>>, vector<1x32x128xf32>
    %93 = vector.shape_cast %92 : vector<1x32x128xf32> to vector<32x128xf32>
    %cst_75 = arith.constant dense<0.000000e+00> : vector<8x128xf32>
    %94 = tpu.matmul %91, %93, %cst_75 {dimension_numbers = #tpu.dot_dimension_numbers<[1], [0], [0], [1], [0, 0, 1, 1], [], []>} : vector<8x32xf32>, vector<32x128xf32>, vector<8x128xf32> -> vector<8x128xf32>
    %c2_76 = arith.constant 2 : index
    %c0_77 = arith.constant 0 : index
    %c0_78 = arith.constant 0 : index
    %95 = vector.load %arg7[%c2_76, %c0_77, %c0_78] : memref<4x1x128xf32, #tpu.memory_space<vmem>>, vector<1x1x128xf32>
    %96 = vector.shape_cast %95 : vector<1x1x128xf32> to vector<1x128xf32>
    %97 = vector.broadcast %96 : vector<1x128xf32> to vector<8x128xf32>
    %98 = arith.addf %94, %97 : vector<8x128xf32>
    %99 = arith.mulf %98, %98 : vector<8x128xf32>
    %cst_79 = arith.constant dense<0.000000e+00> : vector<8xf32>
    %100 = vector.multi_reduction <add>, %99, %cst_79 [1] : vector<8x128xf32> to vector<8xf32>
    %101 = vector.shape_cast %100 : vector<8xf32> to vector<8x1xf32>
    %102 = math.sqrt %101 : vector<8x1xf32>
    %cst_80 = arith.constant 9.99999996E-13 : f32
    %103 = vector.broadcast %cst_80 : f32 to vector<8x1xf32>
    %104 = arith.maximumf %102, %103 : vector<8x1xf32>
    %105 = vector.broadcast %104 : vector<8x1xf32> to vector<8x128xf32>
    %106 = arith.divf %98, %105 : vector<8x128xf32>
    %c2_81 = arith.constant 2 : index
    %c0_82 = arith.constant 0 : index
    %c0_83 = arith.constant 0 : index
    %107 = vector.load %arg8[%c2_81, %c0_82, %c0_83] : memref<4x8x128xf32, #tpu.memory_space<vmem>>, vector<1x8x128xf32>
    %108 = vector.shape_cast %107 : vector<1x8x128xf32> to vector<8x128xf32>
    %109 = vector.shape_cast %106 : vector<8x128xf32> to vector<1x8x128xf32>
    tpu.vector_store %arg8[%c2_81, %c0_82, %c0_83], %109 {strides = array<i32>} : memref<4x8x128xf32, #tpu.memory_space<vmem>>, vector<1x8x128xf32>,
    %c3 = arith.constant 3 : index
    %c0_84 = arith.constant 0 : index
    %c0_85 = arith.constant 0 : index
    %110 = vector.load %arg2[%c3, %c0_84, %c0_85] : memref<4x768x32xf32, #tpu.memory_space<vmem>>, vector<1x768x32xf32>
    %111 = vector.shape_cast %110 : vector<1x768x32xf32> to vector<768x32xf32>
    %cst_86 = arith.constant dense<0.000000e+00> : vector<8x32xf32>
    %112 = tpu.matmul %1, %111, %cst_86 {dimension_numbers = #tpu.dot_dimension_numbers<[1], [0], [0], [1], [0, 0, 1, 1], [], []>} : vector<8x768xf32>, vector<768x32xf32>, vector<8x32xf32> -> vector<8x32xf32>
    %c3_87 = arith.constant 3 : index
    %c0_88 = arith.constant 0 : index
    %c0_89 = arith.constant 0 : index
    %113 = vector.load %arg3[%c3_87, %c0_88, %c0_89] : memref<4x1x32xf32, #tpu.memory_space<vmem>>, vector<1x1x32xf32>
    %114 = vector.shape_cast %113 : vector<1x1x32xf32> to vector<1x32xf32>
    %115 = vector.broadcast %114 : vector<1x32xf32> to vector<8x32xf32>
    %116 = arith.addf %112, %115 : vector<8x32xf32>
    %cst_90 = arith.constant 0.000000e+00 : f32
    %117 = vector.broadcast %cst_90 : f32 to vector<8x32xf32>
    %118 = arith.maximumf %116, %117 : vector<8x32xf32>
    %c3_91 = arith.constant 3 : index
    %c0_92 = arith.constant 0 : index
    %c0_93 = arith.constant 0 : index
    %119 = vector.load %arg4[%c3_91, %c0_92, %c0_93] : memref<4x32x32xf32, #tpu.memory_space<vmem>>, vector<1x32x32xf32>
    %120 = vector.shape_cast %119 : vector<1x32x32xf32> to vector<32x32xf32>
    %cst_94 = arith.constant dense<0.000000e+00> : vector<8x32xf32>
    %121 = tpu.matmul %118, %120, %cst_94 {dimension_numbers = #tpu.dot_dimension_numbers<[1], [0], [0], [1], [0, 0, 1, 1], [], []>} : vector<8x32xf32>, vector<32x32xf32>, vector<8x32xf32> -> vector<8x32xf32>
    %c3_95 = arith.constant 3 : index
    %c0_96 = arith.constant 0 : index
    %c0_97 = arith.constant 0 : index
    %122 = vector.load %arg5[%c3_95, %c0_96, %c0_97] : memref<4x1x32xf32, #tpu.memory_space<vmem>>, vector<1x1x32xf32>
    %123 = vector.shape_cast %122 : vector<1x1x32xf32> to vector<1x32xf32>
    %124 = vector.broadcast %123 : vector<1x32xf32> to vector<8x32xf32>
    %125 = arith.addf %121, %124 : vector<8x32xf32>
    %cst_98 = arith.constant 0.000000e+00 : f32
    %126 = vector.broadcast %cst_98 : f32 to vector<8x32xf32>
    %127 = arith.maximumf %125, %126 : vector<8x32xf32>
    %c3_99 = arith.constant 3 : index
    %c0_100 = arith.constant 0 : index
    %c0_101 = arith.constant 0 : index
    %128 = vector.load %arg6[%c3_99, %c0_100, %c0_101] : memref<4x32x128xf32, #tpu.memory_space<vmem>>, vector<1x32x128xf32>
    %129 = vector.shape_cast %128 : vector<1x32x128xf32> to vector<32x128xf32>
    %cst_102 = arith.constant dense<0.000000e+00> : vector<8x128xf32>
    %130 = tpu.matmul %127, %129, %cst_102 {dimension_numbers = #tpu.dot_dimension_numbers<[1], [0], [0], [1], [0, 0, 1, 1], [], []>} : vector<8x32xf32>, vector<32x128xf32>, vector<8x128xf32> -> vector<8x128xf32>
    %c3_103 = arith.constant 3 : index
    %c0_104 = arith.constant 0 : index
    %c0_105 = arith.constant 0 : index
    %131 = vector.load %arg7[%c3_103, %c0_104, %c0_105] : memref<4x1x128xf32, #tpu.memory_space<vmem>>, vector<1x1x128xf32>
    %132 = vector.shape_cast %131 : vector<1x1x128xf32> to vector<1x128xf32>
    %133 = vector.broadcast %132 : vector<1x128xf32> to vector<8x128xf32>
    %134 = arith.addf %130, %133 : vector<8x128xf32>
    %135 = arith.mulf %134, %134 : vector<8x128xf32>
    %cst_106 = arith.constant dense<0.000000e+00> : vector<8xf32>
    %136 = vector.multi_reduction <add>, %135, %cst_106 [1] : vector<8x128xf32> to vector<8xf32>
    %137 = vector.shape_cast %136 : vector<8xf32> to vector<8x1xf32>
    %138 = math.sqrt %137 : vector<8x1xf32>
    %cst_107 = arith.constant 9.99999996E-13 : f32
    %139 = vector.broadcast %cst_107 : f32 to vector<8x1xf32>
    %140 = arith.maximumf %138, %139 : vector<8x1xf32>
    %141 = vector.broadcast %140 : vector<8x1xf32> to vector<8x128xf32>
    %142 = arith.divf %134, %141 : vector<8x128xf32>
    %c3_108 = arith.constant 3 : index
    %c0_109 = arith.constant 0 : index
    %c0_110 = arith.constant 0 : index
    %143 = vector.load %arg8[%c3_108, %c0_109, %c0_110] : memref<4x8x128xf32, #tpu.memory_space<vmem>>, vector<1x8x128xf32>
    %144 = vector.shape_cast %143 : vector<1x8x128xf32> to vector<8x128xf32>
    %145 = vector.shape_cast %142 : vector<8x128xf32> to vector<1x8x128xf32>
    tpu.vector_store %arg8[%c3_108, %c0_109, %c0_110], %145 {strides = array<i32>} : memref<4x8x128xf32, #tpu.memory_space<vmem>>, vector<1x8x128xf32>,
    return
  }
}

</mosaic_0001>

<llo_original>
// kernel: fwd.3
$region0: #{fwd.3}
  #allocation0 [shape = 'u32[]', space=smem, size = 0x4, offset = 0x4, fixed_abs, tag = 'smem constant byte address 0x4 - core index']
  #allocation1 [shape = 'u32[144,128]{1,0:T(1,128)}', space=vmem, size = 0x12000, scoped, tag = 'internal scratch']
  %s0 = inlined_call_operand.vmem [shape: s32[2], index: 0, kind: input, shape index: {}]
  %s1 = inlined_call_operand.vmem [shape: f32[8,128], index: 1, kind: input, shape index: {}]
  %s2 = inlined_call_operand.vmem [shape: f32[8,128], index: 2, kind: input, shape index: {}]
  %s3 = inlined_call_operand.vmem [shape: f32[8,128], index: 3, kind: input, shape index: {}]
  %s4 = inlined_call_operand.vmem [shape: f32[8,128], index: 4, kind: input, shape index: {}]
  %s5 = inlined_call_operand.vmem [shape: f32[256,128], index: 5, kind: input, shape index: {}, may-alias: {5,11}]
  %s6 = inlined_call_operand.vmem [shape: f32[256,128], index: 6, kind: input, shape index: {}, may-alias: {6,12}]
  %s7 = inlined_call_operand.vmem [shape: f32[8,1], index: 7, kind: output, shape index: {0}]
  %s8 = inlined_call_operand.vmem [shape: f32[8,256], index: 8, kind: output, shape index: {1}]
  %s9 = inlined_call_operand.vmem [shape: f32[8,1], index: 9, kind: output, shape index: {2}]
  %s10 = inlined_call_operand.vmem [shape: f32[8,256], index: 10, kind: output, shape index: {3}]
  %s11 = inlined_call_operand.vmem [shape: f32[256,128], index: 11, kind: output, shape index: {4}, may-alias: {5,11}]
  %s12 = inlined_call_operand.vmem [shape: f32[256,128], index: 12, kind: output, shape index: {5}, may-alias: {6,12}]
  %13 = xla_tuple %s7, %s8, %s9, %s10, %s11, %s12
  %s14 = sld [smem:[#allocation0]]
  $region82: #{fwd.3} parent=0
    _
  %s16 = ssub.s32 1, %s14
  %s17 = scalar_select 0, %s16, %s14
  $region1: #{fwd.3} parent=0
    #allocation2 [shape = 'u8[512]{0}', space=smem, size = 0x200, scoped, tag = 'input window, operand 0, single buffered']
    #allocation3 [shape = 's32[1]{0}', space=sflag, size = 0x4, scoped, tag = 'scoped memory for fwd.3']
    %18 = vsyncpa [#allocation3], 0
    // Predicated region
    $region2: #{fwd.3} parent=1 // pred_check
      _
    $region3: #{fwd.3} parent=1 // pred_check_branch
      %20 = sbr.rel (0) target = $region5
    $region4: #{fwd.3} parent=1 // pred_region
      %s22 = ssub.s32 16, 16
      %23 = vsyncadd [#allocation3], %s22
      %s25 = sshll.u32 %s0, 4
      %s26 = int_to_ptr.vmem [resolvable:$true] %s25
      %28 = dma.vmem_to_smem %s26, 16, [#allocation2], [#allocation3]
    $region5: #{fwd.3} parent=1 // pred_fallthru
      _
    // Predicated region
    $region6: #{fwd.3} parent=1 // pred_check
      _
    $region7: #{fwd.3} parent=1 // pred_check_branch
      %30 = sbr.rel (0) target = $region9
    $region8: #{fwd.3} parent=1 // pred_region
      _
    $region9: #{fwd.3} parent=1 // pred_fallthru
      _
    // Predicated region
    $region10: #{fwd.3} parent=1 // pred_check
      _
    $region11: #{fwd.3} parent=1 // pred_check_branch
      %32 = sbr.rel (0) target = $region13
    $region12: #{fwd.3} parent=1 // pred_region
      _
    $region13: #{fwd.3} parent=1 // pred_fallthru
      _
    // Predicated region
    $region14: #{fwd.3} parent=1 // pred_check
      _
    $region15: #{fwd.3} parent=1 // pred_check_branch
      %34 = sbr.rel (0) target = $region17
    $region16: #{fwd.3} parent=1 // pred_region
      _
    $region17: #{fwd.3} parent=1 // pred_fallthru
      _
    // Predicated region
    $region18: #{fwd.3} parent=1 // pred_check
      _
    $region19: #{fwd.3} parent=1 // pred_check_branch
      %36 = sbr.rel (0) target = $region21
    $region20: #{fwd.3} parent=1 // pred_region
      _
    $region21: #{fwd.3} parent=1 // pred_fallthru
      _
    // Predicated region
    $region22: #{fwd.3} parent=1 // pred_check
      _
    $region23: #{fwd.3} parent=1 // pred_check_branch
      %38 = sbr.rel (0) target = $region25
    $region24: #{fwd.3} parent=1 // pred_region
      _
    $region25: #{fwd.3} parent=1 // pred_fallthru
      _
    // Predicated region
    $region26: #{fwd.3} parent=1 // pred_check
      _
    $region27: #{fwd.3} parent=1 // pred_check_branch
      %40 = sbr.rel (0) target = $region29
    $region28: #{fwd.3} parent=1 // pred_region
      _
    $region29: #{fwd.3} parent=1 // pred_fallthru
      _
    // Predicated region
    $region30: #{fwd.3} parent=1 // pred_check
      _
    $region31: #{fwd.3} parent=1 // pred_check_branch
      %42 = sbr.rel (0) target = $region33
    $region32: #{fwd.3} parent=1 // pred_region
      %43 = dma.done [#allocation3], 16
    $region33: #{fwd.3} parent=1 // pred_fallthru
      _
    %44 = sfence
    %v45 = vld [vmem:[%s1] sm:$0xff]
    %v46 = vld [vmem:[%s2] sm:$0xff]
    %v47 = vld [vmem:[%s3] sm:$0xff]
    %v48 = vld [vmem:[%s4] sm:$0xff]
    %v49 = vmul.f32 %v45, %v46
    %50 = vadd.xlane.f32.xlu0 %v49
    %v51 = vpop.xlane.xlu0 %50
    %v52 = vmul.f32 %v51, 14.285714
    %vm53 = vcmask 7168
    %54 = vst.msk [vmem:[%s7] sm:$0xff] %vm53, %v52
    %v55 = vmul.f32 %v47, %v48
    %56 = vadd.xlane.f32.xlu0 %v55
    %v57 = vpop.xlane.xlu0 %56
    %v58 = vmul.f32 %v57, 14.285714
    %59 = vst.msk [vmem:[%s9] sm:$0xff] %vm53, %v58
    %v60 = vld [vmem:[%s5] sm:$0xff]
    %v61 = vld [vmem:[%s5 + $0x8] sm:$0xff]
    %v62 = vld [vmem:[%s5 + $0x10] sm:$0xff]
    %v63 = vld [vmem:[%s5 + $0x18] sm:$0xff]
    %v64 = vld [vmem:[%s5 + $0x20] sm:$0xff]
    %v65 = vld [vmem:[%s5 + $0x28] sm:$0xff]
    %v66 = vld [vmem:[%s5 + $0x30] sm:$0xff]
    %v67 = vld [vmem:[%s5 + $0x38] sm:$0xff]
    %v68 = vld [vmem:[%s5 + $0x40] sm:$0xff]
    %v69 = vld [vmem:[%s5 + $0x48] sm:$0xff]
    %v70 = vld [vmem:[%s5 + $0x50] sm:$0xff]
    %v71 = vld [vmem:[%s5 + $0x58] sm:$0xff]
    %v72 = vld [vmem:[%s5 + $0x60] sm:$0xff]
    %v73 = vld [vmem:[%s5 + $0x68] sm:$0xff]
    %v74 = vld [vmem:[%s5 + $0x70] sm:$0xff]
    %v75 = vld [vmem:[%s5 + $0x78] sm:$0xff]
    %v76 = vld [vmem:[%s5 + $0x80] sm:$0xff]
    %v77 = vld [vmem:[%s5 + $0x88] sm:$0xff]
    %v78 = vld [vmem:[%s5 + $0x90] sm:$0xff]
    %v79 = vld [vmem:[%s5 + $0x98] sm:$0xff]
    %v80 = vld [vmem:[%s5 + $0xa0] sm:$0xff]
    %v81 = vld [vmem:[%s5 + $0xa8] sm:$0xff]
    %v82 = vld [vmem:[%s5 + $0xb0] sm:$0xff]
    %v83 = vld [vmem:[%s5 + $0xb8] sm:$0xff]
    %v84 = vld [vmem:[%s5 + $0xc0] sm:$0xff]
    %v85 = vld [vmem:[%s5 + $0xc8] sm:$0xff]
    %v86 = vld [vmem:[%s5 + $0xd0] sm:$0xff]
    %v87 = vld [vmem:[%s5 + $0xd8] sm:$0xff]
    %v88 = vld [vmem:[%s5 + $0xe0] sm:$0xff]
    %v89 = vld [vmem:[%s5 + $0xe8] sm:$0xff]
    %v90 = vld [vmem:[%s5 + $0xf0] sm:$0xff]
    %v91 = vld [vmem:[%s5 + $0xf8] sm:$0xff]
    %92 = vmatprep.subr.mxu0 0.0
    %93 = vmatpush1.xpose.msra.mxu0 %v75
    %94 = vmatprep.subr.mxu0 0.0
    %95 = vmatpush1.xpose.msra.mxu0 %v74
    %96 = vmatprep.subr.mxu0 0.0
    %97 = vmatpush1.xpose.msra.mxu0 %v73
    %98 = vmatprep.subr.mxu0 0.0
    %99 = vmatpush1.xpose.msra.mxu0 %v72
    %100 = vmatprep.subr.mxu0 0.0
    %101 = vmatpush1.xpose.msra.mxu0 %v71
    %102 = vmatprep.subr.mxu0 0.0
    %103 = vmatpush1.xpose.msra.mxu0 %v70
    %104 = vmatprep.subr.mxu0 0.0
    %105 = vmatpush1.xpose.msra.mxu0 %v69
    %106 = vmatprep.subr.mxu0 0.0
    %107 = vmatpush1.xpose.msra.mxu0 %v68
    %108 = vmatprep.subr.mxu0 0.0
    %109 = vmatpush1.xpose.msra.mxu0 %v67
    %110 = vmatprep.subr.mxu0 0.0
    %111 = vmatpush1.xpose.msra.mxu0 %v66
    %112 = vmatprep.subr.mxu0 0.0
    %113 = vmatpush1.xpose.msra.mxu0 %v65
    %114 = vmatprep.subr.mxu0 0.0
    %115 = vmatpush1.xpose.msra.mxu0 %v64
    %116 = vmatprep.subr.mxu0 0.0
    %117 = vmatpush1.xpose.msra.mxu0 %v63
    %118 = vmatprep.subr.mxu0 0.0
    %119 = vmatpush1.xpose.msra.mxu0 %v62
    %120 = vmatprep.subr.mxu0 0.0
    %121 = vmatpush1.xpose.msra.mxu0 %v61
    %122 = vmatprep.subr.mxu0 0.0
    %123 = vmatpush1.xpose.msra.mxu0 %v60
    %124 = vmatprep.subr.mxu0 0.0
    %125 = vmatpush2.xpose.msra.mxu0 %v91
    %126 = vmatprep.subr.mxu0 0.0
    %127 = vmatpush2.xpose.msra.mxu0 %v90
    %128 = vmatprep.subr.mxu0 0.0
    %129 = vmatpush2.xpose.msra.mxu0 %v89
    %130 = vmatprep.subr.mxu0 0.0
    %131 = vmatpush2.xpose.msra.mxu0 %v88
    %132 = vmatprep.subr.mxu0 0.0
    %133 = vmatpush2.xpose.msra.mxu0 %v87
    %134 = vmatprep.subr.mxu0 0.0
    %135 = vmatpush2.xpose.msra.mxu0 %v86
    %136 = vmatprep.subr.mxu0 0.0
    %137 = vmatpush2.xpose.msra.mxu0 %v85
    %138 = vmatprep.subr.mxu0 0.0
    %139 = vmatpush2.xpose.msra.mxu0 %v84
    %140 = vmatprep.subr.mxu0 0.0
    %141 = vmatpush2.xpose.msra.mxu0 %v83
    %142 = vmatprep.subr.mxu0 0.0
    %143 = vmatpush2.xpose.msra.mxu0 %v82
    %144 = vmatprep.subr.mxu0 0.0
    %145 = vmatpush2.xpose.msra.mxu0 %v81
    %146 = vmatprep.subr.mxu0 0.0
    %147 = vmatpush2.xpose.msra.mxu0 %v80
    %148 = vmatprep.subr.mxu0 0.0
    %149 = vmatpush2.xpose.msra.mxu0 %v79
    %150 = vmatprep.subr.mxu0 0.0
    %151 = vmatpush2.xpose.msra.mxu0 %v78
    %152 = vmatprep.subr.mxu0 0.0
    %153 = vmatpush2.xpose.msra.mxu0 %v77
    %154 = vmatprep.subr.mxu0 0.0
    %155 = vmatpush2.xpose.msra.mxu0 %v76
    %156 = vmatprep.mubr.f32.mxu0 0.0
    %157 = vmatmul.mubr.f32.gmra.mxu0 %v45
    %v158 = vpop.f32.mrf.mxu0
    %v159 = vadd.f32 0.0, %v158
    %v160 = vpop.f32.mrf.mxu0
    %v161 = vadd.f32 0.0, %v160
    %162 = vdwg.mxu0
    %v163 = vmul.f32 %v159, 14.285714
    %v164 = vmul.f32 %v161, 14.285714
    %165 = vst [vmem:[%s8] sm:$0xff] %v163
    %166 = vst [vmem:[%s8 + $0x8] sm:$0xff] %v164
    %v167 = vld [vmem:[%s6] sm:$0xff]
    %v168 = vld [vmem:[%s6 + $0x8] sm:$0xff]
    %v169 = vld [vmem:[%s6 + $0x10] sm:$0xff]
    %v170 = vld [vmem:[%s6 + $0x18] sm:$0xff]
    %v171 = vld [vmem:[%s6 + $0x20] sm:$0xff]
    %v172 = vld [vmem:[%s6 + $0x28] sm:$0xff]
    %v173 = vld [vmem:[%s6 + $0x30] sm:$0xff]
    %v174 = vld [vmem:[%s6 + $0x38] sm:$0xff]
    %v175 = vld [vmem:[%s6 + $0x40] sm:$0xff]
    %v176 = vld [vmem:[%s6 + $0x48] sm:$0xff]
    %v177 = vld [vmem:[%s6 + $0x50] sm:$0xff]
    %v178 = vld [vmem:[%s6 + $0x58] sm:$0xff]
    %v179 = vld [vmem:[%s6 + $0x60] sm:$0xff]
    %v180 = vld [vmem:[%s6 + $0x68] sm:$0xff]
    %v181 = vld [vmem:[%s6 + $0x70] sm:$0xff]
    %v182 = vld [vmem:[%s6 + $0x78] sm:$0xff]
    %v183 = vld [vmem:[%s6 + $0x80] sm:$0xff]
    %v184 = vld [vmem:[%s6 + $0x88] sm:$0xff]
    %v185 = vld [vmem:[%s6 + $0x90] sm:$0xff]
    %v186 = vld [vmem:[%s6 + $0x98] sm:$0xff]
    %v187 = vld [vmem:[%s6 + $0xa0] sm:$0xff]
    %v188 = vld [vmem:[%s6 + $0xa8] sm:$0xff]
    %v189 = vld [vmem:[%s6 + $0xb0] sm:$0xff]
    %v190 = vld [vmem:[%s6 + $0xb8] sm:$0xff]
    %v191 = vld [vmem:[%s6 + $0xc0] sm:$0xff]
    %v192 = vld [vmem:[%s6 + $0xc8] sm:$0xff]
    %v193 = vld [vmem:[%s6 + $0xd0] sm:$0xff]
    %v194 = vld [vmem:[%s6 + $0xd8] sm:$0xff]
    %v195 = vld [vmem:[%s6 + $0xe0] sm:$0xff]
    %v196 = vld [vmem:[%s6 + $0xe8] sm:$0xff]
    %v197 = vld [vmem:[%s6 + $0xf0] sm:$0xff]
    %v198 = vld [vmem:[%s6 + $0xf8] sm:$0xff]
    %199 = vmatprep.subr.mxu0 0.0
    %200 = vmatpush1.xpose.msra.mxu0 %v182
    %201 = vmatprep.subr.mxu0 0.0
    %202 = vmatpush1.xpose.msra.mxu0 %v181
    %203 = vmatprep.subr.mxu0 0.0
    %204 = vmatpush1.xpose.msra.mxu0 %v180
    %205 = vmatprep.subr.mxu0 0.0
    %206 = vmatpush1.xpose.msra.mxu0 %v179
    %207 = vmatprep.subr.mxu0 0.0
    %208 = vmatpush1.xpose.msra.mxu0 %v178
    %209 = vmatprep.subr.mxu0 0.0
    %210 = vmatpush1.xpose.msra.mxu0 %v177
    %211 = vmatprep.subr.mxu0 0.0
    %212 = vmatpush1.xpose.msra.mxu0 %v176
    %213 = vmatprep.subr.mxu0 0.0
    %214 = vmatpush1.xpose.msra.mxu0 %v175
    %215 = vmatprep.subr.mxu0 0.0
    %216 = vmatpush1.xpose.msra.mxu0 %v174
    %217 = vmatprep.subr.mxu0 0.0
    %218 = vmatpush1.xpose.msra.mxu0 %v173
    %219 = vmatprep.subr.mxu0 0.0
    %220 = vmatpush1.xpose.msra.mxu0 %v172
    %221 = vmatprep.subr.mxu0 0.0
    %222 = vmatpush1.xpose.msra.mxu0 %v171
    %223 = vmatprep.subr.mxu0 0.0
    %224 = vmatpush1.xpose.msra.mxu0 %v170
    %225 = vmatprep.subr.mxu0 0.0
    %226 = vmatpush1.xpose.msra.mxu0 %v169
    %227 = vmatprep.subr.mxu0 0.0
    %228 = vmatpush1.xpose.msra.mxu0 %v168
    %229 = vmatprep.subr.mxu0 0.0
    %230 = vmatpush1.xpose.msra.mxu0 %v167
    %231 = vmatprep.subr.mxu0 0.0
    %232 = vmatpush2.xpose.msra.mxu0 %v198
    %233 = vmatprep.subr.mxu0 0.0
    %234 = vmatpush2.xpose.msra.mxu0 %v197
    %235 = vmatprep.subr.mxu0 0.0
    %236 = vmatpush2.xpose.msra.mxu0 %v196
    %237 = vmatprep.subr.mxu0 0.0
    %238 = vmatpush2.xpose.msra.mxu0 %v195
    %239 = vmatprep.subr.mxu0 0.0
    %240 = vmatpush2.xpose.msra.mxu0 %v194
    %241 = vmatprep.subr.mxu0 0.0
    %242 = vmatpush2.xpose.msra.mxu0 %v193
    %243 = vmatprep.subr.mxu0 0.0
    %244 = vmatpush2.xpose.msra.mxu0 %v192
    %245 = vmatprep.subr.mxu0 0.0
    %246 = vmatpush2.xpose.msra.mxu0 %v191
    %247 = vmatprep.subr.mxu0 0.0
    %248 = vmatpush2.xpose.msra.mxu0 %v190
    %249 = vmatprep.subr.mxu0 0.0
    %250 = vmatpush2.xpose.msra.mxu0 %v189
    %251 = vmatprep.subr.mxu0 0.0
    %252 = vmatpush2.xpose.msra.mxu0 %v188
    %253 = vmatprep.subr.mxu0 0.0
    %254 = vmatpush2.xpose.msra.mxu0 %v187
    %255 = vmatprep.subr.mxu0 0.0
    %256 = vmatpush2.xpose.msra.mxu0 %v186
    %257 = vmatprep.subr.mxu0 0.0
    %258 = vmatpush2.xpose.msra.mxu0 %v185
    %259 = vmatprep.subr.mxu0 0.0
    %260 = vmatpush2.xpose.msra.mxu0 %v184
    %261 = vmatprep.subr.mxu0 0.0
    %262 = vmatpush2.xpose.msra.mxu0 %v183
    %263 = vmatprep.mubr.f32.mxu0 0.0
    %264 = vmatmul.mubr.f32.gmra.mxu0 %v47
    %v265 = vpop.f32.mrf.mxu0
    %v266 = vadd.f32 0.0, %v265
    %v267 = vpop.f32.mrf.mxu0
    %v268 = vadd.f32 0.0, %v267
    %269 = vdwg.mxu0
    %v270 = vmul.f32 %v266, 14.285714
    %v271 = vmul.f32 %v268, 14.285714
    %272 = vst [vmem:[%s10] sm:$0xff] %v270
    %273 = vst [vmem:[%s10 + $0x8] sm:$0xff] %v271
    %v274 = vld [vmem:[%s5] sm:$0xff]
    %v275 = vld [vmem:[%s5 + $0x8] sm:$0xff]
    %v276 = vld [vmem:[%s5 + $0x10] sm:$0xff]
    %v277 = vld [vmem:[%s5 + $0x18] sm:$0xff]
    %v278 = vld [vmem:[%s5 + $0x20] sm:$0xff]
    %v279 = vld [vmem:[%s5 + $0x28] sm:$0xff]
    %v280 = vld [vmem:[%s5 + $0x30] sm:$0xff]
    %v281 = vld [vmem:[%s5 + $0x38] sm:$0xff]
    %v282 = vld [vmem:[%s5 + $0x40] sm:$0xff]
    %v283 = vld [vmem:[%s5 + $0x48] sm:$0xff]
    %v284 = vld [vmem:[%s5 + $0x50] sm:$0xff]
    %v285 = vld [vmem:[%s5 + $0x58] sm:$0xff]
    %v286 = vld [vmem:[%s5 + $0x60] sm:$0xff]
    %v287 = vld [vmem:[%s5 + $0x68] sm:$0xff]
    %v288 = vld [vmem:[%s5 + $0x70] sm:$0xff]
    %v289 = vld [vmem:[%s5 + $0x78] sm:$0xff]
    %v290 = vld [vmem:[%s5 + $0x80] sm:$0xff]
    %v291 = vld [vmem:[%s5 + $0x88] sm:$0xff]
    %v292 = vld [vmem:[%s5 + $0x90] sm:$0xff]
    %v293 = vld [vmem:[%s5 + $0x98] sm:$0xff]
    %v294 = vld [vmem:[%s5 + $0xa0] sm:$0xff]
    %v295 = vld [vmem:[%s5 + $0xa8] sm:$0xff]
    %v296 = vld [vmem:[%s5 + $0xb0] sm:$0xff]
    %v297 = vld [vmem:[%s5 + $0xb8] sm:$0xff]
    %v298 = vld [vmem:[%s5 + $0xc0] sm:$0xff]
    %v299 = vld [vmem:[%s5 + $0xc8] sm:$0xff]
    %v300 = vld [vmem:[%s5 + $0xd0] sm:$0xff]
    %v301 = vld [vmem:[%s5 + $0xd8] sm:$0xff]
    %v302 = vld [vmem:[%s5 + $0xe0] sm:$0xff]
    %v303 = vld [vmem:[%s5 + $0xe8] sm:$0xff]
    %v304 = vld [vmem:[%s5 + $0xf0] sm:$0xff]
    %v305 = vld [vmem:[%s5 + $0xf8] sm:$0xff]
    %306 = vst [vmem:[%s11] sm:$0xff] %v274
    %307 = vst [vmem:[%s11 + $0x8] sm:$0xff] %v275
    %308 = vst [vmem:[%s11 + $0x10] sm:$0xff] %v276
    %309 = vst [vmem:[%s11 + $0x18] sm:$0xff] %v277
    %310 = vst [vmem:[%s11 + $0x20] sm:$0xff] %v278
    %311 = vst [vmem:[%s11 + $0x28] sm:$0xff] %v279
    %312 = vst [vmem:[%s11 + $0x30] sm:$0xff] %v280
    %313 = vst [vmem:[%s11 + $0x38] sm:$0xff] %v281
    %314 = vst [vmem:[%s11 + $0x40] sm:$0xff] %v282
    %315 = vst [vmem:[%s11 + $0x48] sm:$0xff] %v283
    %316 = vst [vmem:[%s11 + $0x50] sm:$0xff] %v284
    %317 = vst [vmem:[%s11 + $0x58] sm:$0xff] %v285
    %318 = vst [vmem:[%s11 + $0x60] sm:$0xff] %v286
    %319 = vst [vmem:[%s11 + $0x68] sm:$0xff] %v287
    %320 = vst [vmem:[%s11 + $0x70] sm:$0xff] %v288
    %321 = vst [vmem:[%s11 + $0x78] sm:$0xff] %v289
    %322 = vst [vmem:[%s11 + $0x80] sm:$0xff] %v290
    %323 = vst [vmem:[%s11 + $0x88] sm:$0xff] %v291
    %324 = vst [vmem:[%s11 + $0x90] sm:$0xff] %v292
    %325 = vst [vmem:[%s11 + $0x98] sm:$0xff] %v293
    %326 = vst [vmem:[%s11 + $0xa0] sm:$0xff] %v294
    %327 = vst [vmem:[%s11 + $0xa8] sm:$0xff] %v295
    %328 = vst [vmem:[%s11 + $0xb0] sm:$0xff] %v296
    %329 = vst [vmem:[%s11 + $0xb8] sm:$0xff] %v297
    %330 = vst [vmem:[%s11 + $0xc0] sm:$0xff] %v298
    %331 = vst [vmem:[%s11 + $0xc8] sm:$0xff] %v299
    %332 = vst [vmem:[%s11 + $0xd0] sm:$0xff] %v300
    %333 = vst [vmem:[%s11 + $0xd8] sm:$0xff] %v301
    %334 = vst [vmem:[%s11 + $0xe0] sm:$0xff] %v302
    %335 = vst [vmem:[%s11 + $0xe8] sm:$0xff] %v303
    %336 = vst [vmem:[%s11 + $0xf0] sm:$0xff] %v304
    %337 = vst [vmem:[%s11 + $0xf8] sm:$0xff] %v305
    %v338 = vld [vmem:[%s6] sm:$0xff]
    %v339 = vld [vmem:[%s6 + $0x8] sm:$0xff]
    %v340 = vld [vmem:[%s6 + $0x10] sm:$0xff]
    %v341 = vld [vmem:[%s6 + $0x18] sm:$0xff]
    %v342 = vld [vmem:[%s6 + $0x20] sm:$0xff]
    %v343 = vld [vmem:[%s6 + $0x28] sm:$0xff]
    %v344 = vld [vmem:[%s6 + $0x30] sm:$0xff]
    %v345 = vld [vmem:[%s6 + $0x38] sm:$0xff]
    %v346 = vld [vmem:[%s6 + $0x40] sm:$0xff]
    %v347 = vld [vmem:[%s6 + $0x48] sm:$0xff]
    %v348 = vld [vmem:[%s6 + $0x50] sm:$0xff]
    %v349 = vld [vmem:[%s6 + $0x58] sm:$0xff]
    %v350 = vld [vmem:[%s6 + $0x60] sm:$0xff]
    %v351 = vld [vmem:[%s6 + $0x68] sm:$0xff]
    %v352 = vld [vmem:[%s6 + $0x70] sm:$0xff]
    %v353 = vld [vmem:[%s6 + $0x78] sm:$0xff]
    %v354 = vld [vmem:[%s6 + $0x80] sm:$0xff]
    %v355 = vld [vmem:[%s6 + $0x88] sm:$0xff]
    %v356 = vld [vmem:[%s6 + $0x90] sm:$0xff]
    %v357 = vld [vmem:[%s6 + $0x98] sm:$0xff]
    %v358 = vld [vmem:[%s6 + $0xa0] sm:$0xff]
    %v359 = vld [vmem:[%s6 + $0xa8] sm:$0xff]
    %v360 = vld [vmem:[%s6 + $0xb0] sm:$0xff]
    %v361 = vld [vmem:[%s6 + $0xb8] sm:$0xff]
    %v362 = vld [vmem:[%s6 + $0xc0] sm:$0xff]
    %v363 = vld [vmem:[%s6 + $0xc8] sm:$0xff]
    %v364 = vld [vmem:[%s6 + $0xd0] sm:$0xff]
    %v365 = vld [vmem:[%s6 + $0xd8] sm:$0xff]
    %v366 = vld [vmem:[%s6 + $0xe0] sm:$0xff]
    %v367 = vld [vmem:[%s6 + $0xe8] sm:$0xff]
    %v368 = vld [vmem:[%s6 + $0xf0] sm:$0xff]
    %v369 = vld [vmem:[%s6 + $0xf8] sm:$0xff]
    %370 = vst [vmem:[%s12] sm:$0xff] %v338
    %371 = vst [vmem:[%s12 + $0x8] sm:$0xff] %v339
    %372 = vst [vmem:[%s12 + $0x10] sm:$0xff] %v340
    %373 = vst [vmem:[%s12 + $0x18] sm:$0xff] %v341
    %374 = vst [vmem:[%s12 + $0x20] sm:$0xff] %v342
    %375 = vst [vmem:[%s12 + $0x28] sm:$0xff] %v343
    %376 = vst [vmem:[%s12 + $0x30] sm:$0xff] %v344
    %377 = vst [vmem:[%s12 + $0x38] sm:$0xff] %v345
    %378 = vst [vmem:[%s12 + $0x40] sm:$0xff] %v346
    %379 = vst [vmem:[%s12 + $0x48] sm:$0xff] %v347
    %380 = vst [vmem:[%s12 + $0x50] sm:$0xff] %v348
    %381 = vst [vmem:[%s12 + $0x58] sm:$0xff] %v349
    %382 = vst [vmem:[%s12 + $0x60] sm:$0xff] %v350
    %383 = vst [vmem:[%s12 + $0x68] sm:$0xff] %v351
    %384 = vst [vmem:[%s12 + $0x70] sm:$0xff] %v352
    %385 = vst [vmem:[%s12 + $0x78] sm:$0xff] %v353
    %386 = vst [vmem:[%s12 + $0x80] sm:$0xff] %v354
    %387 = vst [vmem:[%s12 + $0x88] sm:$0xff] %v355
    %388 = vst [vmem:[%s12 + $0x90] sm:$0xff] %v356
    %389 = vst [vmem:[%s12 + $0x98] sm:$0xff] %v357
    %390 = vst [vmem:[%s12 + $0xa0] sm:$0xff] %v358
    %391 = vst [vmem:[%s12 + $0xa8] sm:$0xff] %v359
    %392 = vst [vmem:[%s12 + $0xb0] sm:$0xff] %v360
    %393 = vst [vmem:[%s12 + $0xb8] sm:$0xff] %v361
    %394 = vst [vmem:[%s12 + $0xc0] sm:$0xff] %v362
    %395 = vst [vmem:[%s12 + $0xc8] sm:$0xff] %v363
    %396 = vst [vmem:[%s12 + $0xd0] sm:$0xff] %v364
    %397 = vst [vmem:[%s12 + $0xd8] sm:$0xff] %v365
    %398 = vst [vmem:[%s12 + $0xe0] sm:$0xff] %v366
    %399 = vst [vmem:[%s12 + $0xe8] sm:$0xff] %v367
    %400 = vst [vmem:[%s12 + $0xf0] sm:$0xff] %v368
    %401 = vst [vmem:[%s12 + $0xf8] sm:$0xff] %v369
    %s402 = sld [smem:[#allocation2]]
    %s403 = sld [smem:[#allocation2 + $0x1]]
    %s404 = scalar_lea.vmem %s11, %s402
    %405 = vst [vmem:[%s404] sm:$0xff] %v46
    %s406 = scalar_lea.vmem %s12, %s403
    %407 = vst [vmem:[%s406] sm:$0xff] %v48
    // Predicated region
    $region34: #{fwd.3} parent=1 // pred_check
      _
    $region35: #{fwd.3} parent=1 // pred_check_branch
      %409 = sbr.rel (0) target = $region37
    $region36: #{fwd.3} parent=1 // pred_region
      _
    $region37: #{fwd.3} parent=1 // pred_fallthru
      _
    // Predicated region
    $region38: #{fwd.3} parent=1 // pred_check
      _
    $region39: #{fwd.3} parent=1 // pred_check_branch
      %411 = sbr.rel (0) target = $region41
    $region40: #{fwd.3} parent=1 // pred_region
      _
    $region41: #{fwd.3} parent=1 // pred_fallthru
      _
    // Predicated region
    $region42: #{fwd.3} parent=1 // pred_check
      _
    $region43: #{fwd.3} parent=1 // pred_check_branch
      %413 = sbr.rel (0) target = $region45
    $region44: #{fwd.3} parent=1 // pred_region
      _
    $region45: #{fwd.3} parent=1 // pred_fallthru
      _
    // Predicated region
    $region46: #{fwd.3} parent=1 // pred_check
      _
    $region47: #{fwd.3} parent=1 // pred_check_branch
      %415 = sbr.rel (0) target = $region49
    $region48: #{fwd.3} parent=1 // pred_region
      _
    $region49: #{fwd.3} parent=1 // pred_fallthru
      _
    // Predicated region
    $region50: #{fwd.3} parent=1 // pred_check
      _
    $region51: #{fwd.3} parent=1 // pred_check_branch
      %417 = sbr.rel (0) target = $region53
    $region52: #{fwd.3} parent=1 // pred_region
      _
    $region53: #{fwd.3} parent=1 // pred_fallthru
      _
    // Predicated region
    $region54: #{fwd.3} parent=1 // pred_check
      _
    $region55: #{fwd.3} parent=1 // pred_check_branch
      %419 = sbr.rel (0) target = $region57
    $region56: #{fwd.3} parent=1 // pred_region
      _
    $region57: #{fwd.3} parent=1 // pred_fallthru
      _
    // Predicated region
    $region58: #{fwd.3} parent=1 // pred_check
      _
    $region59: #{fwd.3} parent=1 // pred_check_branch
      %421 = sbr.rel (0) target = $region61
    $region60: #{fwd.3} parent=1 // pred_region
      _
    $region61: #{fwd.3} parent=1 // pred_fallthru
      _
    // Predicated region
    $region62: #{fwd.3} parent=1 // pred_check
      _
    $region63: #{fwd.3} parent=1 // pred_check_branch
      %423 = sbr.rel (0) target = $region65
    $region64: #{fwd.3} parent=1 // pred_region
      _
    $region65: #{fwd.3} parent=1 // pred_fallthru
      _
    // Predicated region
    $region66: #{fwd.3} parent=1 // pred_check
      _
    $region67: #{fwd.3} parent=1 // pred_check_branch
      %425 = sbr.rel (0) target = $region69
    $region68: #{fwd.3} parent=1 // pred_region
      _
    $region69: #{fwd.3} parent=1 // pred_fallthru
      _
    // Predicated region
    $region70: #{fwd.3} parent=1 // pred_check
      _
    $region71: #{fwd.3} parent=1 // pred_check_branch
      %427 = sbr.rel (0) target = $region73
    $region72: #{fwd.3} parent=1 // pred_region
      _
    $region73: #{fwd.3} parent=1 // pred_fallthru
      _
    // Predicated region
    $region74: #{fwd.3} parent=1 // pred_check
      _
    $region75: #{fwd.3} parent=1 // pred_check_branch
      %429 = sbr.rel (0) target = $region77
    $region76: #{fwd.3} parent=1 // pred_region
      _
    $region77: #{fwd.3} parent=1 // pred_fallthru
      _
    // Predicated region
    $region78: #{fwd.3} parent=1 // pred_check
      _
    $region79: #{fwd.3} parent=1 // pred_check_branch
      %431 = sbr.rel (0) target = $region81
    $region80: #{fwd.3} parent=1 // pred_region
      _
    $region81: #{fwd.3} parent=1 // pred_fallthru
      _
    %432 = vsyncpa [#allocation3], 1

// kernel: fwd.2
$region0: #{fwd.2}
  #allocation0 [shape = 'u32[]', space=smem, size = 0x4, offset = 0x4, fixed_abs, tag = 'smem constant byte address 0x4 - core index']
  #allocation1 [shape = 'u32[144,128]{1,0:T(1,128)}', space=vmem, size = 0x12000, scoped, tag = 'internal scratch']
  %s0 = inlined_call_operand.vmem [shape: f32[8,768], index: 0, kind: input, shape index: {}]
  %s1 = inlined_call_operand.vmem [shape: f32[8,768], index: 1, kind: input, shape index: {}]
  %s2 = inlined_call_operand.vmem [shape: f32[4,768,32], index: 2, kind: input, shape index: {}]
  %s3 = inlined_call_operand.vmem [shape: f32[4,1,32], index: 3, kind: input, shape index: {}]
  %s4 = inlined_call_operand.vmem [shape: f32[4,32,32], index: 4, kind: input, shape index: {}]
  %s5 = inlined_call_operand.vmem [shape: f32[4,1,32], index: 5, kind: input, shape index: {}]
  %s6 = inlined_call_operand.vmem [shape: f32[4,32,128], index: 6, kind: input, shape index: {}]
  %s7 = inlined_call_operand.vmem [shape: f32[4,1,128], index: 7, kind: input, shape index: {}]
  %s8 = inlined_call_operand.vmem [shape: f32[4,8,128], index: 8, kind: output, shape index: {}]
  %s9 = sld [smem:[#allocation0]]
  $region42: #{fwd.2} parent=0
    _
  %s11 = ssub.s32 1, %s9
  %s12 = scalar_select 0, %s11, %s9
  // Predicated region
  $region2: #{fwd.2} parent=0 // pred_check
    _
  $region3: #{fwd.2} parent=0 // pred_check_branch
    %14 = sbr.rel (0) target = $region5
  $region4: #{fwd.2} parent=0 // pred_region
    _
  $region5: #{fwd.2} parent=0 // pred_fallthru
    _
  // Predicated region
  $region6: #{fwd.2} parent=0 // pred_check
    _
  $region7: #{fwd.2} parent=0 // pred_check_branch
    %16 = sbr.rel (0) target = $region9
  $region8: #{fwd.2} parent=0 // pred_region
    _
  $region9: #{fwd.2} parent=0 // pred_fallthru
    _
  // Predicated region
  $region10: #{fwd.2} parent=0 // pred_check
    _
  $region11: #{fwd.2} parent=0 // pred_check_branch
    %18 = sbr.rel (0) target = $region13
  $region12: #{fwd.2} parent=0 // pred_region
    _
  $region13: #{fwd.2} parent=0 // pred_fallthru
    _
  // Predicated region
  $region14: #{fwd.2} parent=0 // pred_check
    _
  $region15: #{fwd.2} parent=0 // pred_check_branch
    %20 = sbr.rel (0) target = $region17
  $region16: #{fwd.2} parent=0 // pred_region
    _
  $region17: #{fwd.2} parent=0 // pred_fallthru
    _
  // Predicated region
  $region18: #{fwd.2} parent=0 // pred_check
    _
  $region19: #{fwd.2} parent=0 // pred_check_branch
    %22 = sbr.rel (0) target = $region21
  $region20: #{fwd.2} parent=0 // pred_region
    _
  $region21: #{fwd.2} parent=0 // pred_fallthru
    _
  // Predicated region
  $region22: #{fwd.2} parent=0 // pred_check
    _
  $region23: #{fwd.2} parent=0 // pred_check_branch
    %24 = sbr.rel (0) target = $region25
  $region24: #{fwd.2} parent=0 // pred_region
    _
  $region25: #{fwd.2} parent=0 // pred_fallthru
    _
  // Predicated region
  $region26: #{fwd.2} parent=0 // pred_check
    _
  $region27: #{fwd.2} parent=0 // pred_check_branch
    %26 = sbr.rel (0) target = $region29
  $region28: #{fwd.2} parent=0 // pred_region
    _
  $region29: #{fwd.2} parent=0 // pred_fallthru
    _
  // Predicated region
  $region30: #{fwd.2} parent=0 // pred_check
    _
  $region31: #{fwd.2} parent=0 // pred_check_branch
    %28 = sbr.rel (0) target = $region33
  $region32: #{fwd.2} parent=0 // pred_region
    _
  $region33: #{fwd.2} parent=0 // pred_fallthru
    _
  %v29 = vld [vmem:[%s0] sm:$0xff]
  %v30 = vld [vmem:[%s0 + $0x8] sm:$0xff]
  %v31 = vld [vmem:[%s0 + $0x10] sm:$0xff]
  %v32 = vld [vmem:[%s0 + $0x18] sm:$0xff]
  %v33 = vld [vmem:[%s0 + $0x20] sm:$0xff]
  %v34 = vld [vmem:[%s0 + $0x28] sm:$0xff]
  %v35 = vld [vmem:[%s1] sm:$0xff]
  %v36 = vld [vmem:[%s1 + $0x8] sm:$0xff]
  %v37 = vld [vmem:[%s1 + $0x10] sm:$0xff]
  %v38 = vld [vmem:[%s1 + $0x18] sm:$0xff]
  %v39 = vld [vmem:[%s1 + $0x20] sm:$0xff]
  %v40 = vld [vmem:[%s1 + $0x28] sm:$0xff]
  %v41 = vld [vmem:[%s2] sm:$0xff]
  %v42 = vld [vmem:[%s2 + $0x8] sm:$0xff]
  %v43 = vld [vmem:[%s2 + $0x10] sm:$0xff]
  %v44 = vld [vmem:[%s2 + $0x18] sm:$0xff]
  %v45 = vld [vmem:[%s2 + $0x20] sm:$0xff]
  %v46 = vld [vmem:[%s2 + $0x28] sm:$0xff]
  %v47 = vld [vmem:[%s2 + $0x30] sm:$0xff]
  %v48 = vld [vmem:[%s2 + $0x38] sm:$0xff]
  %v49 = vld [vmem:[%s2 + $0x40] sm:$0xff]
  %v50 = vld [vmem:[%s2 + $0x48] sm:$0xff]
  %v51 = vld [vmem:[%s2 + $0x50] sm:$0xff]
  %v52 = vld [vmem:[%s2 + $0x58] sm:$0xff]
  %v53 = vld [vmem:[%s2 + $0x60] sm:$0xff]
  %v54 = vld [vmem:[%s2 + $0x68] sm:$0xff]
  %v55 = vld [vmem:[%s2 + $0x70] sm:$0xff]
  %v56 = vld [vmem:[%s2 + $0x78] sm:$0xff]
  %v57 = vld [vmem:[%s2 + $0x80] sm:$0xff]
  %v58 = vld [vmem:[%s2 + $0x88] sm:$0xff]
  %v59 = vld [vmem:[%s2 + $0x90] sm:$0xff]
  %v60 = vld [vmem:[%s2 + $0x98] sm:$0xff]
  %v61 = vld [vmem:[%s2 + $0xa0] sm:$0xff]
  %v62 = vld [vmem:[%s2 + $0xa8] sm:$0xff]
  %v63 = vld [vmem:[%s2 + $0xb0] sm:$0xff]
  %v64 = vld [vmem:[%s2 + $0xb8] sm:$0xff]
  %v65 = vld [vmem:[%s2 + $0xc0] sm:$0xff]
  %v66 = vld [vmem:[%s2 + $0xc8] sm:$0xff]
  %v67 = vld [vmem:[%s2 + $0xd0] sm:$0xff]
  %v68 = vld [vmem:[%s2 + $0xd8] sm:$0xff]
  %v69 = vld [vmem:[%s2 + $0xe0] sm:$0xff]
  %v70 = vld [vmem:[%s2 + $0xe8] sm:$0xff]
  %v71 = vld [vmem:[%s2 + $0xf0] sm:$0xff]
  %v72 = vld [vmem:[%s2 + $0xf8] sm:$0xff]
  %v73 = vld [vmem:[%s2 + $0x100] sm:$0xff]
  %v74 = vld [vmem:[%s2 + $0x108] sm:$0xff]
  %v75 = vld [vmem:[%s2 + $0x110] sm:$0xff]
  %v76 = vld [vmem:[%s2 + $0x118] sm:$0xff]
  %v77 = vld [vmem:[%s2 + $0x120] sm:$0xff]
  %v78 = vld [vmem:[%s2 + $0x128] sm:$0xff]
  %v79 = vld [vmem:[%s2 + $0x130] sm:$0xff]
  %v80 = vld [vmem:[%s2 + $0x138] sm:$0xff]
  %v81 = vld [vmem:[%s2 + $0x140] sm:$0xff]
  %v82 = vld [vmem:[%s2 + $0x148] sm:$0xff]
  %v83 = vld [vmem:[%s2 + $0x150] sm:$0xff]
  %v84 = vld [vmem:[%s2 + $0x158] sm:$0xff]
  %v85 = vld [vmem:[%s2 + $0x160] sm:$0xff]
  %v86 = vld [vmem:[%s2 + $0x168] sm:$0xff]
  %v87 = vld [vmem:[%s2 + $0x170] sm:$0xff]
  %v88 = vld [vmem:[%s2 + $0x178] sm:$0xff]
  %v89 = vld [vmem:[%s2 + $0x180] sm:$0xff]
  %v90 = vld [vmem:[%s2 + $0x188] sm:$0xff]
  %v91 = vld [vmem:[%s2 + $0x190] sm:$0xff]
  %v92 = vld [vmem:[%s2 + $0x198] sm:$0xff]
  %v93 = vld [vmem:[%s2 + $0x1a0] sm:$0xff]
  %v94 = vld [vmem:[%s2 + $0x1a8] sm:$0xff]
  %v95 = vld [vmem:[%s2 + $0x1b0] sm:$0xff]
  %v96 = vld [vmem:[%s2 + $0x1b8] sm:$0xff]
  %v97 = vld [vmem:[%s2 + $0x1c0] sm:$0xff]
  %v98 = vld [vmem:[%s2 + $0x1c8] sm:$0xff]
  %v99 = vld [vmem:[%s2 + $0x1d0] sm:$0xff]
  %v100 = vld [vmem:[%s2 + $0x1d8] sm:$0xff]
  %v101 = vld [vmem:[%s2 + $0x1e0] sm:$0xff]
  %v102 = vld [vmem:[%s2 + $0x1e8] sm:$0xff]
  %v103 = vld [vmem:[%s2 + $0x1f0] sm:$0xff]
  %v104 = vld [vmem:[%s2 + $0x1f8] sm:$0xff]
  %v105 = vld [vmem:[%s2 + $0x200] sm:$0xff]
  %v106 = vld [vmem:[%s2 + $0x208] sm:$0xff]
  %v107 = vld [vmem:[%s2 + $0x210] sm:$0xff]
  %v108 = vld [vmem:[%s2 + $0x218] sm:$0xff]
  %v109 = vld [vmem:[%s2 + $0x220] sm:$0xff]
  %v110 = vld [vmem:[%s2 + $0x228] sm:$0xff]
  %v111 = vld [vmem:[%s2 + $0x230] sm:$0xff]
  %v112 = vld [vmem:[%s2 + $0x238] sm:$0xff]
  %v113 = vld [vmem:[%s2 + $0x240] sm:$0xff]
  %v114 = vld [vmem:[%s2 + $0x248] sm:$0xff]
  %v115 = vld [vmem:[%s2 + $0x250] sm:$0xff]
  %v116 = vld [vmem:[%s2 + $0x258] sm:$0xff]
  %v117 = vld [vmem:[%s2 + $0x260] sm:$0xff]
  %v118 = vld [vmem:[%s2 + $0x268] sm:$0xff]
  %v119 = vld [vmem:[%s2 + $0x270] sm:$0xff]
  %v120 = vld [vmem:[%s2 + $0x278] sm:$0xff]
  %v121 = vld [vmem:[%s2 + $0x280] sm:$0xff]
  %v122 = vld [vmem:[%s2 + $0x288] sm:$0xff]
  %v123 = vld [vmem:[%s2 + $0x290] sm:$0xff]
  %v124 = vld [vmem:[%s2 + $0x298] sm:$0xff]
  %v125 = vld [vmem:[%s2 + $0x2a0] sm:$0xff]
  %v126 = vld [vmem:[%s2 + $0x2a8] sm:$0xff]
  %v127 = vld [vmem:[%s2 + $0x2b0] sm:$0xff]
  %v128 = vld [vmem:[%s2 + $0x2b8] sm:$0xff]
  %v129 = vld [vmem:[%s2 + $0x2c0] sm:$0xff]
  %v130 = vld [vmem:[%s2 + $0x2c8] sm:$0xff]
  %v131 = vld [vmem:[%s2 + $0x2d0] sm:$0xff]
  %v132 = vld [vmem:[%s2 + $0x2d8] sm:$0xff]
  %v133 = vld [vmem:[%s2 + $0x2e0] sm:$0xff]
  %v134 = vld [vmem:[%s2 + $0x2e8] sm:$0xff]
  %v135 = vld [vmem:[%s2 + $0x2f0] sm:$0xff]
  %v136 = vld [vmem:[%s2 + $0x2f8] sm:$0xff]
  %v137 = vld [vmem:[%s3] sm:$0x1]
  %v139 = vlaneseq
  %v140 = vshrl.u32 %v139, 7
  %v141 = vsub.s32 0, %v140
  %v142 = vrot.slane %v137, %v141
  %144 = vmatprep.subr.mxu0 0.0
  %145 = vmatpush1.msra.mxu0 %v56
  %146 = vmatprep.subr.mxu0 0.0
  %147 = vmatpush1.msra.mxu0 %v55
  %148 = vmatprep.subr.mxu0 0.0
  %149 = vmatpush1.msra.mxu0 %v54
  %150 = vmatprep.subr.mxu0 0.0
  %151 = vmatpush1.msra.mxu0 %v53
  %152 = vmatprep.subr.mxu0 0.0
  %153 = vmatpush1.msra.mxu0 %v52
  %154 = vmatprep.subr.mxu0 0.0
  %155 = vmatpush1.msra.mxu0 %v51
  %156 = vmatprep.subr.mxu0 0.0
  %157 = vmatpush1.msra.mxu0 %v50
  %158 = vmatprep.subr.mxu0 0.0
  %159 = vmatpush1.msra.mxu0 %v49
  %160 = vmatprep.subr.mxu0 0.0
  %161 = vmatpush1.msra.mxu0 %v48
  %162 = vmatprep.subr.mxu0 0.0
  %163 = vmatpush1.msra.mxu0 %v47
  %164 = vmatprep.subr.mxu0 0.0
  %165 = vmatpush1.msra.mxu0 %v46
  %166 = vmatprep.subr.mxu0 0.0
  %167 = vmatpush1.msra.mxu0 %v45
  %168 = vmatprep.subr.mxu0 0.0
  %169 = vmatpush1.msra.mxu0 %v44
  %170 = vmatprep.subr.mxu0 0.0
  %171 = vmatpush1.msra.mxu0 %v43
  %172 = vmatprep.subr.mxu0 0.0
  %173 = vmatpush1.msra.mxu0 %v42
  %174 = vmatprep.subr.mxu0 0.0
  %175 = vmatpush1.msra.mxu0 %v41
  %176 = vmatprep.subr.mxu0 0.0
  %177 = vmatpush2.msra.mxu0 %v72
  %178 = vmatprep.subr.mxu0 0.0
  %179 = vmatpush2.msra.mxu0 %v71
  %180 = vmatprep.subr.mxu0 0.0
  %181 = vmatpush2.msra.mxu0 %v70
  %182 = vmatprep.subr.mxu0 0.0
  %183 = vmatpush2.msra.mxu0 %v69
  %184 = vmatprep.subr.mxu0 0.0
  %185 = vmatpush2.msra.mxu0 %v68
  %186 = vmatprep.subr.mxu0 0.0
  %187 = vmatpush2.msra.mxu0 %v67
  %188 = vmatprep.subr.mxu0 0.0
  %189 = vmatpush2.msra.mxu0 %v66
  %190 = vmatprep.subr.mxu0 0.0
  %191 = vmatpush2.msra.mxu0 %v65
  %192 = vmatprep.subr.mxu0 0.0
  %193 = vmatpush2.msra.mxu0 %v64
  %194 = vmatprep.subr.mxu0 0.0
  %195 = vmatpush2.msra.mxu0 %v63
  %196 = vmatprep.subr.mxu0 0.0
  %197 = vmatpush2.msra.mxu0 %v62
  %198 = vmatprep.subr.mxu0 0.0
  %199 = vmatpush2.msra.mxu0 %v61
  %200 = vmatprep.subr.mxu0 0.0
  %201 = vmatpush2.msra.mxu0 %v60
  %202 = vmatprep.subr.mxu0 0.0
  %203 = vmatpush2.msra.mxu0 %v59
  %204 = vmatprep.subr.mxu0 0.0
  %205 = vmatpush2.msra.mxu0 %v58
  %206 = vmatprep.subr.mxu0 0.0
  %207 = vmatpush2.msra.mxu0 %v57
  %208 = vmatprep.mubr.f32.mxu0 %v30
  %209 = vmatmul.mubr.f32.gmra.mxu0 %v29
  %v210 = vpop.f32.mrf.mxu0
  %v211 = vadd.f32 %v142, %v210
  %v212 = vpop.f32.mrf.mxu0
  %213 = vdwg.mxu0
  %214 = vmatprep.subr.mxu0 0.0
  %215 = vmatpush1.msra.mxu0 %v88
  %216 = vmatprep.subr.mxu0 0.0
  %217 = vmatpush1.msra.mxu0 %v87
  %218 = vmatprep.subr.mxu0 0.0
  %219 = vmatpush1.msra.mxu0 %v86
  %220 = vmatprep.subr.mxu0 0.0
  %221 = vmatpush1.msra.mxu0 %v85
  %222 = vmatprep.subr.mxu0 0.0
  %223 = vmatpush1.msra.mxu0 %v84
  %224 = vmatprep.subr.mxu0 0.0
  %225 = vmatpush1.msra.mxu0 %v83
  %226 = vmatprep.subr.mxu0 0.0
  %227 = vmatpush1.msra.mxu0 %v82
  %228 = vmatprep.subr.mxu0 0.0
  %229 = vmatpush1.msra.mxu0 %v81
  %230 = vmatprep.subr.mxu0 0.0
  %231 = vmatpush1.msra.mxu0 %v80
  %232 = vmatprep.subr.mxu0 0.0
  %233 = vmatpush1.msra.mxu0 %v79
  %234 = vmatprep.subr.mxu0 0.0
  %235 = vmatpush1.msra.mxu0 %v78
  %236 = vmatprep.subr.mxu0 0.0
  %237 = vmatpush1.msra.mxu0 %v77
  %238 = vmatprep.subr.mxu0 0.0
  %239 = vmatpush1.msra.mxu0 %v76
  %240 = vmatprep.subr.mxu0 0.0
  %241 = vmatpush1.msra.mxu0 %v75
  %242 = vmatprep.subr.mxu0 0.0
  %243 = vmatpush1.msra.mxu0 %v74
  %244 = vmatprep.subr.mxu0 0.0
  %245 = vmatpush1.msra.mxu0 %v73
  %246 = vmatprep.subr.mxu0 0.0
  %247 = vmatpush2.msra.mxu0 %v104
  %248 = vmatprep.subr.mxu0 0.0
  %249 = vmatpush2.msra.mxu0 %v103
  %250 = vmatprep.subr.mxu0 0.0
  %251 = vmatpush2.msra.mxu0 %v102
  %252 = vmatprep.subr.mxu0 0.0
  %253 = vmatpush2.msra.mxu0 %v101
  %254 = vmatprep.subr.mxu0 0.0
  %255 = vmatpush2.msra.mxu0 %v100
  %256 = vmatprep.subr.mxu0 0.0
  %257 = vmatpush2.msra.mxu0 %v99
  %258 = vmatprep.subr.mxu0 0.0
  %259 = vmatpush2.msra.mxu0 %v98
  %260 = vmatprep.subr.mxu0 0.0
  %261 = vmatpush2.msra.mxu0 %v97
  %262 = vmatprep.subr.mxu0 0.0
  %263 = vmatpush2.msra.mxu0 %v96
  %264 = vmatprep.subr.mxu0 0.0
  %265 = vmatpush2.msra.mxu0 %v95
  %266 = vmatprep.subr.mxu0 0.0
  %267 = vmatpush2.msra.mxu0 %v94
  %268 = vmatprep.subr.mxu0 0.0
  %269 = vmatpush2.msra.mxu0 %v93
  %270 = vmatprep.subr.mxu0 0.0
  %271 = vmatpush2.msra.mxu0 %v92
  %272 = vmatprep.subr.mxu0 0.0
  %273 = vmatpush2.msra.mxu0 %v91
  %274 = vmatprep.subr.mxu0 0.0
  %275 = vmatpush2.msra.mxu0 %v90
  %276 = vmatprep.subr.mxu0 0.0
  %277 = vmatpush2.msra.mxu0 %v89
  %278 = vmatprep.mubr.f32.mxu0 %v32
  %279 = vmatmul.mubr.f32.gmra.mxu0 %v31
  %v280 = vpop.f32.mrf.mxu0
  %v281 = vadd.f32 %v211, %v280
  %v282 = vpop.f32.mrf.mxu0
  %283 = vdwg.mxu0
  %284 = vmatprep.subr.mxu0 0.0
  %285 = vmatpush1.msra.mxu0 %v120
  %286 = vmatprep.subr.mxu0 0.0
  %287 = vmatpush1.msra.mxu0 %v119
  %288 = vmatprep.subr.mxu0 0.0
  %289 = vmatpush1.msra.mxu0 %v118
  %290 = vmatprep.subr.mxu0 0.0
  %291 = vmatpush1.msra.mxu0 %v117
  %292 = vmatprep.subr.mxu0 0.0
  %293 = vmatpush1.msra.mxu0 %v116
  %294 = vmatprep.subr.mxu0 0.0
  %295 = vmatpush1.msra.mxu0 %v115
  %296 = vmatprep.subr.mxu0 0.0
  %297 = vmatpush1.msra.mxu0 %v114
  %298 = vmatprep.subr.mxu0 0.0
  %299 = vmatpush1.msra.mxu0 %v113
  %300 = vmatprep.subr.mxu0 0.0
  %301 = vmatpush1.msra.mxu0 %v112
  %302 = vmatprep.subr.mxu0 0.0
  %303 = vmatpush1.msra.mxu0 %v111
  %304 = vmatprep.subr.mxu0 0.0
  %305 = vmatpush1.msra.mxu0 %v110
  %306 = vmatprep.subr.mxu0 0.0
  %307 = vmatpush1.msra.mxu0 %v109
  %308 = vmatprep.subr.mxu0 0.0
  %309 = vmatpush1.msra.mxu0 %v108
  %310 = vmatprep.subr.mxu0 0.0
  %311 = vmatpush1.msra.mxu0 %v107
  %312 = vmatprep.subr.mxu0 0.0
  %313 = vmatpush1.msra.mxu0 %v106
  %314 = vmatprep.subr.mxu0 0.0
  %315 = vmatpush1.msra.mxu0 %v105
  %316 = vmatprep.subr.mxu0 0.0
  %317 = vmatpush2.msra.mxu0 %v136
  %318 = vmatprep.subr.mxu0 0.0
  %319 = vmatpush2.msra.mxu0 %v135
  %320 = vmatprep.subr.mxu0 0.0
  %321 = vmatpush2.msra.mxu0 %v134
  %322 = vmatprep.subr.mxu0 0.0
  %323 = vmatpush2.msra.mxu0 %v133
  %324 = vmatprep.subr.mxu0 0.0
  %325 = vmatpush2.msra.mxu0 %v132
  %326 = vmatprep.subr.mxu0 0.0
  %327 = vmatpush2.msra.mxu0 %v131
  %328 = vmatprep.subr.mxu0 0.0
  %329 = vmatpush2.msra.mxu0 %v130
  %330 = vmatprep.subr.mxu0 0.0
  %331 = vmatpush2.msra.mxu0 %v129
  %332 = vmatprep.subr.mxu0 0.0
  %333 = vmatpush2.msra.mxu0 %v128
  %334 = vmatprep.subr.mxu0 0.0
  %335 = vmatpush2.msra.mxu0 %v127
  %336 = vmatprep.subr.mxu0 0.0
  %337 = vmatpush2.msra.mxu0 %v126
  %338 = vmatprep.subr.mxu0 0.0
  %339 = vmatpush2.msra.mxu0 %v125
  %340 = vmatprep.subr.mxu0 0.0
  %341 = vmatpush2.msra.mxu0 %v124
  %342 = vmatprep.subr.mxu0 0.0
  %343 = vmatpush2.msra.mxu0 %v123
  %344 = vmatprep.subr.mxu0 0.0
  %345 = vmatpush2.msra.mxu0 %v122
  %346 = vmatprep.subr.mxu0 0.0
  %347 = vmatpush2.msra.mxu0 %v121
  %348 = vmatprep.mubr.f32.mxu0 %v34
  %349 = vmatmul.mubr.f32.gmra.mxu0 %v33
  %v350 = vpop.f32.mrf.mxu0
  %v351 = vadd.f32 %v281, %v350
  %v352 = vpop.f32.mrf.mxu0
  %353 = vdwg.mxu0
  %v354 = vmax.f32 %v351, 0.0
  %v355 = vld [vmem:[%s4] sm:$0xff]
  %v356 = vld [vmem:[%s4 + $0x8] sm:$0xff]
  %v357 = vld [vmem:[%s4 + $0x10] sm:$0xff]
  %v358 = vld [vmem:[%s4 + $0x18] sm:$0xff]
  %v359 = vld [vmem:[%s5] sm:$0x1]
  %v361 = vlaneseq
  %v362 = vshrl.u32 %v361, 7
  %v363 = vsub.s32 0, %v362
  %v364 = vrot.slane %v359, %v363
  %vm366 = vcmask 261120
  %v368 = vsel %vm366, %v354, 0
  %370 = vmatprep.subr.mxu0 0.0
  %371 = vmatpush1.msra.mxu0 0.0
  %372 = vmatprep.subr.mxu0 0.0
  %373 = vmatpush1.msra.mxu0 0.0
  %374 = vmatprep.subr.mxu0 0.0
  %375 = vmatpush1.msra.mxu0 0.0
  %376 = vmatprep.subr.mxu0 0.0
  %377 = vmatpush1.msra.mxu0 0.0
  %378 = vmatprep.subr.mxu0 0.0
  %379 = vmatpush1.msra.mxu0 0.0
  %380 = vmatprep.subr.mxu0 0.0
  %381 = vmatpush1.msra.mxu0 0.0
  %382 = vmatprep.subr.mxu0 0.0
  %383 = vmatpush1.msra.mxu0 0.0
  %384 = vmatprep.subr.mxu0 0.0
  %385 = vmatpush1.msra.mxu0 0.0
  %386 = vmatprep.subr.mxu0 0.0
  %387 = vmatpush1.msra.mxu0 0.0
  %388 = vmatprep.subr.mxu0 0.0
  %389 = vmatpush1.msra.mxu0 0.0
  %390 = vmatprep.subr.mxu0 0.0
  %391 = vmatpush1.msra.mxu0 0.0
  %392 = vmatprep.subr.mxu0 0.0
  %393 = vmatpush1.msra.mxu0 0.0
  %394 = vmatprep.subr.mxu0 0.0
  %395 = vmatpush1.msra.mxu0 %v358
  %396 = vmatprep.subr.mxu0 0.0
  %397 = vmatpush1.msra.mxu0 %v357
  %398 = vmatprep.subr.mxu0 0.0
  %399 = vmatpush1.msra.mxu0 %v356
  %400 = vmatprep.subr.mxu0 0.0
  %401 = vmatpush1.msra.mxu0 %v355
  %402 = vmatprep.subr.mxu0 0.0
  %403 = vmatpush2.msra.mxu0 0.0
  %404 = vmatprep.subr.mxu0 0.0
  %405 = vmatpush2.msra.mxu0 0.0
  %406 = vmatprep.subr.mxu0 0.0
  %407 = vmatpush2.msra.mxu0 0.0
  %408 = vmatprep.subr.mxu0 0.0
  %409 = vmatpush2.msra.mxu0 0.0
  %410 = vmatprep.subr.mxu0 0.0
  %411 = vmatpush2.msra.mxu0 0.0
  %412 = vmatprep.subr.mxu0 0.0
  %413 = vmatpush2.msra.mxu0 0.0
  %414 = vmatprep.subr.mxu0 0.0
  %415 = vmatpush2.msra.mxu0 0.0
  %416 = vmatprep.subr.mxu0 0.0
  %417 = vmatpush2.msra.mxu0 0.0
  %418 = vmatprep.subr.mxu0 0.0
  %419 = vmatpush2.msra.mxu0 0.0
  %420 = vmatprep.subr.mxu0 0.0
  %421 = vmatpush2.msra.mxu0 0.0
  %422 = vmatprep.subr.mxu0 0.0
  %423 = vmatpush2.msra.mxu0 0.0
  %424 = vmatprep.subr.mxu0 0.0
  %425 = vmatpush2.msra.mxu0 0.0
  %426 = vmatprep.subr.mxu0 0.0
  %427 = vmatpush2.msra.mxu0 0.0
  %428 = vmatprep.subr.mxu0 0.0
  %429 = vmatpush2.msra.mxu0 0.0
  %430 = vmatprep.subr.mxu0 0.0
  %431 = vmatpush2.msra.mxu0 0.0
  %432 = vmatprep.subr.mxu0 0.0
  %433 = vmatpush2.msra.mxu0 0.0
  %434 = vmatprep.mubr.f32.mxu0 0.0
  %435 = vmatmul.mubr.f32.gmra.mxu0 %v368
  %v436 = vpop.f32.mrf.mxu0
  %v437 = vadd.f32 %v364, %v436
  %v438 = vpop.f32.mrf.mxu0
  %439 = vdwg.mxu0
  %v440 = vmax.f32 %v437, 0.0
  %v441 = vld [vmem:[%s6] sm:$0xff]
  %v442 = vld [vmem:[%s6 + $0x8] sm:$0xff]
  %v443 = vld [vmem:[%s6 + $0x10] sm:$0xff]
  %v444 = vld [vmem:[%s6 + $0x18] sm:$0xff]
  %v445 = vld [vmem:[%s7] sm:$0x1]
  %v447 = vlaneseq
  %v448 = vshrl.u32 %v447, 7
  %v449 = vsub.s32 0, %v448
  %v450 = vrot.slane %v445, %v449
  %v453 = vsel %vm366, %v440, 0
  %455 = vmatprep.subr.mxu0 0.0
  %456 = vmatpush1.msra.mxu0 0.0
  %457 = vmatprep.subr.mxu0 0.0
  %458 = vmatpush1.msra.mxu0 0.0
  %459 = vmatprep.subr.mxu0 0.0
  %460 = vmatpush1.msra.mxu0 0.0
  %461 = vmatprep.subr.mxu0 0.0
  %462 = vmatpush1.msra.mxu0 0.0
  %463 = vmatprep.subr.mxu0 0.0
  %464 = vmatpush1.msra.mxu0 0.0
  %465 = vmatprep.subr.mxu0 0.0
  %466 = vmatpush1.msra.mxu0 0.0
  %467 = vmatprep.subr.mxu0 0.0
  %468 = vmatpush1.msra.mxu0 0.0
  %469 = vmatprep.subr.mxu0 0.0
  %470 = vmatpush1.msra.mxu0 0.0
  %471 = vmatprep.subr.mxu0 0.0
  %472 = vmatpush1.msra.mxu0 0.0
  %473 = vmatprep.subr.mxu0 0.0
  %474 = vmatpush1.msra.mxu0 0.0
  %475 = vmatprep.subr.mxu0 0.0
  %476 = vmatpush1.msra.mxu0 0.0
  %477 = vmatprep.subr.mxu0 0.0
  %478 = vmatpush1.msra.mxu0 0.0
  %479 = vmatprep.subr.mxu0 0.0
  %480 = vmatpush1.msra.mxu0 %v444
  %481 = vmatprep.subr.mxu0 0.0
  %482 = vmatpush1.msra.mxu0 %v443
  %483 = vmatprep.subr.mxu0 0.0
  %484 = vmatpush1.msra.mxu0 %v442
  %485 = vmatprep.subr.mxu0 0.0
  %486 = vmatpush1.msra.mxu0 %v441
  %487 = vmatprep.subr.mxu0 0.0
  %488 = vmatpush2.msra.mxu0 0.0
  %489 = vmatprep.subr.mxu0 0.0
  %490 = vmatpush2.msra.mxu0 0.0
  %491 = vmatprep.subr.mxu0 0.0
  %492 = vmatpush2.msra.mxu0 0.0
  %493 = vmatprep.subr.mxu0 0.0
  %494 = vmatpush2.msra.mxu0 0.0
  %495 = vmatprep.subr.mxu0 0.0
  %496 = vmatpush2.msra.mxu0 0.0
  %497 = vmatprep.subr.mxu0 0.0
  %498 = vmatpush2.msra.mxu0 0.0
  %499 = vmatprep.subr.mxu0 0.0
  %500 = vmatpush2.msra.mxu0 0.0
  %501 = vmatprep.subr.mxu0 0.0
  %502 = vmatpush2.msra.mxu0 0.0
  %503 = vmatprep.subr.mxu0 0.0
  %504 = vmatpush2.msra.mxu0 0.0
  %505 = vmatprep.subr.mxu0 0.0
  %506 = vmatpush2.msra.mxu0 0.0
  %507 = vmatprep.subr.mxu0 0.0
  %508 = vmatpush2.msra.mxu0 0.0
  %509 = vmatprep.subr.mxu0 0.0
  %510 = vmatpush2.msra.mxu0 0.0
  %511 = vmatprep.subr.mxu0 0.0
  %512 = vmatpush2.msra.mxu0 0.0
  %513 = vmatprep.subr.mxu0 0.0
  %514 = vmatpush2.msra.mxu0 0.0
  %515 = vmatprep.subr.mxu0 0.0
  %516 = vmatpush2.msra.mxu0 0.0
  %517 = vmatprep.subr.mxu0 0.0
  %518 = vmatpush2.msra.mxu0 0.0
  %519 = vmatprep.mubr.f32.mxu0 0.0
  %520 = vmatmul.mubr.f32.gmra.mxu0 %v453
  %v521 = vpop.f32.mrf.mxu0
  %v522 = vadd.f32 %v450, %v521
  %v523 = vpop.f32.mrf.mxu0
  %524 = vdwg.mxu0
  %v525 = vmul.f32 %v522, %v522
  %526 = vadd.xlane.f32.xlu0 %v525
  %v527 = vpop.xlane.xlu0 %526
  %v528 = vrsqrt.pop %v527
  %v529 = vmul.f32 %v527, %v528
  %vm530 = vcmp.eq.f32.partialorder %v527, inf
  %v531 = vsel %vm530, %v527, %v529
  %vm532 = vcmp.eq.f32.partialorder %v527, 0.0
  %v533 = vand.u32 %v527, 2147483648
  %v534 = vsel %vm532, %v533, %v531
  %v535 = vmax.f32 %v534, 1e-12
  %v536 = vrcp.pop %v535
  %v537 = vmul.f32 %v522, %v536
  %538 = vst [vmem:[%s8] sm:$0xff] %v537
  %s539 = scalar_lea.vmem %s2, 768
  %v540 = vld [vmem:[%s539] sm:$0xff]
  %v541 = vld [vmem:[%s539 + $0x8] sm:$0xff]
  %v542 = vld [vmem:[%s539 + $0x10] sm:$0xff]
  %v543 = vld [vmem:[%s539 + $0x18] sm:$0xff]
  %v544 = vld [vmem:[%s539 + $0x20] sm:$0xff]
  %v545 = vld [vmem:[%s539 + $0x28] sm:$0xff]
  %v546 = vld [vmem:[%s539 + $0x30] sm:$0xff]
  %v547 = vld [vmem:[%s539 + $0x38] sm:$0xff]
  %v548 = vld [vmem:[%s539 + $0x40] sm:$0xff]
  %v549 = vld [vmem:[%s539 + $0x48] sm:$0xff]
  %v550 = vld [vmem:[%s539 + $0x50] sm:$0xff]
  %v551 = vld [vmem:[%s539 + $0x58] sm:$0xff]
  %v552 = vld [vmem:[%s539 + $0x60] sm:$0xff]
  %v553 = vld [vmem:[%s539 + $0x68] sm:$0xff]
  %v554 = vld [vmem:[%s539 + $0x70] sm:$0xff]
  %v555 = vld [vmem:[%s539 + $0x78] sm:$0xff]
  %v556 = vld [vmem:[%s539 + $0x80] sm:$0xff]
  %v557 = vld [vmem:[%s539 + $0x88] sm:$0xff]
  %v558 = vld [vmem:[%s539 + $0x90] sm:$0xff]
  %v559 = vld [vmem:[%s539 + $0x98] sm:$0xff]
  %v560 = vld [vmem:[%s539 + $0xa0] sm:$0xff]
  %v561 = vld [vmem:[%s539 + $0xa8] sm:$0xff]
  %v562 = vld [vmem:[%s539 + $0xb0] sm:$0xff]
  %v563 = vld [vmem:[%s539 + $0xb8] sm:$0xff]
  %v564 = vld [vmem:[%s539 + $0xc0] sm:$0xff]
  %v565 = vld [vmem:[%s539 + $0xc8] sm:$0xff]
  %v566 = vld [vmem:[%s539 + $0xd0] sm:$0xff]
  %v567 = vld [vmem:[%s539 + $0xd8] sm:$0xff]
  %v568 = vld [vmem:[%s539 + $0xe0] sm:$0xff]
  %v569 = vld [vmem:[%s539 + $0xe8] sm:$0xff]
  %v570 = vld [vmem:[%s539 + $0xf0] sm:$0xff]
  %v571 = vld [vmem:[%s539 + $0xf8] sm:$0xff]
  %v572 = vld [vmem:[%s539 + $0x100] sm:$0xff]
  %v573 = vld [vmem:[%s539 + $0x108] sm:$0xff]
  %v574 = vld [vmem:[%s539 + $0x110] sm:$0xff]
  %v575 = vld [vmem:[%s539 + $0x118] sm:$0xff]
  %v576 = vld [vmem:[%s539 + $0x120] sm:$0xff]
  %v577 = vld [vmem:[%s539 + $0x128] sm:$0xff]
  %v578 = vld [vmem:[%s539 + $0x130] sm:$0xff]
  %v579 = vld [vmem:[%s539 + $0x138] sm:$0xff]
  %v580 = vld [vmem:[%s539 + $0x140] sm:$0xff]
  %v581 = vld [vmem:[%s539 + $0x148] sm:$0xff]
  %v582 = vld [vmem:[%s539 + $0x150] sm:$0xff]
  %v583 = vld [vmem:[%s539 + $0x158] sm:$0xff]
  %v584 = vld [vmem:[%s539 + $0x160] sm:$0xff]
  %v585 = vld [vmem:[%s539 + $0x168] sm:$0xff]
  %v586 = vld [vmem:[%s539 + $0x170] sm:$0xff]
  %v587 = vld [vmem:[%s539 + $0x178] sm:$0xff]
  %v588 = vld [vmem:[%s539 + $0x180] sm:$0xff]
  %v589 = vld [vmem:[%s539 + $0x188] sm:$0xff]
  %v590 = vld [vmem:[%s539 + $0x190] sm:$0xff]
  %v591 = vld [vmem:[%s539 + $0x198] sm:$0xff]
  %v592 = vld [vmem:[%s539 + $0x1a0] sm:$0xff]
  %v593 = vld [vmem:[%s539 + $0x1a8] sm:$0xff]
  %v594 = vld [vmem:[%s539 + $0x1b0] sm:$0xff]
  %v595 = vld [vmem:[%s539 + $0x1b8] sm:$0xff]
  %v596 = vld [vmem:[%s539 + $0x1c0] sm:$0xff]
  %v597 = vld [vmem:[%s539 + $0x1c8] sm:$0xff]
  %v598 = vld [vmem:[%s539 + $0x1d0] sm:$0xff]
  %v599 = vld [vmem:[%s539 + $0x1d8] sm:$0xff]
  %v600 = vld [vmem:[%s539 + $0x1e0] sm:$0xff]
  %v601 = vld [vmem:[%s539 + $0x1e8] sm:$0xff]
  %v602 = vld [vmem:[%s539 + $0x1f0] sm:$0xff]
  %v603 = vld [vmem:[%s539 + $0x1f8] sm:$0xff]
  %v604 = vld [vmem:[%s539 + $0x200] sm:$0xff]
  %v605 = vld [vmem:[%s539 + $0x208] sm:$0xff]
  %v606 = vld [vmem:[%s539 + $0x210] sm:$0xff]
  %v607 = vld [vmem:[%s539 + $0x218] sm:$0xff]
  %v608 = vld [vmem:[%s539 + $0x220] sm:$0xff]
  %v609 = vld [vmem:[%s539 + $0x228] sm:$0xff]
  %v610 = vld [vmem:[%s539 + $0x230] sm:$0xff]
  %v611 = vld [vmem:[%s539 + $0x238] sm:$0xff]
  %v612 = vld [vmem:[%s539 + $0x240] sm:$0xff]
  %v613 = vld [vmem:[%s539 + $0x248] sm:$0xff]
  %v614 = vld [vmem:[%s539 + $0x250] sm:$0xff]
  %v615 = vld [vmem:[%s539 + $0x258] sm:$0xff]
  %v616 = vld [vmem:[%s539 + $0x260] sm:$0xff]
  %v617 = vld [vmem:[%s539 + $0x268] sm:$0xff]
  %v618 = vld [vmem:[%s539 + $0x270] sm:$0xff]
  %v619 = vld [vmem:[%s539 + $0x278] sm:$0xff]
  %v620 = vld [vmem:[%s539 + $0x280] sm:$0xff]
  %v621 = vld [vmem:[%s539 + $0x288] sm:$0xff]
  %v622 = vld [vmem:[%s539 + $0x290] sm:$0xff]
  %v623 = vld [vmem:[%s539 + $0x298] sm:$0xff]
  %v624 = vld [vmem:[%s539 + $0x2a0] sm:$0xff]
  %v625 = vld [vmem:[%s539 + $0x2a8] sm:$0xff]
  %v626 = vld [vmem:[%s539 + $0x2b0] sm:$0xff]
  %v627 = vld [vmem:[%s539 + $0x2b8] sm:$0xff]
  %v628 = vld [vmem:[%s539 + $0x2c0] sm:$0xff]
  %v629 = vld [vmem:[%s539 + $0x2c8] sm:$0xff]
  %v630 = vld [vmem:[%s539 + $0x2d0] sm:$0xff]
  %v631 = vld [vmem:[%s539 + $0x2d8] sm:$0xff]
  %v632 = vld [vmem:[%s539 + $0x2e0] sm:$0xff]
  %v633 = vld [vmem:[%s539 + $0x2e8] sm:$0xff]
  %v634 = vld [vmem:[%s539 + $0x2f0] sm:$0xff]
  %v635 = vld [vmem:[%s539 + $0x2f8] sm:$0xff]
  %s636 = scalar_lea.vmem %s3, 1
  %v637 = vld [vmem:[%s636] sm:$0x1]
  %v639 = vlaneseq
  %v640 = vshrl.u32 %v639, 7
  %v641 = vsub.s32 0, %v640
  %v642 = vrot.slane %v637, %v641
  %644 = vmatprep.subr.mxu0 0.0
  %645 = vmatpush1.msra.mxu0 %v555
  %646 = vmatprep.subr.mxu0 0.0
  %647 = vmatpush1.msra.mxu0 %v554
  %648 = vmatprep.subr.mxu0 0.0
  %649 = vmatpush1.msra.mxu0 %v553
  %650 = vmatprep.subr.mxu0 0.0
  %651 = vmatpush1.msra.mxu0 %v552
  %652 = vmatprep.subr.mxu0 0.0
  %653 = vmatpush1.msra.mxu0 %v551
  %654 = vmatprep.subr.mxu0 0.0
  %655 = vmatpush1.msra.mxu0 %v550
  %656 = vmatprep.subr.mxu0 0.0
  %657 = vmatpush1.msra.mxu0 %v549
  %658 = vmatprep.subr.mxu0 0.0
  %659 = vmatpush1.msra.mxu0 %v548
  %660 = vmatprep.subr.mxu0 0.0
  %661 = vmatpush1.msra.mxu0 %v547
  %662 = vmatprep.subr.mxu0 0.0
  %663 = vmatpush1.msra.mxu0 %v546
  %664 = vmatprep.subr.mxu0 0.0
  %665 = vmatpush1.msra.mxu0 %v545
  %666 = vmatprep.subr.mxu0 0.0
  %667 = vmatpush1.msra.mxu0 %v544
  %668 = vmatprep.subr.mxu0 0.0
  %669 = vmatpush1.msra.mxu0 %v543
  %670 = vmatprep.subr.mxu0 0.0
  %671 = vmatpush1.msra.mxu0 %v542
  %672 = vmatprep.subr.mxu0 0.0
  %673 = vmatpush1.msra.mxu0 %v541
  %674 = vmatprep.subr.mxu0 0.0
  %675 = vmatpush1.msra.mxu0 %v540
  %676 = vmatprep.subr.mxu0 0.0
  %677 = vmatpush2.msra.mxu0 %v571
  %678 = vmatprep.subr.mxu0 0.0
  %679 = vmatpush2.msra.mxu0 %v570
  %680 = vmatprep.subr.mxu0 0.0
  %681 = vmatpush2.msra.mxu0 %v569
  %682 = vmatprep.subr.mxu0 0.0
  %683 = vmatpush2.msra.mxu0 %v568
  %684 = vmatprep.subr.mxu0 0.0
  %685 = vmatpush2.msra.mxu0 %v567
  %686 = vmatprep.subr.mxu0 0.0
  %687 = vmatpush2.msra.mxu0 %v566
  %688 = vmatprep.subr.mxu0 0.0
  %689 = vmatpush2.msra.mxu0 %v565
  %690 = vmatprep.subr.mxu0 0.0
  %691 = vmatpush2.msra.mxu0 %v564
  %692 = vmatprep.subr.mxu0 0.0
  %693 = vmatpush2.msra.mxu0 %v563
  %694 = vmatprep.subr.mxu0 0.0
  %695 = vmatpush2.msra.mxu0 %v562
  %696 = vmatprep.subr.mxu0 0.0
  %697 = vmatpush2.msra.mxu0 %v561
  %698 = vmatprep.subr.mxu0 0.0
  %699 = vmatpush2.msra.mxu0 %v560
  %700 = vmatprep.subr.mxu0 0.0
  %701 = vmatpush2.msra.mxu0 %v559
  %702 = vmatprep.subr.mxu0 0.0
  %703 = vmatpush2.msra.mxu0 %v558
  %704 = vmatprep.subr.mxu0 0.0
  %705 = vmatpush2.msra.mxu0 %v557
  %706 = vmatprep.subr.mxu0 0.0
  %707 = vmatpush2.msra.mxu0 %v556
  %708 = vmatprep.mubr.f32.mxu0 %v30
  %709 = vmatmul.mubr.f32.gmra.mxu0 %v29
  %v710 = vpop.f32.mrf.mxu0
  %v711 = vadd.f32 %v642, %v710
  %v712 = vpop.f32.mrf.mxu0
  %713 = vdwg.mxu0
  %714 = vmatprep.subr.mxu0 0.0
  %715 = vmatpush1.msra.mxu0 %v587
  %716 = vmatprep.subr.mxu0 0.0
  %717 = vmatpush1.msra.mxu0 %v586
  %718 = vmatprep.subr.mxu0 0.0
  %719 = vmatpush1.msra.mxu0 %v585
  %720 = vmatprep.subr.mxu0 0.0
  %721 = vmatpush1.msra.mxu0 %v584
  %722 = vmatprep.subr.mxu0 0.0
  %723 = vmatpush1.msra.mxu0 %v583
  %724 = vmatprep.subr.mxu0 0.0
  %725 = vmatpush1.msra.mxu0 %v582
  %726 = vmatprep.subr.mxu0 0.0
  %727 = vmatpush1.msra.mxu0 %v581
  %728 = vmatprep.subr.mxu0 0.0
  %729 = vmatpush1.msra.mxu0 %v580
  %730 = vmatprep.subr.mxu0 0.0
  %731 = vmatpush1.msra.mxu0 %v579
  %732 = vmatprep.subr.mxu0 0.0
  %733 = vmatpush1.msra.mxu0 %v578
  %734 = vmatprep.subr.mxu0 0.0
  %735 = vmatpush1.msra.mxu0 %v577
  %736 = vmatprep.subr.mxu0 0.0
  %737 = vmatpush1.msra.mxu0 %v576
  %738 = vmatprep.subr.mxu0 0.0
  %739 = vmatpush1.msra.mxu0 %v575
  %740 = vmatprep.subr.mxu0 0.0
  %741 = vmatpush1.msra.mxu0 %v574
  %742 = vmatprep.subr.mxu0 0.0
  %743 = vmatpush1.msra.mxu0 %v573
  %744 = vmatprep.subr.mxu0 0.0
  %745 = vmatpush1.msra.mxu0 %v572
  %746 = vmatprep.subr.mxu0 0.0
  %747 = vmatpush2.msra.mxu0 %v603
  %748 = vmatprep.subr.mxu0 0.0
  %749 = vmatpush2.msra.mxu0 %v602
  %750 = vmatprep.subr.mxu0 0.0
  %751 = vmatpush2.msra.mxu0 %v601
  %752 = vmatprep.subr.mxu0 0.0
  %753 = vmatpush2.msra.mxu0 %v600
  %754 = vmatprep.subr.mxu0 0.0
  %755 = vmatpush2.msra.mxu0 %v599
  %756 = vmatprep.subr.mxu0 0.0
  %757 = vmatpush2.msra.mxu0 %v598
  %758 = vmatprep.subr.mxu0 0.0
  %759 = vmatpush2.msra.mxu0 %v597
  %760 = vmatprep.subr.mxu0 0.0
  %761 = vmatpush2.msra.mxu0 %v596
  %762 = vmatprep.subr.mxu0 0.0
  %763 = vmatpush2.msra.mxu0 %v595
  %764 = vmatprep.subr.mxu0 0.0
  %765 = vmatpush2.msra.mxu0 %v594
  %766 = vmatprep.subr.mxu0 0.0
  %767 = vmatpush2.msra.mxu0 %v593
  %768 = vmatprep.subr.mxu0 0.0
  %769 = vmatpush2.msra.mxu0 %v592
  %770 = vmatprep.subr.mxu0 0.0
  %771 = vmatpush2.msra.mxu0 %v591
  %772 = vmatprep.subr.mxu0 0.0
  %773 = vmatpush2.msra.mxu0 %v590
  %774 = vmatprep.subr.mxu0 0.0
  %775 = vmatpush2.msra.mxu0 %v589
  %776 = vmatprep.subr.mxu0 0.0
  %777 = vmatpush2.msra.mxu0 %v588
  %778 = vmatprep.mubr.f32.mxu0 %v32
  %779 = vmatmul.mubr.f32.gmra.mxu0 %v31
  %v780 = vpop.f32.mrf.mxu0
  %v781 = vadd.f32 %v711, %v780
  %v782 = vpop.f32.mrf.mxu0
  %783 = vdwg.mxu0
  %784 = vmatprep.subr.mxu0 0.0
  %785 = vmatpush1.msra.mxu0 %v619
  %786 = vmatprep.subr.mxu0 0.0
  %787 = vmatpush1.msra.mxu0 %v618
  %788 = vmatprep.subr.mxu0 0.0
  %789 = vmatpush1.msra.mxu0 %v617
  %790 = vmatprep.subr.mxu0 0.0
  %791 = vmatpush1.msra.mxu0 %v616
  %792 = vmatprep.subr.mxu0 0.0
  %793 = vmatpush1.msra.mxu0 %v615
  %794 = vmatprep.subr.mxu0 0.0
  %795 = vmatpush1.msra.mxu0 %v614
  %796 = vmatprep.subr.mxu0 0.0
  %797 = vmatpush1.msra.mxu0 %v613
  %798 = vmatprep.subr.mxu0 0.0
  %799 = vmatpush1.msra.mxu0 %v612
  %800 = vmatprep.subr.mxu0 0.0
  %801 = vmatpush1.msra.mxu0 %v611
  %802 = vmatprep.subr.mxu0 0.0
  %803 = vmatpush1.msra.mxu0 %v610
  %804 = vmatprep.subr.mxu0 0.0
  %805 = vmatpush1.msra.mxu0 %v609
  %806 = vmatprep.subr.mxu0 0.0
  %807 = vmatpush1.msra.mxu0 %v608
  %808 = vmatprep.subr.mxu0 0.0
  %809 = vmatpush1.msra.mxu0 %v607
  %810 = vmatprep.subr.mxu0 0.0
  %811 = vmatpush1.msra.mxu0 %v606
  %812 = vmatprep.subr.mxu0 0.0
  %813 = vmatpush1.msra.mxu0 %v605
  %814 = vmatprep.subr.mxu0 0.0
  %815 = vmatpush1.msra.mxu0 %v604
  %816 = vmatprep.subr.mxu0 0.0
  %817 = vmatpush2.msra.mxu0 %v635
  %818 = vmatprep.subr.mxu0 0.0
  %819 = vmatpush2.msra.mxu0 %v634
  %820 = vmatprep.subr.mxu0 0.0
  %821 = vmatpush2.msra.mxu0 %v633
  %822 = vmatprep.subr.mxu0 0.0
  %823 = vmatpush2.msra.mxu0 %v632
  %824 = vmatprep.subr.mxu0 0.0
  %825 = vmatpush2.msra.mxu0 %v631
  %826 = vmatprep.subr.mxu0 0.0
  %827 = vmatpush2.msra.mxu0 %v630
  %828 = vmatprep.subr.mxu0 0.0
  %829 = vmatpush2.msra.mxu0 %v629
  %830 = vmatprep.subr.mxu0 0.0
  %831 = vmatpush2.msra.mxu0 %v628
  %832 = vmatprep.subr.mxu0 0.0
  %833 = vmatpush2.msra.mxu0 %v627
  %834 = vmatprep.subr.mxu0 0.0
  %835 = vmatpush2.msra.mxu0 %v626
  %836 = vmatprep.subr.mxu0 0.0
  %837 = vmatpush2.msra.mxu0 %v625
  %838 = vmatprep.subr.mxu0 0.0
  %839 = vmatpush2.msra.mxu0 %v624
  %840 = vmatprep.subr.mxu0 0.0
  %841 = vmatpush2.msra.mxu0 %v623
  %842 = vmatprep.subr.mxu0 0.0
  %843 = vmatpush2.msra.mxu0 %v622
  %844 = vmatprep.subr.mxu0 0.0
  %845 = vmatpush2.msra.mxu0 %v621
  %846 = vmatprep.subr.mxu0 0.0
  %847 = vmatpush2.msra.mxu0 %v620
  %848 = vmatprep.mubr.f32.mxu0 %v34
  %849 = vmatmul.mubr.f32.gmra.mxu0 %v33
  %v850 = vpop.f32.mrf.mxu0
  %v851 = vadd.f32 %v781, %v850
  %v852 = vpop.f32.mrf.mxu0
  %853 = vdwg.mxu0
  %v854 = vmax.f32 %v851, 0.0
  %s855 = scalar_lea.vmem %s4, 32
  %v856 = vld [vmem:[%s855] sm:$0xff]
  %v857 = vld [vmem:[%s855 + $0x8] sm:$0xff]
  %v858 = vld [vmem:[%s855 + $0x10] sm:$0xff]
  %v859 = vld [vmem:[%s855 + $0x18] sm:$0xff]
  %s860 = scalar_lea.vmem %s5, 1
  %v861 = vld [vmem:[%s860] sm:$0x1]
  %v863 = vlaneseq
  %v864 = vshrl.u32 %v863, 7
  %v865 = vsub.s32 0, %v864
  %v866 = vrot.slane %v861, %v865
  %v869 = vsel %vm366, %v854, 0
  %871 = vmatprep.subr.mxu0 0.0
  %872 = vmatpush1.msra.mxu0 0.0
  %873 = vmatprep.subr.mxu0 0.0
  %874 = vmatpush1.msra.mxu0 0.0
  %875 = vmatprep.subr.mxu0 0.0
  %876 = vmatpush1.msra.mxu0 0.0
  %877 = vmatprep.subr.mxu0 0.0
  %878 = vmatpush1.msra.mxu0 0.0
  %879 = vmatprep.subr.mxu0 0.0
  %880 = vmatpush1.msra.mxu0 0.0
  %881 = vmatprep.subr.mxu0 0.0
  %882 = vmatpush1.msra.mxu0 0.0
  %883 = vmatprep.subr.mxu0 0.0
  %884 = vmatpush1.msra.mxu0 0.0
  %885 = vmatprep.subr.mxu0 0.0
  %886 = vmatpush1.msra.mxu0 0.0
  %887 = vmatprep.subr.mxu0 0.0
  %888 = vmatpush1.msra.mxu0 0.0
  %889 = vmatprep.subr.mxu0 0.0
  %890 = vmatpush1.msra.mxu0 0.0
  %891 = vmatprep.subr.mxu0 0.0
  %892 = vmatpush1.msra.mxu0 0.0
  %893 = vmatprep.subr.mxu0 0.0
  %894 = vmatpush1.msra.mxu0 0.0
  %895 = vmatprep.subr.mxu0 0.0
  %896 = vmatpush1.msra.mxu0 %v859
  %897 = vmatprep.subr.mxu0 0.0
  %898 = vmatpush1.msra.mxu0 %v858
  %899 = vmatprep.subr.mxu0 0.0
  %900 = vmatpush1.msra.mxu0 %v857
  %901 = vmatprep.subr.mxu0 0.0
  %902 = vmatpush1.msra.mxu0 %v856
  %903 = vmatprep.subr.mxu0 0.0
  %904 = vmatpush2.msra.mxu0 0.0
  %905 = vmatprep.subr.mxu0 0.0
  %906 = vmatpush2.msra.mxu0 0.0
  %907 = vmatprep.subr.mxu0 0.0
  %908 = vmatpush2.msra.mxu0 0.0
  %909 = vmatprep.subr.mxu0 0.0
  %910 = vmatpush2.msra.mxu0 0.0
  %911 = vmatprep.subr.mxu0 0.0
  %912 = vmatpush2.msra.mxu0 0.0
  %913 = vmatprep.subr.mxu0 0.0
  %914 = vmatpush2.msra.mxu0 0.0
  %915 = vmatprep.subr.mxu0 0.0
  %916 = vmatpush2.msra.mxu0 0.0
  %917 = vmatprep.subr.mxu0 0.0
  %918 = vmatpush2.msra.mxu0 0.0
  %919 = vmatprep.subr.mxu0 0.0
  %920 = vmatpush2.msra.mxu0 0.0
  %921 = vmatprep.subr.mxu0 0.0
  %922 = vmatpush2.msra.mxu0 0.0
  %923 = vmatprep.subr.mxu0 0.0
  %924 = vmatpush2.msra.mxu0 0.0
  %925 = vmatprep.subr.mxu0 0.0
  %926 = vmatpush2.msra.mxu0 0.0
  %927 = vmatprep.subr.mxu0 0.0
  %928 = vmatpush2.msra.mxu0 0.0
  %929 = vmatprep.subr.mxu0 0.0
  %930 = vmatpush2.msra.mxu0 0.0
  %931 = vmatprep.subr.mxu0 0.0
  %932 = vmatpush2.msra.mxu0 0.0
  %933 = vmatprep.subr.mxu0 0.0
  %934 = vmatpush2.msra.mxu0 0.0
  %935 = vmatprep.mubr.f32.mxu0 0.0
  %936 = vmatmul.mubr.f32.gmra.mxu0 %v869
  %v937 = vpop.f32.mrf.mxu0
  %v938 = vadd.f32 %v866, %v937
  %v939 = vpop.f32.mrf.mxu0
  %940 = vdwg.mxu0
  %v941 = vmax.f32 %v938, 0.0
  %s942 = scalar_lea.vmem %s6, 32
  %v943 = vld [vmem:[%s942] sm:$0xff]
  %v944 = vld [vmem:[%s942 + $0x8] sm:$0xff]
  %v945 = vld [vmem:[%s942 + $0x10] sm:$0xff]
  %v946 = vld [vmem:[%s942 + $0x18] sm:$0xff]
  %s947 = scalar_lea.vmem %s7, 1
  %v948 = vld [vmem:[%s947] sm:$0x1]
  %v950 = vlaneseq
  %v951 = vshrl.u32 %v950, 7
  %v952 = vsub.s32 0, %v951
  %v953 = vrot.slane %v948, %v952
  %v956 = vsel %vm366, %v941, 0
  %958 = vmatprep.subr.mxu0 0.0
  %959 = vmatpush1.msra.mxu0 0.0
  %960 = vmatprep.subr.mxu0 0.0
  %961 = vmatpush1.msra.mxu0 0.0
  %962 = vmatprep.subr.mxu0 0.0
  %963 = vmatpush1.msra.mxu0 0.0
  %964 = vmatprep.subr.mxu0 0.0
  %965 = vmatpush1.msra.mxu0 0.0
  %966 = vmatprep.subr.mxu0 0.0
  %967 = vmatpush1.msra.mxu0 0.0
  %968 = vmatprep.subr.mxu0 0.0
  %969 = vmatpush1.msra.mxu0 0.0
  %970 = vmatprep.subr.mxu0 0.0
  %971 = vmatpush1.msra.mxu0 0.0
  %972 = vmatprep.subr.mxu0 0.0
  %973 = vmatpush1.msra.mxu0 0.0
  %974 = vmatprep.subr.mxu0 0.0
  %975 = vmatpush1.msra.mxu0 0.0
  %976 = vmatprep.subr.mxu0 0.0
  %977 = vmatpush1.msra.mxu0 0.0
  %978 = vmatprep.subr.mxu0 0.0
  %979 = vmatpush1.msra.mxu0 0.0
  %980 = vmatprep.subr.mxu0 0.0
  %981 = vmatpush1.msra.mxu0 0.0
  %982 = vmatprep.subr.mxu0 0.0
  %983 = vmatpush1.msra.mxu0 %v946
  %984 = vmatprep.subr.mxu0 0.0
  %985 = vmatpush1.msra.mxu0 %v945
  %986 = vmatprep.subr.mxu0 0.0
  %987 = vmatpush1.msra.mxu0 %v944
  %988 = vmatprep.subr.mxu0 0.0
  %989 = vmatpush1.msra.mxu0 %v943
  %990 = vmatprep.subr.mxu0 0.0
  %991 = vmatpush2.msra.mxu0 0.0
  %992 = vmatprep.subr.mxu0 0.0
  %993 = vmatpush2.msra.mxu0 0.0
  %994 = vmatprep.subr.mxu0 0.0
  %995 = vmatpush2.msra.mxu0 0.0
  %996 = vmatprep.subr.mxu0 0.0
  %997 = vmatpush2.msra.mxu0 0.0
  %998 = vmatprep.subr.mxu0 0.0
  %999 = vmatpush2.msra.mxu0 0.0
  %1000 = vmatprep.subr.mxu0 0.0
  %1001 = vmatpush2.msra.mxu0 0.0
  %1002 = vmatprep.subr.mxu0 0.0
  %1003 = vmatpush2.msra.mxu0 0.0
  %1004 = vmatprep.subr.mxu0 0.0
  %1005 = vmatpush2.msra.mxu0 0.0
  %1006 = vmatprep.subr.mxu0 0.0
  %1007 = vmatpush2.msra.mxu0 0.0
  %1008 = vmatprep.subr.mxu0 0.0
  %1009 = vmatpush2.msra.mxu0 0.0
  %1010 = vmatprep.subr.mxu0 0.0
  %1011 = vmatpush2.msra.mxu0 0.0
  %1012 = vmatprep.subr.mxu0 0.0
  %1013 = vmatpush2.msra.mxu0 0.0
  %1014 = vmatprep.subr.mxu0 0.0
  %1015 = vmatpush2.msra.mxu0 0.0
  %1016 = vmatprep.subr.mxu0 0.0
  %1017 = vmatpush2.msra.mxu0 0.0
  %1018 = vmatprep.subr.mxu0 0.0
  %1019 = vmatpush2.msra.mxu0 0.0
  %1020 = vmatprep.subr.mxu0 0.0
  %1021 = vmatpush2.msra.mxu0 0.0
  %1022 = vmatprep.mubr.f32.mxu0 0.0
  %1023 = vmatmul.mubr.f32.gmra.mxu0 %v956
  %v1024 = vpop.f32.mrf.mxu0
  %v1025 = vadd.f32 %v953, %v1024
  %v1026 = vpop.f32.mrf.mxu0
  %1027 = vdwg.mxu0
  %v1028 = vmul.f32 %v1025, %v1025
  %1029 = vadd.xlane.f32.xlu0 %v1028
  %v1030 = vpop.xlane.xlu0 %1029
  %v1031 = vrsqrt.pop %v1030
  %v1032 = vmul.f32 %v1030, %v1031
  %vm1033 = vcmp.eq.f32.partialorder %v1030, inf
  %v1034 = vsel %vm1033, %v1030, %v1032
  %vm1035 = vcmp.eq.f32.partialorder %v1030, 0.0
  %v1036 = vand.u32 %v1030, 2147483648
  %v1037 = vsel %vm1035, %v1036, %v1034
  %v1038 = vmax.f32 %v1037, 1e-12
  %v1039 = vrcp.pop %v1038
  %v1040 = vmul.f32 %v1025, %v1039
  %s1041 = scalar_lea.vmem %s8, 8
  %1042 = vst [vmem:[%s1041] sm:$0xff] %v1040
  %s1043 = scalar_lea.vmem %s2, 1536
  %v1044 = vld [vmem:[%s1043] sm:$0xff]
  %v1045 = vld [vmem:[%s1043 + $0x8] sm:$0xff]
  %v1046 = vld [vmem:[%s1043 + $0x10] sm:$0xff]
  %v1047 = vld [vmem:[%s1043 + $0x18] sm:$0xff]
  %v1048 = vld [vmem:[%s1043 + $0x20] sm:$0xff]
  %v1049 = vld [vmem:[%s1043 + $0x28] sm:$0xff]
  %v1050 = vld [vmem:[%s1043 + $0x30] sm:$0xff]
  %v1051 = vld [vmem:[%s1043 + $0x38] sm:$0xff]
  %v1052 = vld [vmem:[%s1043 + $0x40] sm:$0xff]
  %v1053 = vld [vmem:[%s1043 + $0x48] sm:$0xff]
  %v1054 = vld [vmem:[%s1043 + $0x50] sm:$0xff]
  %v1055 = vld [vmem:[%s1043 + $0x58] sm:$0xff]
  %v1056 = vld [vmem:[%s1043 + $0x60] sm:$0xff]
  %v1057 = vld [vmem:[%s1043 + $0x68] sm:$0xff]
  %v1058 = vld [vmem:[%s1043 + $0x70] sm:$0xff]
  %v1059 = vld [vmem:[%s1043 + $0x78] sm:$0xff]
  %v1060 = vld [vmem:[%s1043 + $0x80] sm:$0xff]
  %v1061 = vld [vmem:[%s1043 + $0x88] sm:$0xff]
  %v1062 = vld [vmem:[%s1043 + $0x90] sm:$0xff]
  %v1063 = vld [vmem:[%s1043 + $0x98] sm:$0xff]
  %v1064 = vld [vmem:[%s1043 + $0xa0] sm:$0xff]
  %v1065 = vld [vmem:[%s1043 + $0xa8] sm:$0xff]
  %v1066 = vld [vmem:[%s1043 + $0xb0] sm:$0xff]
  %v1067 = vld [vmem:[%s1043 + $0xb8] sm:$0xff]
  %v1068 = vld [vmem:[%s1043 + $0xc0] sm:$0xff]
  %v1069 = vld [vmem:[%s1043 + $0xc8] sm:$0xff]
  %v1070 = vld [vmem:[%s1043 + $0xd0] sm:$0xff]
  %v1071 = vld [vmem:[%s1043 + $0xd8] sm:$0xff]
  %v1072 = vld [vmem:[%s1043 + $0xe0] sm:$0xff]
  %v1073 = vld [vmem:[%s1043 + $0xe8] sm:$0xff]
  %v1074 = vld [vmem:[%s1043 + $0xf0] sm:$0xff]
  %v1075 = vld [vmem:[%s1043 + $0xf8] sm:$0xff]
  %v1076 = vld [vmem:[%s1043 + $0x100] sm:$0xff]
  %v1077 = vld [vmem:[%s1043 + $0x108] sm:$0xff]
  %v1078 = vld [vmem:[%s1043 + $0x110] sm:$0xff]
  %v1079 = vld [vmem:[%s1043 + $0x118] sm:$0xff]
  %v1080 = vld [vmem:[%s1043 + $0x120] sm:$0xff]
  %v1081 = vld [vmem:[%s1043 + $0x128] sm:$0xff]
  %v1082 = vld [vmem:[%s1043 + $0x130] sm:$0xff]
  %v1083 = vld [vmem:[%s1043 + $0x138] sm:$0xff]
  %v1084 = vld [vmem:[%s1043 + $0x140] sm:$0xff]
  %v1085 = vld [vmem:[%s1043 + $0x148] sm:$0xff]
  %v1086 = vld [vmem:[%s1043 + $0x150] sm:$0xff]
  %v1087 = vld [vmem:[%s1043 + $0x158] sm:$0xff]
  %v1088 = vld [vmem:[%s1043 + $0x160] sm:$0xff]
  %v1089 = vld [vmem:[%s1043 + $0x168] sm:$0xff]
  %v1090 = vld [vmem:[%s1043 + $0x170] sm:$0xff]
  %v1091 = vld [vmem:[%s1043 + $0x178] sm:$0xff]
  %v1092 = vld [vmem:[%s1043 + $0x180] sm:$0xff]
  %v1093 = vld [vmem:[%s1043 + $0x188] sm:$0xff]
  %v1094 = vld [vmem:[%s1043 + $0x190] sm:$0xff]
  %v1095 = vld [vmem:[%s1043 + $0x198] sm:$0xff]
  %v1096 = vld [vmem:[%s1043 + $0x1a0] sm:$0xff]
  %v1097 = vld [vmem:[%s1043 + $0x1a8] sm:$0xff]
  %v1098 = vld [vmem:[%s1043 + $0x1b0] sm:$0xff]
  %v1099 = vld [vmem:[%s1043 + $0x1b8] sm:$0xff]
  %v1100 = vld [vmem:[%s1043 + $0x1c0] sm:$0xff]
  %v1101 = vld [vmem:[%s1043 + $0x1c8] sm:$0xff]
  %v1102 = vld [vmem:[%s1043 + $0x1d0] sm:$0xff]
  %v1103 = vld [vmem:[%s1043 + $0x1d8] sm:$0xff]
  %v1104 = vld [vmem:[%s1043 + $0x1e0] sm:$0xff]
  %v1105 = vld [vmem:[%s1043 + $0x1e8] sm:$0xff]
  %v1106 = vld [vmem:[%s1043 + $0x1f0] sm:$0xff]
  %v1107 = vld [vmem:[%s1043 + $0x1f8] sm:$0xff]
  %v1108 = vld [vmem:[%s1043 + $0x200] sm:$0xff]
  %v1109 = vld [vmem:[%s1043 + $0x208] sm:$0xff]
  %v1110 = vld [vmem:[%s1043 + $0x210] sm:$0xff]
  %v1111 = vld [vmem:[%s1043 + $0x218] sm:$0xff]
  %v1112 = vld [vmem:[%s1043 + $0x220] sm:$0xff]
  %v1113 = vld [vmem:[%s1043 + $0x228] sm:$0xff]
  %v1114 = vld [vmem:[%s1043 + $0x230] sm:$0xff]
  %v1115 = vld [vmem:[%s1043 + $0x238] sm:$0xff]
  %v1116 = vld [vmem:[%s1043 + $0x240] sm:$0xff]
  %v1117 = vld [vmem:[%s1043 + $0x248] sm:$0xff]
  %v1118 = vld [vmem:[%s1043 + $0x250] sm:$0xff]
  %v1119 = vld [vmem:[%s1043 + $0x258] sm:$0xff]
  %v1120 = vld [vmem:[%s1043 + $0x260] sm:$0xff]
  %v1121 = vld [vmem:[%s1043 + $0x268] sm:$0xff]
  %v1122 = vld [vmem:[%s1043 + $0x270] sm:$0xff]
  %v1123 = vld [vmem:[%s1043 + $0x278] sm:$0xff]
  %v1124 = vld [vmem:[%s1043 + $0x280] sm:$0xff]
  %v1125 = vld [vmem:[%s1043 + $0x288] sm:$0xff]
  %v1126 = vld [vmem:[%s1043 + $0x290] sm:$0xff]
  %v1127 = vld [vmem:[%s1043 + $0x298] sm:$0xff]
  %v1128 = vld [vmem:[%s1043 + $0x2a0] sm:$0xff]
  %v1129 = vld [vmem:[%s1043 + $0x2a8] sm:$0xff]
  %v1130 = vld [vmem:[%s1043 + $0x2b0] sm:$0xff]
  %v1131 = vld [vmem:[%s1043 + $0x2b8] sm:$0xff]
  %v1132 = vld [vmem:[%s1043 + $0x2c0] sm:$0xff]
  %v1133 = vld [vmem:[%s1043 + $0x2c8] sm:$0xff]
  %v1134 = vld [vmem:[%s1043 + $0x2d0] sm:$0xff]
  %v1135 = vld [vmem:[%s1043 + $0x2d8] sm:$0xff]
  %v1136 = vld [vmem:[%s1043 + $0x2e0] sm:$0xff]
  %v1137 = vld [vmem:[%s1043 + $0x2e8] sm:$0xff]
  %v1138 = vld [vmem:[%s1043 + $0x2f0] sm:$0xff]
  %v1139 = vld [vmem:[%s1043 + $0x2f8] sm:$0xff]
  %s1140 = scalar_lea.vmem %s3, 2
  %v1141 = vld [vmem:[%s1140] sm:$0x1]
  %v1143 = vlaneseq
  %v1144 = vshrl.u32 %v1143, 7
  %v1145 = vsub.s32 0, %v1144
  %v1146 = vrot.slane %v1141, %v1145
  %1148 = vmatprep.subr.mxu0 0.0
  %1149 = vmatpush1.msra.mxu0 %v1059
  %1150 = vmatprep.subr.mxu0 0.0
  %1151 = vmatpush1.msra.mxu0 %v1058
  %1152 = vmatprep.subr.mxu0 0.0
  %1153 = vmatpush1.msra.mxu0 %v1057
  %1154 = vmatprep.subr.mxu0 0.0
  %1155 = vmatpush1.msra.mxu0 %v1056
  %1156 = vmatprep.subr.mxu0 0.0
  %1157 = vmatpush1.msra.mxu0 %v1055
  %1158 = vmatprep.subr.mxu0 0.0
  %1159 = vmatpush1.msra.mxu0 %v1054
  %1160 = vmatprep.subr.mxu0 0.0
  %1161 = vmatpush1.msra.mxu0 %v1053
  %1162 = vmatprep.subr.mxu0 0.0
  %1163 = vmatpush1.msra.mxu0 %v1052
  %1164 = vmatprep.subr.mxu0 0.0
  %1165 = vmatpush1.msra.mxu0 %v1051
  %1166 = vmatprep.subr.mxu0 0.0
  %1167 = vmatpush1.msra.mxu0 %v1050
  %1168 = vmatprep.subr.mxu0 0.0
  %1169 = vmatpush1.msra.mxu0 %v1049
  %1170 = vmatprep.subr.mxu0 0.0
  %1171 = vmatpush1.msra.mxu0 %v1048
  %1172 = vmatprep.subr.mxu0 0.0
  %1173 = vmatpush1.msra.mxu0 %v1047
  %1174 = vmatprep.subr.mxu0 0.0
  %1175 = vmatpush1.msra.mxu0 %v1046
  %1176 = vmatprep.subr.mxu0 0.0
  %1177 = vmatpush1.msra.mxu0 %v1045
  %1178 = vmatprep.subr.mxu0 0.0
  %1179 = vmatpush1.msra.mxu0 %v1044
  %1180 = vmatprep.subr.mxu0 0.0
  %1181 = vmatpush2.msra.mxu0 %v1075
  %1182 = vmatprep.subr.mxu0 0.0
  %1183 = vmatpush2.msra.mxu0 %v1074
  %1184 = vmatprep.subr.mxu0 0.0
  %1185 = vmatpush2.msra.mxu0 %v1073
  %1186 = vmatprep.subr.mxu0 0.0
  %1187 = vmatpush2.msra.mxu0 %v1072
  %1188 = vmatprep.subr.mxu0 0.0
  %1189 = vmatpush2.msra.mxu0 %v1071
  %1190 = vmatprep.subr.mxu0 0.0
  %1191 = vmatpush2.msra.mxu0 %v1070
  %1192 = vmatprep.subr.mxu0 0.0
  %1193 = vmatpush2.msra.mxu0 %v1069
  %1194 = vmatprep.subr.mxu0 0.0
  %1195 = vmatpush2.msra.mxu0 %v1068
  %1196 = vmatprep.subr.mxu0 0.0
  %1197 = vmatpush2.msra.mxu0 %v1067
  %1198 = vmatprep.subr.mxu0 0.0
  %1199 = vmatpush2.msra.mxu0 %v1066
  %1200 = vmatprep.subr.mxu0 0.0
  %1201 = vmatpush2.msra.mxu0 %v1065
  %1202 = vmatprep.subr.mxu0 0.0
  %1203 = vmatpush2.msra.mxu0 %v1064
  %1204 = vmatprep.subr.mxu0 0.0
  %1205 = vmatpush2.msra.mxu0 %v1063
  %1206 = vmatprep.subr.mxu0 0.0
  %1207 = vmatpush2.msra.mxu0 %v1062
  %1208 = vmatprep.subr.mxu0 0.0
  %1209 = vmatpush2.msra.mxu0 %v1061
  %1210 = vmatprep.subr.mxu0 0.0
  %1211 = vmatpush2.msra.mxu0 %v1060
  %1212 = vmatprep.mubr.f32.mxu0 %v36
  %1213 = vmatmul.mubr.f32.gmra.mxu0 %v35
  %v1214 = vpop.f32.mrf.mxu0
  %v1215 = vadd.f32 %v1146, %v1214
  %v1216 = vpop.f32.mrf.mxu0
  %1217 = vdwg.mxu0
  %1218 = vmatprep.subr.mxu0 0.0
  %1219 = vmatpush1.msra.mxu0 %v1091
  %1220 = vmatprep.subr.mxu0 0.0
  %1221 = vmatpush1.msra.mxu0 %v1090
  %1222 = vmatprep.subr.mxu0 0.0
  %1223 = vmatpush1.msra.mxu0 %v1089
  %1224 = vmatprep.subr.mxu0 0.0
  %1225 = vmatpush1.msra.mxu0 %v1088
  %1226 = vmatprep.subr.mxu0 0.0
  %1227 = vmatpush1.msra.mxu0 %v1087
  %1228 = vmatprep.subr.mxu0 0.0
  %1229 = vmatpush1.msra.mxu0 %v1086
  %1230 = vmatprep.subr.mxu0 0.0
  %1231 = vmatpush1.msra.mxu0 %v1085
  %1232 = vmatprep.subr.mxu0 0.0
  %1233 = vmatpush1.msra.mxu0 %v1084
  %1234 = vmatprep.subr.mxu0 0.0
  %1235 = vmatpush1.msra.mxu0 %v1083
  %1236 = vmatprep.subr.mxu0 0.0
  %1237 = vmatpush1.msra.mxu0 %v1082
  %1238 = vmatprep.subr.mxu0 0.0
  %1239 = vmatpush1.msra.mxu0 %v1081
  %1240 = vmatprep.subr.mxu0 0.0
  %1241 = vmatpush1.msra.mxu0 %v1080
  %1242 = vmatprep.subr.mxu0 0.0
  %1243 = vmatpush1.msra.mxu0 %v1079
  %1244 = vmatprep.subr.mxu0 0.0
  %1245 = vmatpush1.msra.mxu0 %v1078
  %1246 = vmatprep.subr.mxu0 0.0
  %1247 = vmatpush1.msra.mxu0 %v1077
  %1248 = vmatprep.subr.mxu0 0.0
  %1249 = vmatpush1.msra.mxu0 %v1076
  %1250 = vmatprep.subr.mxu0 0.0
  %1251 = vmatpush2.msra.mxu0 %v1107
  %1252 = vmatprep.subr.mxu0 0.0
  %1253 = vmatpush2.msra.mxu0 %v1106
  %1254 = vmatprep.subr.mxu0 0.0
  %1255 = vmatpush2.msra.mxu0 %v1105
  %1256 = vmatprep.subr.mxu0 0.0
  %1257 = vmatpush2.msra.mxu0 %v1104
  %1258 = vmatprep.subr.mxu0 0.0
  %1259 = vmatpush2.msra.mxu0 %v1103
  %1260 = vmatprep.subr.mxu0 0.0
  %1261 = vmatpush2.msra.mxu0 %v1102
  %1262 = vmatprep.subr.mxu0 0.0
  %1263 = vmatpush2.msra.mxu0 %v1101
  %1264 = vmatprep.subr.mxu0 0.0
  %1265 = vmatpush2.msra.mxu0 %v1100
  %1266 = vmatprep.subr.mxu0 0.0
  %1267 = vmatpush2.msra.mxu0 %v1099
  %1268 = vmatprep.subr.mxu0 0.0
  %1269 = vmatpush2.msra.mxu0 %v1098
  %1270 = vmatprep.subr.mxu0 0.0
  %1271 = vmatpush2.msra.mxu0 %v1097
  %1272 = vmatprep.subr.mxu0 0.0
  %1273 = vmatpush2.msra.mxu0 %v1096
  %1274 = vmatprep.subr.mxu0 0.0
  %1275 = vmatpush2.msra.mxu0 %v1095
  %1276 = vmatprep.subr.mxu0 0.0
  %1277 = vmatpush2.msra.mxu0 %v1094
  %1278 = vmatprep.subr.mxu0 0.0
  %1279 = vmatpush2.msra.mxu0 %v1093
  %1280 = vmatprep.subr.mxu0 0.0
  %1281 = vmatpush2.msra.mxu0 %v1092
  %1282 = vmatprep.mubr.f32.mxu0 %v38
  %1283 = vmatmul.mubr.f32.gmra.mxu0 %v37
  %v1284 = vpop.f32.mrf.mxu0
  %v1285 = vadd.f32 %v1215, %v1284
  %v1286 = vpop.f32.mrf.mxu0
  %1287 = vdwg.mxu0
  %1288 = vmatprep.subr.mxu0 0.0
  %1289 = vmatpush1.msra.mxu0 %v1123
  %1290 = vmatprep.subr.mxu0 0.0
  %1291 = vmatpush1.msra.mxu0 %v1122
  %1292 = vmatprep.subr.mxu0 0.0
  %1293 = vmatpush1.msra.mxu0 %v1121
  %1294 = vmatprep.subr.mxu0 0.0
  %1295 = vmatpush1.msra.mxu0 %v1120
  %1296 = vmatprep.subr.mxu0 0.0
  %1297 = vmatpush1.msra.mxu0 %v1119
  %1298 = vmatprep.subr.mxu0 0.0
  %1299 = vmatpush1.msra.mxu0 %v1118
  %1300 = vmatprep.subr.mxu0 0.0
  %1301 = vmatpush1.msra.mxu0 %v1117
  %1302 = vmatprep.subr.mxu0 0.0
  %1303 = vmatpush1.msra.mxu0 %v1116
  %1304 = vmatprep.subr.mxu0 0.0
  %1305 = vmatpush1.msra.mxu0 %v1115
  %1306 = vmatprep.subr.mxu0 0.0
  %1307 = vmatpush1.msra.mxu0 %v1114
  %1308 = vmatprep.subr.mxu0 0.0
  %1309 = vmatpush1.msra.mxu0 %v1113
  %1310 = vmatprep.subr.mxu0 0.0
  %1311 = vmatpush1.msra.mxu0 %v1112
  %1312 = vmatprep.subr.mxu0 0.0
  %1313 = vmatpush1.msra.mxu0 %v1111
  %1314 = vmatprep.subr.mxu0 0.0
  %1315 = vmatpush1.msra.mxu0 %v1110
  %1316 = vmatprep.subr.mxu0 0.0
  %1317 = vmatpush1.msra.mxu0 %v1109
  %1318 = vmatprep.subr.mxu0 0.0
  %1319 = vmatpush1.msra.mxu0 %v1108
  %1320 = vmatprep.subr.mxu0 0.0
  %1321 = vmatpush2.msra.mxu0 %v1139
  %1322 = vmatprep.subr.mxu0 0.0
  %1323 = vmatpush2.msra.mxu0 %v1138
  %1324 = vmatprep.subr.mxu0 0.0
  %1325 = vmatpush2.msra.mxu0 %v1137
  %1326 = vmatprep.subr.mxu0 0.0
  %1327 = vmatpush2.msra.mxu0 %v1136
  %1328 = vmatprep.subr.mxu0 0.0
  %1329 = vmatpush2.msra.mxu0 %v1135
  %1330 = vmatprep.subr.mxu0 0.0
  %1331 = vmatpush2.msra.mxu0 %v1134
  %1332 = vmatprep.subr.mxu0 0.0
  %1333 = vmatpush2.msra.mxu0 %v1133
  %1334 = vmatprep.subr.mxu0 0.0
  %1335 = vmatpush2.msra.mxu0 %v1132
  %1336 = vmatprep.subr.mxu0 0.0
  %1337 = vmatpush2.msra.mxu0 %v1131
  %1338 = vmatprep.subr.mxu0 0.0
  %1339 = vmatpush2.msra.mxu0 %v1130
  %1340 = vmatprep.subr.mxu0 0.0
  %1341 = vmatpush2.msra.mxu0 %v1129
  %1342 = vmatprep.subr.mxu0 0.0
  %1343 = vmatpush2.msra.mxu0 %v1128
  %1344 = vmatprep.subr.mxu0 0.0
  %1345 = vmatpush2.msra.mxu0 %v1127
  %1346 = vmatprep.subr.mxu0 0.0
  %1347 = vmatpush2.msra.mxu0 %v1126
  %1348 = vmatprep.subr.mxu0 0.0
  %1349 = vmatpush2.msra.mxu0 %v1125
  %1350 = vmatprep.subr.mxu0 0.0
  %1351 = vmatpush2.msra.mxu0 %v1124
  %1352 = vmatprep.mubr.f32.mxu0 %v40
  %1353 = vmatmul.mubr.f32.gmra.mxu0 %v39
  %v1354 = vpop.f32.mrf.mxu0
  %v1355 = vadd.f32 %v1285, %v1354
  %v1356 = vpop.f32.mrf.mxu0
  %1357 = vdwg.mxu0
  %v1358 = vmax.f32 %v1355, 0.0
  %s1359 = scalar_lea.vmem %s4, 64
  %v1360 = vld [vmem:[%s1359] sm:$0xff]
  %v1361 = vld [vmem:[%s1359 + $0x8] sm:$0xff]
  %v1362 = vld [vmem:[%s1359 + $0x10] sm:$0xff]
  %v1363 = vld [vmem:[%s1359 + $0x18] sm:$0xff]
  %s1364 = scalar_lea.vmem %s5, 2
  %v1365 = vld [vmem:[%s1364] sm:$0x1]
  %v1367 = vlaneseq
  %v1368 = vshrl.u32 %v1367, 7
  %v1369 = vsub.s32 0, %v1368
  %v1370 = vrot.slane %v1365, %v1369
  %v1373 = vsel %vm366, %v1358, 0
  %1375 = vmatprep.subr.mxu0 0.0
  %1376 = vmatpush1.msra.mxu0 0.0
  %1377 = vmatprep.subr.mxu0 0.0
  %1378 = vmatpush1.msra.mxu0 0.0
  %1379 = vmatprep.subr.mxu0 0.0
  %1380 = vmatpush1.msra.mxu0 0.0
  %1381 = vmatprep.subr.mxu0 0.0
  %1382 = vmatpush1.msra.mxu0 0.0
  %1383 = vmatprep.subr.mxu0 0.0
  %1384 = vmatpush1.msra.mxu0 0.0
  %1385 = vmatprep.subr.mxu0 0.0
  %1386 = vmatpush1.msra.mxu0 0.0
  %1387 = vmatprep.subr.mxu0 0.0
  %1388 = vmatpush1.msra.mxu0 0.0
  %1389 = vmatprep.subr.mxu0 0.0
  %1390 = vmatpush1.msra.mxu0 0.0
  %1391 = vmatprep.subr.mxu0 0.0
  %1392 = vmatpush1.msra.mxu0 0.0
  %1393 = vmatprep.subr.mxu0 0.0
  %1394 = vmatpush1.msra.mxu0 0.0
  %1395 = vmatprep.subr.mxu0 0.0
  %1396 = vmatpush1.msra.mxu0 0.0
  %1397 = vmatprep.subr.mxu0 0.0
  %1398 = vmatpush1.msra.mxu0 0.0
  %1399 = vmatprep.subr.mxu0 0.0
  %1400 = vmatpush1.msra.mxu0 %v1363
  %1401 = vmatprep.subr.mxu0 0.0
  %1402 = vmatpush1.msra.mxu0 %v1362
  %1403 = vmatprep.subr.mxu0 0.0
  %1404 = vmatpush1.msra.mxu0 %v1361
  %1405 = vmatprep.subr.mxu0 0.0
  %1406 = vmatpush1.msra.mxu0 %v1360
  %1407 = vmatprep.subr.mxu0 0.0
  %1408 = vmatpush2.msra.mxu0 0.0
  %1409 = vmatprep.subr.mxu0 0.0
  %1410 = vmatpush2.msra.mxu0 0.0
  %1411 = vmatprep.subr.mxu0 0.0
  %1412 = vmatpush2.msra.mxu0 0.0
  %1413 = vmatprep.subr.mxu0 0.0
  %1414 = vmatpush2.msra.mxu0 0.0
  %1415 = vmatprep.subr.mxu0 0.0
  %1416 = vmatpush2.msra.mxu0 0.0
  %1417 = vmatprep.subr.mxu0 0.0
  %1418 = vmatpush2.msra.mxu0 0.0
  %1419 = vmatprep.subr.mxu0 0.0
  %1420 = vmatpush2.msra.mxu0 0.0
  %1421 = vmatprep.subr.mxu0 0.0
  %1422 = vmatpush2.msra.mxu0 0.0
  %1423 = vmatprep.subr.mxu0 0.0
  %1424 = vmatpush2.msra.mxu0 0.0
  %1425 = vmatprep.subr.mxu0 0.0
  %1426 = vmatpush2.msra.mxu0 0.0
  %1427 = vmatprep.subr.mxu0 0.0
  %1428 = vmatpush2.msra.mxu0 0.0
  %1429 = vmatprep.subr.mxu0 0.0
  %1430 = vmatpush2.msra.mxu0 0.0
  %1431 = vmatprep.subr.mxu0 0.0
  %1432 = vmatpush2.msra.mxu0 0.0
  %1433 = vmatprep.subr.mxu0 0.0
  %1434 = vmatpush2.msra.mxu0 0.0
  %1435 = vmatprep.subr.mxu0 0.0
  %1436 = vmatpush2.msra.mxu0 0.0
  %1437 = vmatprep.subr.mxu0 0.0
  %1438 = vmatpush2.msra.mxu0 0.0
  %1439 = vmatprep.mubr.f32.mxu0 0.0
  %1440 = vmatmul.mubr.f32.gmra.mxu0 %v1373
  %v1441 = vpop.f32.mrf.mxu0
  %v1442 = vadd.f32 %v1370, %v1441
  %v1443 = vpop.f32.mrf.mxu0
  %1444 = vdwg.mxu0
  %v1445 = vmax.f32 %v1442, 0.0
  %s1446 = scalar_lea.vmem %s6, 64
  %v1447 = vld [vmem:[%s1446] sm:$0xff]
  %v1448 = vld [vmem:[%s1446 + $0x8] sm:$0xff]
  %v1449 = vld [vmem:[%s1446 + $0x10] sm:$0xff]
  %v1450 = vld [vmem:[%s1446 + $0x18] sm:$0xff]
  %s1451 = scalar_lea.vmem %s7, 2
  %v1452 = vld [vmem:[%s1451] sm:$0x1]
  %v1454 = vlaneseq
  %v1455 = vshrl.u32 %v1454, 7
  %v1456 = vsub.s32 0, %v1455
  %v1457 = vrot.slane %v1452, %v1456
  %v1460 = vsel %vm366, %v1445, 0
  %1462 = vmatprep.subr.mxu0 0.0
  %1463 = vmatpush1.msra.mxu0 0.0
  %1464 = vmatprep.subr.mxu0 0.0
  %1465 = vmatpush1.msra.mxu0 0.0
  %1466 = vmatprep.subr.mxu0 0.0
  %1467 = vmatpush1.msra.mxu0 0.0
  %1468 = vmatprep.subr.mxu0 0.0
  %1469 = vmatpush1.msra.mxu0 0.0
  %1470 = vmatprep.subr.mxu0 0.0
  %1471 = vmatpush1.msra.mxu0 0.0
  %1472 = vmatprep.subr.mxu0 0.0
  %1473 = vmatpush1.msra.mxu0 0.0
  %1474 = vmatprep.subr.mxu0 0.0
  %1475 = vmatpush1.msra.mxu0 0.0
  %1476 = vmatprep.subr.mxu0 0.0
  %1477 = vmatpush1.msra.mxu0 0.0
  %1478 = vmatprep.subr.mxu0 0.0
  %1479 = vmatpush1.msra.mxu0 0.0
  %1480 = vmatprep.subr.mxu0 0.0
  %1481 = vmatpush1.msra.mxu0 0.0
  %1482 = vmatprep.subr.mxu0 0.0
  %1483 = vmatpush1.msra.mxu0 0.0
  %1484 = vmatprep.subr.mxu0 0.0
  %1485 = vmatpush1.msra.mxu0 0.0
  %1486 = vmatprep.subr.mxu0 0.0
  %1487 = vmatpush1.msra.mxu0 %v1450
  %1488 = vmatprep.subr.mxu0 0.0
  %1489 = vmatpush1.msra.mxu0 %v1449
  %1490 = vmatprep.subr.mxu0 0.0
  %1491 = vmatpush1.msra.mxu0 %v1448
  %1492 = vmatprep.subr.mxu0 0.0
  %1493 = vmatpush1.msra.mxu0 %v1447
  %1494 = vmatprep.subr.mxu0 0.0
  %1495 = vmatpush2.msra.mxu0 0.0
  %1496 = vmatprep.subr.mxu0 0.0
  %1497 = vmatpush2.msra.mxu0 0.0
  %1498 = vmatprep.subr.mxu0 0.0
  %1499 = vmatpush2.msra.mxu0 0.0
  %1500 = vmatprep.subr.mxu0 0.0
  %1501 = vmatpush2.msra.mxu0 0.0
  %1502 = vmatprep.subr.mxu0 0.0
  %1503 = vmatpush2.msra.mxu0 0.0
  %1504 = vmatprep.subr.mxu0 0.0
  %1505 = vmatpush2.msra.mxu0 0.0
  %1506 = vmatprep.subr.mxu0 0.0
  %1507 = vmatpush2.msra.mxu0 0.0
  %1508 = vmatprep.subr.mxu0 0.0
  %1509 = vmatpush2.msra.mxu0 0.0
  %1510 = vmatprep.subr.mxu0 0.0
  %1511 = vmatpush2.msra.mxu0 0.0
  %1512 = vmatprep.subr.mxu0 0.0
  %1513 = vmatpush2.msra.mxu0 0.0
  %1514 = vmatprep.subr.mxu0 0.0
  %1515 = vmatpush2.msra.mxu0 0.0
  %1516 = vmatprep.subr.mxu0 0.0
  %1517 = vmatpush2.msra.mxu0 0.0
  %1518 = vmatprep.subr.mxu0 0.0
  %1519 = vmatpush2.msra.mxu0 0.0
  %1520 = vmatprep.subr.mxu0 0.0
  %1521 = vmatpush2.msra.mxu0 0.0
  %1522 = vmatprep.subr.mxu0 0.0
  %1523 = vmatpush2.msra.mxu0 0.0
  %1524 = vmatprep.subr.mxu0 0.0
  %1525 = vmatpush2.msra.mxu0 0.0
  %1526 = vmatprep.mubr.f32.mxu0 0.0
  %1527 = vmatmul.mubr.f32.gmra.mxu0 %v1460
  %v1528 = vpop.f32.mrf.mxu0
  %v1529 = vadd.f32 %v1457, %v1528
  %v1530 = vpop.f32.mrf.mxu0
  %1531 = vdwg.mxu0
  %v1532 = vmul.f32 %v1529, %v1529
  %1533 = vadd.xlane.f32.xlu0 %v1532
  %v1534 = vpop.xlane.xlu0 %1533
  %v1535 = vrsqrt.pop %v1534
  %v1536 = vmul.f32 %v1534, %v1535
  %vm1537 = vcmp.eq.f32.partialorder %v1534, inf
  %v1538 = vsel %vm1537, %v1534, %v1536
  %vm1539 = vcmp.eq.f32.partialorder %v1534, 0.0
  %v1540 = vand.u32 %v1534, 2147483648
  %v1541 = vsel %vm1539, %v1540, %v1538
  %v1542 = vmax.f32 %v1541, 1e-12
  %v1543 = vrcp.pop %v1542
  %v1544 = vmul.f32 %v1529, %v1543
  %s1545 = scalar_lea.vmem %s8, 16
  %1546 = vst [vmem:[%s1545] sm:$0xff] %v1544
  %s1547 = scalar_lea.vmem %s2, 2304
  %v1548 = vld [vmem:[%s1547] sm:$0xff]
  %v1549 = vld [vmem:[%s1547 + $0x8] sm:$0xff]
  %v1550 = vld [vmem:[%s1547 + $0x10] sm:$0xff]
  %v1551 = vld [vmem:[%s1547 + $0x18] sm:$0xff]
  %v1552 = vld [vmem:[%s1547 + $0x20] sm:$0xff]
  %v1553 = vld [vmem:[%s1547 + $0x28] sm:$0xff]
  %v1554 = vld [vmem:[%s1547 + $0x30] sm:$0xff]
  %v1555 = vld [vmem:[%s1547 + $0x38] sm:$0xff]
  %v1556 = vld [vmem:[%s1547 + $0x40] sm:$0xff]
  %v1557 = vld [vmem:[%s1547 + $0x48] sm:$0xff]
  %v1558 = vld [vmem:[%s1547 + $0x50] sm:$0xff]
  %v1559 = vld [vmem:[%s1547 + $0x58] sm:$0xff]
  %v1560 = vld [vmem:[%s1547 + $0x60] sm:$0xff]
  %v1561 = vld [vmem:[%s1547 + $0x68] sm:$0xff]
  %v1562 = vld [vmem:[%s1547 + $0x70] sm:$0xff]
  %v1563 = vld [vmem:[%s1547 + $0x78] sm:$0xff]
  %v1564 = vld [vmem:[%s1547 + $0x80] sm:$0xff]
  %v1565 = vld [vmem:[%s1547 + $0x88] sm:$0xff]
  %v1566 = vld [vmem:[%s1547 + $0x90] sm:$0xff]
  %v1567 = vld [vmem:[%s1547 + $0x98] sm:$0xff]
  %v1568 = vld [vmem:[%s1547 + $0xa0] sm:$0xff]
  %v1569 = vld [vmem:[%s1547 + $0xa8] sm:$0xff]
  %v1570 = vld [vmem:[%s1547 + $0xb0] sm:$0xff]
  %v1571 = vld [vmem:[%s1547 + $0xb8] sm:$0xff]
  %v1572 = vld [vmem:[%s1547 + $0xc0] sm:$0xff]
  %v1573 = vld [vmem:[%s1547 + $0xc8] sm:$0xff]
  %v1574 = vld [vmem:[%s1547 + $0xd0] sm:$0xff]
  %v1575 = vld [vmem:[%s1547 + $0xd8] sm:$0xff]
  %v1576 = vld [vmem:[%s1547 + $0xe0] sm:$0xff]
  %v1577 = vld [vmem:[%s1547 + $0xe8] sm:$0xff]
  %v1578 = vld [vmem:[%s1547 + $0xf0] sm:$0xff]
  %v1579 = vld [vmem:[%s1547 + $0xf8] sm:$0xff]
  %v1580 = vld [vmem:[%s1547 + $0x100] sm:$0xff]
  %v1581 = vld [vmem:[%s1547 + $0x108] sm:$0xff]
  %v1582 = vld [vmem:[%s1547 + $0x110] sm:$0xff]
  %v1583 = vld [vmem:[%s1547 + $0x118] sm:$0xff]
  %v1584 = vld [vmem:[%s1547 + $0x120] sm:$0xff]
  %v1585 = vld [vmem:[%s1547 + $0x128] sm:$0xff]
  %v1586 = vld [vmem:[%s1547 + $0x130] sm:$0xff]
  %v1587 = vld [vmem:[%s1547 + $0x138] sm:$0xff]
  %v1588 = vld [vmem:[%s1547 + $0x140] sm:$0xff]
  %v1589 = vld [vmem:[%s1547 + $0x148] sm:$0xff]
  %v1590 = vld [vmem:[%s1547 + $0x150] sm:$0xff]
  %v1591 = vld [vmem:[%s1547 + $0x158] sm:$0xff]
  %v1592 = vld [vmem:[%s1547 + $0x160] sm:$0xff]
  %v1593 = vld [vmem:[%s1547 + $0x168] sm:$0xff]
  %v1594 = vld [vmem:[%s1547 + $0x170] sm:$0xff]
  %v1595 = vld [vmem:[%s1547 + $0x178] sm:$0xff]
  %v1596 = vld [vmem:[%s1547 + $0x180] sm:$0xff]
  %v1597 = vld [vmem:[%s1547 + $0x188] sm:$0xff]
  %v1598 = vld [vmem:[%s1547 + $0x190] sm:$0xff]
  %v1599 = vld [vmem:[%s1547 + $0x198] sm:$0xff]
  %v1600 = vld [vmem:[%s1547 + $0x1a0] sm:$0xff]
  %v1601 = vld [vmem:[%s1547 + $0x1a8] sm:$0xff]
  %v1602 = vld [vmem:[%s1547 + $0x1b0] sm:$0xff]
  %v1603 = vld [vmem:[%s1547 + $0x1b8] sm:$0xff]
  %v1604 = vld [vmem:[%s1547 + $0x1c0] sm:$0xff]
  %v1605 = vld [vmem:[%s1547 + $0x1c8] sm:$0xff]
  %v1606 = vld [vmem:[%s1547 + $0x1d0] sm:$0xff]
  %v1607 = vld [vmem:[%s1547 + $0x1d8] sm:$0xff]
  %v1608 = vld [vmem:[%s1547 + $0x1e0] sm:$0xff]
  %v1609 = vld [vmem:[%s1547 + $0x1e8] sm:$0xff]
  %v1610 = vld [vmem:[%s1547 + $0x1f0] sm:$0xff]
  %v1611 = vld [vmem:[%s1547 + $0x1f8] sm:$0xff]
  %v1612 = vld [vmem:[%s1547 + $0x200] sm:$0xff]
  %v1613 = vld [vmem:[%s1547 + $0x208] sm:$0xff]
  %v1614 = vld [vmem:[%s1547 + $0x210] sm:$0xff]
  %v1615 = vld [vmem:[%s1547 + $0x218] sm:$0xff]
  %v1616 = vld [vmem:[%s1547 + $0x220] sm:$0xff]
  %v1617 = vld [vmem:[%s1547 + $0x228] sm:$0xff]
  %v1618 = vld [vmem:[%s1547 + $0x230] sm:$0xff]
  %v1619 = vld [vmem:[%s1547 + $0x238] sm:$0xff]
  %v1620 = vld [vmem:[%s1547 + $0x240] sm:$0xff]
  %v1621 = vld [vmem:[%s1547 + $0x248] sm:$0xff]
  %v1622 = vld [vmem:[%s1547 + $0x250] sm:$0xff]
  %v1623 = vld [vmem:[%s1547 + $0x258] sm:$0xff]
  %v1624 = vld [vmem:[%s1547 + $0x260] sm:$0xff]
  %v1625 = vld [vmem:[%s1547 + $0x268] sm:$0xff]
  %v1626 = vld [vmem:[%s1547 + $0x270] sm:$0xff]
  %v1627 = vld [vmem:[%s1547 + $0x278] sm:$0xff]
  %v1628 = vld [vmem:[%s1547 + $0x280] sm:$0xff]
  %v1629 = vld [vmem:[%s1547 + $0x288] sm:$0xff]
  %v1630 = vld [vmem:[%s1547 + $0x290] sm:$0xff]
  %v1631 = vld [vmem:[%s1547 + $0x298] sm:$0xff]
  %v1632 = vld [vmem:[%s1547 + $0x2a0] sm:$0xff]
  %v1633 = vld [vmem:[%s1547 + $0x2a8] sm:$0xff]
  %v1634 = vld [vmem:[%s1547 + $0x2b0] sm:$0xff]
  %v1635 = vld [vmem:[%s1547 + $0x2b8] sm:$0xff]
  %v1636 = vld [vmem:[%s1547 + $0x2c0] sm:$0xff]
  %v1637 = vld [vmem:[%s1547 + $0x2c8] sm:$0xff]
  %v1638 = vld [vmem:[%s1547 + $0x2d0] sm:$0xff]
  %v1639 = vld [vmem:[%s1547 + $0x2d8] sm:$0xff]
  %v1640 = vld [vmem:[%s1547 + $0x2e0] sm:$0xff]
  %v1641 = vld [vmem:[%s1547 + $0x2e8] sm:$0xff]
  %v1642 = vld [vmem:[%s1547 + $0x2f0] sm:$0xff]
  %v1643 = vld [vmem:[%s1547 + $0x2f8] sm:$0xff]
  %s1644 = scalar_lea.vmem %s3, 3
  %v1645 = vld [vmem:[%s1644] sm:$0x1]
  %v1647 = vlaneseq
  %v1648 = vshrl.u32 %v1647, 7
  %v1649 = vsub.s32 0, %v1648
  %v1650 = vrot.slane %v1645, %v1649
  %1652 = vmatprep.subr.mxu0 0.0
  %1653 = vmatpush1.msra.mxu0 %v1563
  %1654 = vmatprep.subr.mxu0 0.0
  %1655 = vmatpush1.msra.mxu0 %v1562
  %1656 = vmatprep.subr.mxu0 0.0
  %1657 = vmatpush1.msra.mxu0 %v1561
  %1658 = vmatprep.subr.mxu0 0.0
  %1659 = vmatpush1.msra.mxu0 %v1560
  %1660 = vmatprep.subr.mxu0 0.0
  %1661 = vmatpush1.msra.mxu0 %v1559
  %1662 = vmatprep.subr.mxu0 0.0
  %1663 = vmatpush1.msra.mxu0 %v1558
  %1664 = vmatprep.subr.mxu0 0.0
  %1665 = vmatpush1.msra.mxu0 %v1557
  %1666 = vmatprep.subr.mxu0 0.0
  %1667 = vmatpush1.msra.mxu0 %v1556
  %1668 = vmatprep.subr.mxu0 0.0
  %1669 = vmatpush1.msra.mxu0 %v1555
  %1670 = vmatprep.subr.mxu0 0.0
  %1671 = vmatpush1.msra.mxu0 %v1554
  %1672 = vmatprep.subr.mxu0 0.0
  %1673 = vmatpush1.msra.mxu0 %v1553
  %1674 = vmatprep.subr.mxu0 0.0
  %1675 = vmatpush1.msra.mxu0 %v1552
  %1676 = vmatprep.subr.mxu0 0.0
  %1677 = vmatpush1.msra.mxu0 %v1551
  %1678 = vmatprep.subr.mxu0 0.0
  %1679 = vmatpush1.msra.mxu0 %v1550
  %1680 = vmatprep.subr.mxu0 0.0
  %1681 = vmatpush1.msra.mxu0 %v1549
  %1682 = vmatprep.subr.mxu0 0.0
  %1683 = vmatpush1.msra.mxu0 %v1548
  %1684 = vmatprep.subr.mxu0 0.0
  %1685 = vmatpush2.msra.mxu0 %v1579
  %1686 = vmatprep.subr.mxu0 0.0
  %1687 = vmatpush2.msra.mxu0 %v1578
  %1688 = vmatprep.subr.mxu0 0.0
  %1689 = vmatpush2.msra.mxu0 %v1577
  %1690 = vmatprep.subr.mxu0 0.0
  %1691 = vmatpush2.msra.mxu0 %v1576
  %1692 = vmatprep.subr.mxu0 0.0
  %1693 = vmatpush2.msra.mxu0 %v1575
  %1694 = vmatprep.subr.mxu0 0.0
  %1695 = vmatpush2.msra.mxu0 %v1574
  %1696 = vmatprep.subr.mxu0 0.0
  %1697 = vmatpush2.msra.mxu0 %v1573
  %1698 = vmatprep.subr.mxu0 0.0
  %1699 = vmatpush2.msra.mxu0 %v1572
  %1700 = vmatprep.subr.mxu0 0.0
  %1701 = vmatpush2.msra.mxu0 %v1571
  %1702 = vmatprep.subr.mxu0 0.0
  %1703 = vmatpush2.msra.mxu0 %v1570
  %1704 = vmatprep.subr.mxu0 0.0
  %1705 = vmatpush2.msra.mxu0 %v1569
  %1706 = vmatprep.subr.mxu0 0.0
  %1707 = vmatpush2.msra.mxu0 %v1568
  %1708 = vmatprep.subr.mxu0 0.0
  %1709 = vmatpush2.msra.mxu0 %v1567
  %1710 = vmatprep.subr.mxu0 0.0
  %1711 = vmatpush2.msra.mxu0 %v1566
  %1712 = vmatprep.subr.mxu0 0.0
  %1713 = vmatpush2.msra.mxu0 %v1565
  %1714 = vmatprep.subr.mxu0 0.0
  %1715 = vmatpush2.msra.mxu0 %v1564
  %1716 = vmatprep.mubr.f32.mxu0 %v36
  %1717 = vmatmul.mubr.f32.gmra.mxu0 %v35
  %v1718 = vpop.f32.mrf.mxu0
  %v1719 = vadd.f32 %v1650, %v1718
  %v1720 = vpop.f32.mrf.mxu0
  %1721 = vdwg.mxu0
  %1722 = vmatprep.subr.mxu0 0.0
  %1723 = vmatpush1.msra.mxu0 %v1595
  %1724 = vmatprep.subr.mxu0 0.0
  %1725 = vmatpush1.msra.mxu0 %v1594
  %1726 = vmatprep.subr.mxu0 0.0
  %1727 = vmatpush1.msra.mxu0 %v1593
  %1728 = vmatprep.subr.mxu0 0.0
  %1729 = vmatpush1.msra.mxu0 %v1592
  %1730 = vmatprep.subr.mxu0 0.0
  %1731 = vmatpush1.msra.mxu0 %v1591
  %1732 = vmatprep.subr.mxu0 0.0
  %1733 = vmatpush1.msra.mxu0 %v1590
  %1734 = vmatprep.subr.mxu0 0.0
  %1735 = vmatpush1.msra.mxu0 %v1589
  %1736 = vmatprep.subr.mxu0 0.0
  %1737 = vmatpush1.msra.mxu0 %v1588
  %1738 = vmatprep.subr.mxu0 0.0
  %1739 = vmatpush1.msra.mxu0 %v1587
  %1740 = vmatprep.subr.mxu0 0.0
  %1741 = vmatpush1.msra.mxu0 %v1586
  %1742 = vmatprep.subr.mxu0 0.0
  %1743 = vmatpush1.msra.mxu0 %v1585
  %1744 = vmatprep.subr.mxu0 0.0
  %1745 = vmatpush1.msra.mxu0 %v1584
  %1746 = vmatprep.subr.mxu0 0.0
  %1747 = vmatpush1.msra.mxu0 %v1583
  %1748 = vmatprep.subr.mxu0 0.0
  %1749 = vmatpush1.msra.mxu0 %v1582
  %1750 = vmatprep.subr.mxu0 0.0
  %1751 = vmatpush1.msra.mxu0 %v1581
  %1752 = vmatprep.subr.mxu0 0.0
  %1753 = vmatpush1.msra.mxu0 %v1580
  %1754 = vmatprep.subr.mxu0 0.0
  %1755 = vmatpush2.msra.mxu0 %v1611
  %1756 = vmatprep.subr.mxu0 0.0
  %1757 = vmatpush2.msra.mxu0 %v1610
  %1758 = vmatprep.subr.mxu0 0.0
  %1759 = vmatpush2.msra.mxu0 %v1609
  %1760 = vmatprep.subr.mxu0 0.0
  %1761 = vmatpush2.msra.mxu0 %v1608
  %1762 = vmatprep.subr.mxu0 0.0
  %1763 = vmatpush2.msra.mxu0 %v1607
  %1764 = vmatprep.subr.mxu0 0.0
  %1765 = vmatpush2.msra.mxu0 %v1606
  %1766 = vmatprep.subr.mxu0 0.0
  %1767 = vmatpush2.msra.mxu0 %v1605
  %1768 = vmatprep.subr.mxu0 0.0
  %1769 = vmatpush2.msra.mxu0 %v1604
  %1770 = vmatprep.subr.mxu0 0.0
  %1771 = vmatpush2.msra.mxu0 %v1603
  %1772 = vmatprep.subr.mxu0 0.0
  %1773 = vmatpush2.msra.mxu0 %v1602
  %1774 = vmatprep.subr.mxu0 0.0
  %1775 = vmatpush2.msra.mxu0 %v1601
  %1776 = vmatprep.subr.mxu0 0.0
  %1777 = vmatpush2.msra.mxu0 %v1600
  %1778 = vmatprep.subr.mxu0 0.0
  %1779 = vmatpush2.msra.mxu0 %v1599
  %1780 = vmatprep.subr.mxu0 0.0
  %1781 = vmatpush2.msra.mxu0 %v1598
  %1782 = vmatprep.subr.mxu0 0.0
  %1783 = vmatpush2.msra.mxu0 %v1597
  %1784 = vmatprep.subr.mxu0 0.0
  %1785 = vmatpush2.msra.mxu0 %v1596
  %1786 = vmatprep.mubr.f32.mxu0 %v38
  %1787 = vmatmul.mubr.f32.gmra.mxu0 %v37
  %v1788 = vpop.f32.mrf.mxu0
  %v1789 = vadd.f32 %v1719, %v1788
  %v1790 = vpop.f32.mrf.mxu0
  %1791 = vdwg.mxu0
  %1792 = vmatprep.subr.mxu0 0.0
  %1793 = vmatpush1.msra.mxu0 %v1627
  %1794 = vmatprep.subr.mxu0 0.0
  %1795 = vmatpush1.msra.mxu0 %v1626
  %1796 = vmatprep.subr.mxu0 0.0
  %1797 = vmatpush1.msra.mxu0 %v1625
  %1798 = vmatprep.subr.mxu0 0.0
  %1799 = vmatpush1.msra.mxu0 %v1624
  %1800 = vmatprep.subr.mxu0 0.0
  %1801 = vmatpush1.msra.mxu0 %v1623
  %1802 = vmatprep.subr.mxu0 0.0
  %1803 = vmatpush1.msra.mxu0 %v1622
  %1804 = vmatprep.subr.mxu0 0.0
  %1805 = vmatpush1.msra.mxu0 %v1621
  %1806 = vmatprep.subr.mxu0 0.0
  %1807 = vmatpush1.msra.mxu0 %v1620
  %1808 = vmatprep.subr.mxu0 0.0
  %1809 = vmatpush1.msra.mxu0 %v1619
  %1810 = vmatprep.subr.mxu0 0.0
  %1811 = vmatpush1.msra.mxu0 %v1618
  %1812 = vmatprep.subr.mxu0 0.0
  %1813 = vmatpush1.msra.mxu0 %v1617
  %1814 = vmatprep.subr.mxu0 0.0
  %1815 = vmatpush1.msra.mxu0 %v1616
  %1816 = vmatprep.subr.mxu0 0.0
  %1817 = vmatpush1.msra.mxu0 %v1615
  %1818 = vmatprep.subr.mxu0 0.0
  %1819 = vmatpush1.msra.mxu0 %v1614
  %1820 = vmatprep.subr.mxu0 0.0
  %1821 = vmatpush1.msra.mxu0 %v1613
  %1822 = vmatprep.subr.mxu0 0.0
  %1823 = vmatpush1.msra.mxu0 %v1612
  %1824 = vmatprep.subr.mxu0 0.0
  %1825 = vmatpush2.msra.mxu0 %v1643
  %1826 = vmatprep.subr.mxu0 0.0
  %1827 = vmatpush2.msra.mxu0 %v1642
  %1828 = vmatprep.subr.mxu0 0.0
  %1829 = vmatpush2.msra.mxu0 %v1641
  %1830 = vmatprep.subr.mxu0 0.0
  %1831 = vmatpush2.msra.mxu0 %v1640
  %1832 = vmatprep.subr.mxu0 0.0
  %1833 = vmatpush2.msra.mxu0 %v1639
  %1834 = vmatprep.subr.mxu0 0.0
  %1835 = vmatpush2.msra.mxu0 %v1638
  %1836 = vmatprep.subr.mxu0 0.0
  %1837 = vmatpush2.msra.mxu0 %v1637
  %1838 = vmatprep.subr.mxu0 0.0
  %1839 = vmatpush2.msra.mxu0 %v1636
  %1840 = vmatprep.subr.mxu0 0.0
  %1841 = vmatpush2.msra.mxu0 %v1635
  %1842 = vmatprep.subr.mxu0 0.0
  %1843 = vmatpush2.msra.mxu0 %v1634
  %1844 = vmatprep.subr.mxu0 0.0
  %1845 = vmatpush2.msra.mxu0 %v1633
  %1846 = vmatprep.subr.mxu0 0.0
  %1847 = vmatpush2.msra.mxu0 %v1632
  %1848 = vmatprep.subr.mxu0 0.0
  %1849 = vmatpush2.msra.mxu0 %v1631
  %1850 = vmatprep.subr.mxu0 0.0
  %1851 = vmatpush2.msra.mxu0 %v1630
  %1852 = vmatprep.subr.mxu0 0.0
  %1853 = vmatpush2.msra.mxu0 %v1629
  %1854 = vmatprep.subr.mxu0 0.0
  %1855 = vmatpush2.msra.mxu0 %v1628
  %1856 = vmatprep.mubr.f32.mxu0 %v40
  %1857 = vmatmul.mubr.f32.gmra.mxu0 %v39
  %v1858 = vpop.f32.mrf.mxu0
  %v1859 = vadd.f32 %v1789, %v1858
  %v1860 = vpop.f32.mrf.mxu0
  %1861 = vdwg.mxu0
  %v1862 = vmax.f32 %v1859, 0.0
  %s1863 = scalar_lea.vmem %s4, 96
  %v1864 = vld [vmem:[%s1863] sm:$0xff]
  %v1865 = vld [vmem:[%s1863 + $0x8] sm:$0xff]
  %v1866 = vld [vmem:[%s1863 + $0x10] sm:$0xff]
  %v1867 = vld [vmem:[%s1863 + $0x18] sm:$0xff]
  %s1868 = scalar_lea.vmem %s5, 3
  %v1869 = vld [vmem:[%s1868] sm:$0x1]
  %v1871 = vlaneseq
  %v1872 = vshrl.u32 %v1871, 7
  %v1873 = vsub.s32 0, %v1872
  %v1874 = vrot.slane %v1869, %v1873
  %v1877 = vsel %vm366, %v1862, 0
  %1879 = vmatprep.subr.mxu0 0.0
  %1880 = vmatpush1.msra.mxu0 0.0
  %1881 = vmatprep.subr.mxu0 0.0
  %1882 = vmatpush1.msra.mxu0 0.0
  %1883 = vmatprep.subr.mxu0 0.0
  %1884 = vmatpush1.msra.mxu0 0.0
  %1885 = vmatprep.subr.mxu0 0.0
  %1886 = vmatpush1.msra.mxu0 0.0
  %1887 = vmatprep.subr.mxu0 0.0
  %1888 = vmatpush1.msra.mxu0 0.0
  %1889 = vmatprep.subr.mxu0 0.0
  %1890 = vmatpush1.msra.mxu0 0.0
  %1891 = vmatprep.subr.mxu0 0.0
  %1892 = vmatpush1.msra.mxu0 0.0
  %1893 = vmatprep.subr.mxu0 0.0
  %1894 = vmatpush1.msra.mxu0 0.0
  %1895 = vmatprep.subr.mxu0 0.0
  %1896 = vmatpush1.msra.mxu0 0.0
  %1897 = vmatprep.subr.mxu0 0.0
  %1898 = vmatpush1.msra.mxu0 0.0
  %1899 = vmatprep.subr.mxu0 0.0
  %1900 = vmatpush1.msra.mxu0 0.0
  %1901 = vmatprep.subr.mxu0 0.0
  %1902 = vmatpush1.msra.mxu0 0.0
  %1903 = vmatprep.subr.mxu0 0.0
  %1904 = vmatpush1.msra.mxu0 %v1867
  %1905 = vmatprep.subr.mxu0 0.0
  %1906 = vmatpush1.msra.mxu0 %v1866
  %1907 = vmatprep.subr.mxu0 0.0
  %1908 = vmatpush1.msra.mxu0 %v1865
  %1909 = vmatprep.subr.mxu0 0.0
  %1910 = vmatpush1.msra.mxu0 %v1864
  %1911 = vmatprep.subr.mxu0 0.0
  %1912 = vmatpush2.msra.mxu0 0.0
  %1913 = vmatprep.subr.mxu0 0.0
  %1914 = vmatpush2.msra.mxu0 0.0
  %1915 = vmatprep.subr.mxu0 0.0
  %1916 = vmatpush2.msra.mxu0 0.0
  %1917 = vmatprep.subr.mxu0 0.0
  %1918 = vmatpush2.msra.mxu0 0.0
  %1919 = vmatprep.subr.mxu0 0.0
  %1920 = vmatpush2.msra.mxu0 0.0
  %1921 = vmatprep.subr.mxu0 0.0
  %1922 = vmatpush2.msra.mxu0 0.0
  %1923 = vmatprep.subr.mxu0 0.0
  %1924 = vmatpush2.msra.mxu0 0.0
  %1925 = vmatprep.subr.mxu0 0.0
  %1926 = vmatpush2.msra.mxu0 0.0
  %1927 = vmatprep.subr.mxu0 0.0
  %1928 = vmatpush2.msra.mxu0 0.0
  %1929 = vmatprep.subr.mxu0 0.0
  %1930 = vmatpush2.msra.mxu0 0.0
  %1931 = vmatprep.subr.mxu0 0.0
  %1932 = vmatpush2.msra.mxu0 0.0
  %1933 = vmatprep.subr.mxu0 0.0
  %1934 = vmatpush2.msra.mxu0 0.0
  %1935 = vmatprep.subr.mxu0 0.0
  %1936 = vmatpush2.msra.mxu0 0.0
  %1937 = vmatprep.subr.mxu0 0.0
  %1938 = vmatpush2.msra.mxu0 0.0
  %1939 = vmatprep.subr.mxu0 0.0
  %1940 = vmatpush2.msra.mxu0 0.0
  %1941 = vmatprep.subr.mxu0 0.0
  %1942 = vmatpush2.msra.mxu0 0.0
  %1943 = vmatprep.mubr.f32.mxu0 0.0
  %1944 = vmatmul.mubr.f32.gmra.mxu0 %v1877
  %v1945 = vpop.f32.mrf.mxu0
  %v1946 = vadd.f32 %v1874, %v1945
  %v1947 = vpop.f32.mrf.mxu0
  %1948 = vdwg.mxu0
  %v1949 = vmax.f32 %v1946, 0.0
  %s1950 = scalar_lea.vmem %s6, 96
  %v1951 = vld [vmem:[%s1950] sm:$0xff]
  %v1952 = vld [vmem:[%s1950 + $0x8] sm:$0xff]
  %v1953 = vld [vmem:[%s1950 + $0x10] sm:$0xff]
  %v1954 = vld [vmem:[%s1950 + $0x18] sm:$0xff]
  %s1955 = scalar_lea.vmem %s7, 3
  %v1956 = vld [vmem:[%s1955] sm:$0x1]
  %v1958 = vlaneseq
  %v1959 = vshrl.u32 %v1958, 7
  %v1960 = vsub.s32 0, %v1959
  %v1961 = vrot.slane %v1956, %v1960
  %v1964 = vsel %vm366, %v1949, 0
  %1966 = vmatprep.subr.mxu0 0.0
  %1967 = vmatpush1.msra.mxu0 0.0
  %1968 = vmatprep.subr.mxu0 0.0
  %1969 = vmatpush1.msra.mxu0 0.0
  %1970 = vmatprep.subr.mxu0 0.0
  %1971 = vmatpush1.msra.mxu0 0.0
  %1972 = vmatprep.subr.mxu0 0.0
  %1973 = vmatpush1.msra.mxu0 0.0
  %1974 = vmatprep.subr.mxu0 0.0
  %1975 = vmatpush1.msra.mxu0 0.0
  %1976 = vmatprep.subr.mxu0 0.0
  %1977 = vmatpush1.msra.mxu0 0.0
  %1978 = vmatprep.subr.mxu0 0.0
  %1979 = vmatpush1.msra.mxu0 0.0
  %1980 = vmatprep.subr.mxu0 0.0
  %1981 = vmatpush1.msra.mxu0 0.0
  %1982 = vmatprep.subr.mxu0 0.0
  %1983 = vmatpush1.msra.mxu0 0.0
  %1984 = vmatprep.subr.mxu0 0.0
  %1985 = vmatpush1.msra.mxu0 0.0
  %1986 = vmatprep.subr.mxu0 0.0
  %1987 = vmatpush1.msra.mxu0 0.0
  %1988 = vmatprep.subr.mxu0 0.0
  %1989 = vmatpush1.msra.mxu0 0.0
  %1990 = vmatprep.subr.mxu0 0.0
  %1991 = vmatpush1.msra.mxu0 %v1954
  %1992 = vmatprep.subr.mxu0 0.0
  %1993 = vmatpush1.msra.mxu0 %v1953
  %1994 = vmatprep.subr.mxu0 0.0
  %1995 = vmatpush1.msra.mxu0 %v1952
  %1996 = vmatprep.subr.mxu0 0.0
  %1997 = vmatpush1.msra.mxu0 %v1951
  %1998 = vmatprep.subr.mxu0 0.0
  %1999 = vmatpush2.msra.mxu0 0.0
  %2000 = vmatprep.subr.mxu0 0.0
  %2001 = vmatpush2.msra.mxu0 0.0
  %2002 = vmatprep.subr.mxu0 0.0
  %2003 = vmatpush2.msra.mxu0 0.0
  %2004 = vmatprep.subr.mxu0 0.0
  %2005 = vmatpush2.msra.mxu0 0.0
  %2006 = vmatprep.subr.mxu0 0.0
  %2007 = vmatpush2.msra.mxu0 0.0
  %2008 = vmatprep.subr.mxu0 0.0
  %2009 = vmatpush2.msra.mxu0 0.0
  %2010 = vmatprep.subr.mxu0 0.0
  %2011 = vmatpush2.msra.mxu0 0.0
  %2012 = vmatprep.subr.mxu0 0.0
  %2013 = vmatpush2.msra.mxu0 0.0
  %2014 = vmatprep.subr.mxu0 0.0
  %2015 = vmatpush2.msra.mxu0 0.0
  %2016 = vmatprep.subr.mxu0 0.0
  %2017 = vmatpush2.msra.mxu0 0.0
  %2018 = vmatprep.subr.mxu0 0.0
  %2019 = vmatpush2.msra.mxu0 0.0
  %2020 = vmatprep.subr.mxu0 0.0
  %2021 = vmatpush2.msra.mxu0 0.0
  %2022 = vmatprep.subr.mxu0 0.0
  %2023 = vmatpush2.msra.mxu0 0.0
  %2024 = vmatprep.subr.mxu0 0.0
  %2025 = vmatpush2.msra.mxu0 0.0
  %2026 = vmatprep.subr.mxu0 0.0
  %2027 = vmatpush2.msra.mxu0 0.0
  %2028 = vmatprep.subr.mxu0 0.0
  %2029 = vmatpush2.msra.mxu0 0.0
  %2030 = vmatprep.mubr.f32.mxu0 0.0
  %2031 = vmatmul.mubr.f32.gmra.mxu0 %v1964
  %v2032 = vpop.f32.mrf.mxu0
  %v2033 = vadd.f32 %v1961, %v2032
  %v2034 = vpop.f32.mrf.mxu0
  %2035 = vdwg.mxu0
  %v2036 = vmul.f32 %v2033, %v2033
  %2037 = vadd.xlane.f32.xlu0 %v2036
  %v2038 = vpop.xlane.xlu0 %2037
  %v2039 = vrsqrt.pop %v2038
  %v2040 = vmul.f32 %v2038, %v2039
  %vm2041 = vcmp.eq.f32.partialorder %v2038, inf
  %v2042 = vsel %vm2041, %v2038, %v2040
  %vm2043 = vcmp.eq.f32.partialorder %v2038, 0.0
  %v2044 = vand.u32 %v2038, 2147483648
  %v2045 = vsel %vm2043, %v2044, %v2042
  %v2046 = vmax.f32 %v2045, 1e-12
  %v2047 = vrcp.pop %v2046
  %v2048 = vmul.f32 %v2033, %v2047
  %s2049 = scalar_lea.vmem %s8, 24
  %2050 = vst [vmem:[%s2049] sm:$0xff] %v2048
  // Predicated region
  $region34: #{fwd.2} parent=0 // pred_check
    _
  $region35: #{fwd.2} parent=0 // pred_check_branch
    %2052 = sbr.rel (0) target = $region37
  $region36: #{fwd.2} parent=0 // pred_region
    _
  $region37: #{fwd.2} parent=0 // pred_fallthru
    _
  // Predicated region
  $region38: #{fwd.2} parent=0 // pred_check
    _
  $region39: #{fwd.2} parent=0 // pred_check_branch
    %2054 = sbr.rel (0) target = $region41
  $region40: #{fwd.2} parent=0 // pred_region
    _
  $region41: #{fwd.2} parent=0 // pred_fallthru
    _

</llo_original>
